<compile_context>
chip_gen: v5e
topology: v5e:2x2
jax: 0.10.0
libtpu: 0.0.40
codegen_flags: <defaults>
</compile_context>

<pallas_src>
import jax
import jax.numpy as jnp
from jax.experimental import pallas as pl
from jax.experimental.pallas import tpu as pltpu

LANE = 128  # TPU lane width: channel axes are padded to a multiple of this.


def _round_up(n, m):
    return ((n + m - 1) // m) * m


def _pad_dim(a, size, axis):
    if a.shape[axis] == size:
        return a
    pad = [(0, 0)] * a.ndim
    pad[axis] = (0, size - a.shape[axis])
    return jnp.pad(a, pad)


def _fold_bn(gamma, beta, mean, var, eps):
    scale = gamma / jnp.sqrt(var + eps)
    shift = beta - mean * scale
    return scale, shift


def _pick_th(H, W, target_rows=512):
    """Largest divisor of H with TH*W <= target_rows, keeping >=2 row blocks when possible."""
    best = 1
    for th in range(1, H):                 # exclude H itself -> >=2 row blocks when H > 1
        if H % th == 0 and th * W <= target_rows:
            best = th
    return best if H > 1 else 1


# ---------------------------------------------------------------------------
# Fused bottleneck kernel: conv1(1x1)+BN+ReLU -> conv2(3x3)+BN+ReLU
#                          -> conv3(1x1)+BN + residual + ReLU
# grid = (batch n, row-block r); only the final output is written to HBM.
# ---------------------------------------------------------------------------
def _make_fused_kernel(H, W, TH, K, cin_p, cw_p, cexp_p, compute_dtype):
    pad = K // 2  # == 1 for the 3x3 conv

    def kernel(x_ref, w1_ref, b1_ref, w2_ref, b2_ref, w3_ref, b3_ref,
               o_ref, y1_ref):
        # x_ref : (1, H, W, cin_p)   bf16, whole image for this n (constant over r -> one DMA per n)
        # w1_ref: (cin_p, cw_p)      w2_ref: (K*K, cw_p, cw_p)   w3_ref: (cw_p, cexp_p)   all bf16
        # b*_ref: (1, C) f32 folded-BN shifts
        # o_ref : (1, TH, W, cexp_p) f32 final output rows
        # y1_ref: (TH+2, W+2, cw_p)  bf16 VMEM scratch: conv1 output with 1-px zero halo
        r = pl.program_id(1)
        nr = pl.num_programs(1)
        row0 = pl.multiple_of(r * TH, TH)

        w1 = w1_ref[...]
        b1 = b1_ref[...]

        def conv1_rows(rows_bf16):
            # rows_bf16: (n_rows, W, cin_p) -> relu(rows @ w1 + b1) as bf16 (n_rows, W, cw_p)
            n_rows = rows_bf16.shape[0]
            a = jnp.dot(rows_bf16.reshape(n_rows * W, cin_p), w1,
                        preferred_element_type=jnp.float32)
            a = jnp.maximum(a + b1, 0.0).astype(compute_dtype)
            return a.reshape(n_rows, W, cw_p)

        # ---- conv1 (1x1 + folded BN + ReLU) into the haloed scratch ----------
        # column halo (always zero; rewritten every step so grid order / core split is irrelevant)
        zcol = jnp.zeros((TH + 2 * pad, pad, cw_p), compute_dtype)
        y1_ref[:, 0:pad, :] = zcol
        y1_ref[:, W + pad:W + 2 * pad, :] = zcol

        # center TH rows
        xc = x_ref[0, pl.ds(row0, TH), :, :]
        y1_ref[pad:TH + pad, pad:W + pad, :] = conv1_rows(xc)

        # top halo row: real image row (r*TH - 1) or zeros at the image border
        @pl.when(r > 0)
        def _():
            xt = x_ref[0, pl.ds(row0 - pad, pad), :, :]
            y1_ref[0:pad, pad:W + pad, :] = conv1_rows(xt)

        @pl.when(r == 0)
        def _():
            y1_ref[0:pad, pad:W + pad, :] = jnp.zeros((pad, W, cw_p), compute_dtype)

        # bottom halo row
        @pl.when(r < nr - 1)
        def _():
            xb = x_ref[0, pl.ds(row0 + TH, pad), :, :]
            y1_ref[TH + pad:TH + 2 * pad, pad:W + pad, :] = conv1_rows(xb)

        @pl.when(r == nr - 1)
        def _():
            y1_ref[TH + pad:TH + 2 * pad, pad:W + pad, :] = jnp.zeros(
                (pad, W, cw_p), compute_dtype)

        # ---- conv2 (ordinary 3x3 path) + BN + ReLU: K*K accumulating tap dots
        acc2 = jnp.zeros((TH * W, cw_p), jnp.float32)
        for kh in range(K):
            for kw in range(K):
                tap = kh * K + kw
                patch = y1_ref[kh:kh + TH, kw:kw + W, :]           # (TH, W, cw_p)
                acc2 = acc2 + jnp.dot(patch.reshape(TH * W, cw_p),
                                      w2_ref[tap],
                                      preferred_element_type=jnp.float32)
        y2 = jnp.maximum(acc2 + b2_ref[...], 0.0).astype(compute_dtype)

        # ---- conv3 (1x1 + folded BN) + residual + ReLU ------------------------
        y3 = jnp.dot(y2, w3_ref[...], preferred_element_type=jnp.float32) + b3_ref[...]
        res = x_ref[0, pl.ds(row0, TH), :, :].astype(jnp.float32).reshape(TH * W, cexp_p)
        o_ref[0, :, :, :] = jnp.maximum(y3 + res, 0.0).reshape(TH, W, cexp_p)

    return kernel


# ---------------------------------------------------------------------------
# Full DeformBottleNeck forward (inference / eval-mode BN), single pallas_call.
# ---------------------------------------------------------------------------
def deform_bottleneck_forward(x_nchw, p, *, eps=1e-5, compute_dtype=jnp.bfloat16):
    N, Cin, H, W = x_nchw.shape
    w1, w2, w3 = p["w1"], p["w2"], p["w3"]
    width = w1.shape[0]
    Cexp = w3.shape[0]
    K = w2.shape[2]
    assert K == 3
    assert Cexp == Cin, "identity shortcut requires in_chans == out_chans * expansion (no down_sample)"

    cin_p = _round_up(Cin, LANE)
    cw_p = _round_up(width, LANE)
    cexp_p = _round_up(Cexp, LANE)
    assert cin_p == cexp_p

    # ---- BN folding: scale into weights, shift kept as (1, C) f32 vectors -----
    s1, b1 = _fold_bn(p["g1"], p["b1"], p["m1"], p["v1"], eps)
    s2, b2 = _fold_bn(p["g2"], p["b2"], p["m2"], p["v2"], eps)
    s3, b3 = _fold_bn(p["g3"], p["b3"], p["m3"], p["v3"], eps)

    # conv1: (width, Cin, 1, 1) -> (cin_p, cw_p) bf16
    w1m = w1[:, :, 0, 0].T * s1[None, :]
    w1m = _pad_dim(_pad_dim(w1m, cin_p, 0), cw_p, 1).astype(compute_dtype)
    b1p = _pad_dim(b1.reshape(1, -1), cw_p, 1).astype(jnp.float32)

    # conv2: (width, width, K, K) -> (K*K, cw_p, cw_p) bf16, tap-major
    w2m = jnp.transpose(w2, (2, 3, 1, 0)) * s2                    # (K, K, Ci, Co)
    w2m = _pad_dim(_pad_dim(w2m, cw_p, 2), cw_p, 3)
    w2m = w2m.reshape(K * K, cw_p, cw_p).astype(compute_dtype)
    b2p = _pad_dim(b2.reshape(1, -1), cw_p, 1).astype(jnp.float32)

    # conv3: (Cexp, width, 1, 1) -> (cw_p, cexp_p) bf16
    w3m = w3[:, :, 0, 0].T * s3[None, :]
    w3m = _pad_dim(_pad_dim(w3m, cw_p, 0), cexp_p, 1).astype(compute_dtype)
    b3p = _pad_dim(b3.reshape(1, -1), cexp_p, 1).astype(jnp.float32)

    # ---- layout: NCHW -> NHWC bf16, channels zero-padded to lane multiple -----
    x_nhwc = _pad_dim(jnp.transpose(x_nchw, (0, 2, 3, 1)), cin_p, 3).astype(compute_dtype)

    TH = _pick_th(H, W)
    R = H // TH
    kernel = _make_fused_kernel(H, W, TH, K, cin_p, cw_p, cexp_p, compute_dtype)

    # ---- explicit VMEM budget + cost estimate ---------------------------------
    bf, f32b = 2, 4
    x_blk = H * W * cin_p * bf
    w_bytes = (cin_p * cw_p + K * K * cw_p * cw_p + cw_p * cexp_p) * bf
    b_bytes = (2 * cw_p + cexp_p) * f32b
    out_blk = TH * W * cexp_p * f32b
    scratch_b = (TH + 2) * (W + 2) * cw_p * bf
    base = 2 * (x_blk + w_bytes + b_bytes + out_blk) + scratch_b   # double-buffered blocks
    vmem_limit = int(max(min(2 * base + (4 << 20), 64 << 20), 16 << 20))

    flops = 2 * N * H * W * (cin_p * cw_p + K * K * cw_p * cw_p + cw_p * cexp_p)
    bytes_accessed = N * (x_blk + H * W * cexp_p * f32b) + w_bytes + b_bytes
    cost = pl.CostEstimate(flops=flops, transcendentals=0, bytes_accessed=bytes_accessed)

    out = pl.pallas_call(
        kernel,
        out_shape=jax.ShapeDtypeStruct((N, H, W, cexp_p), jnp.float32),
        grid_spec=pltpu.PrefetchScalarGridSpec(
            num_scalar_prefetch=0,
            grid=(N, R),
            in_specs=[
                # whole image per n; block index ignores r -> fetched once per n
                pl.BlockSpec((1, H, W, cin_p), lambda n, r: (n, 0, 0, 0)),
                pl.BlockSpec((cin_p, cw_p), lambda n, r: (0, 0)),
                pl.BlockSpec((1, cw_p), lambda n, r: (0, 0)),
                pl.BlockSpec((K * K, cw_p, cw_p), lambda n, r: (0, 0, 0)),
                pl.BlockSpec((1, cw_p), lambda n, r: (0, 0)),
                pl.BlockSpec((cw_p, cexp_p), lambda n, r: (0, 0)),
                pl.BlockSpec((1, cexp_p), lambda n, r: (0, 0)),
            ],
            out_specs=pl.BlockSpec((1, TH, W, cexp_p), lambda n, r: (n, r, 0, 0)),
            scratch_shapes=[pltpu.VMEM((TH + 2, W + 2, cw_p), compute_dtype)],
        ),
        compiler_params=pltpu.CompilerParams(
            dimension_semantics=("parallel", "parallel"),
            vmem_limit_bytes=vmem_limit),
        cost_estimate=cost,
    )(x_nhwc, w1m, b1p, w2m, b2p, w3m, b3p)

    out = out[..., :Cexp]
    return jnp.transpose(out, (0, 3, 1, 2)).astype(x_nchw.dtype)


# ---------------------------------------------------------------------------
# Pure-JAX reference (same bf16 operand rounding as the kernel -> tight check)
# ---------------------------------------------------------------------------
def _reference(x_nchw, p, eps=1e-5, compute_dtype=jnp.bfloat16):
    x = jnp.transpose(x_nchw, (0, 2, 3, 1)).astype(compute_dtype)   # NHWC, bf16 like kernel input
    xf = x.astype(jnp.float32)

    def fold(g, b, m, v):
        s = g / jnp.sqrt(v + eps)
        return s, b - m * s

    s1, b1 = fold(p["g1"], p["b1"], p["m1"], p["v1"])
    s2, b2 = fold(p["g2"], p["b2"], p["m2"], p["v2"])
    s3, b3 = fold(p["g3"], p["b3"], p["m3"], p["v3"])

    w1 = (p["w1"][:, :, 0, 0].T * s1[None, :]).astype(compute_dtype)
    w2 = (jnp.transpose(p["w2"], (2, 3, 1, 0)) * s2).astype(compute_dtype)   # HWIO
    w3 = (p["w3"][:, :, 0, 0].T * s3[None, :]).astype(compute_dtype)

    y = jnp.einsum("nhwc,cd->nhwd", x, w1, preferred_element_type=jnp.float32) + b1
    y = jnp.maximum(y, 0.0).astype(compute_dtype)
    y = jax.lax.conv_general_dilated(
        y, w2, (1, 1), "SAME",
        dimension_numbers=("NHWC", "HWIO", "NHWC"),
        preferred_element_type=jnp.float32) + b2
    y = jnp.maximum(y, 0.0).astype(compute_dtype)
    y = jnp.einsum("nhwc,cd->nhwd", y, w3, preferred_element_type=jnp.float32) + b3 + xf
    y = jnp.maximum(y, 0.0)
    return jnp.transpose(y, (0, 3, 1, 2))


if __name__ == "__main__":
    key = jax.random.PRNGKey(0)
    ks = jax.random.split(key, 16)

    N, H, W = 2, 16, 16
    out_chans = 8
    expansion = 4
    in_chans = out_chans * expansion   # identity shortcut (no down_sample)
    width = out_chans                  # width_per_group == base_width == 64, groups == 1
    K = 3

    x = jax.random.normal(ks[0], (N, in_chans, H, W), dtype=jnp.float32)

    def bn_params(kg, kb, km, kv, c):
        return (1.0 + 0.1 * jax.random.normal(kg, (c,), jnp.float32),
                0.1 * jax.random.normal(kb, (c,), jnp.float32),
                0.1 * jax.random.normal(km, (c,), jnp.float32),
                jnp.abs(1.0 + 0.1 * jax.random.normal(kv, (c,), jnp.float32)))

    params = {}
    params["w1"] = 0.1 * jax.random.normal(ks[1], (width, in_chans, 1, 1), jnp.float32)
    params["g1"], params["b1"], params["m1"], params["v1"] = bn_params(ks[2], ks[3], ks[4], ks[5], width)
    params["w2"] = 0.1 * jax.random.normal(ks[6], (width, width, K, K), jnp.float32)
    params["g2"], params["b2"], params["m2"], params["v2"] = bn_params(ks[7], ks[8], ks[9], ks[10], width)
    params["w3"] = 0.1 * jax.random.normal(ks[11], (out_chans * expansion, width, 1, 1), jnp.float32)
    params["g3"], params["b3"], params["m3"], params["v3"] = bn_params(ks[12], ks[13], ks[14], ks[15],
                                                                       out_chans * expansion)

    out = deform_bottleneck_forward(x, params)
    out = jax.block_until_ready(out)

    ref = _reference(x, params)
    assert out.shape == (N, in_chans, H, W)
    max_err = jnp.max(jnp.abs(out - ref))
    assert jnp.allclose(out, ref, atol=1e-2, rtol=1e-2), f"max abs err = {max_err}"

    print("KERNEL_OK")
</pallas_src>

<mosaic_0001>
module attributes {stable_mosaic.version = 11 : i64} {
  func.func @kernel(%arg0: i32, %arg1: i32, %arg2: memref<1x16x16x128xbf16, #tpu.memory_space<vmem>>, %arg3: memref<128x128xbf16, #tpu.memory_space<vmem>>, %arg4: memref<1x128xf32, #tpu.memory_space<vmem>>, %arg5: memref<9x128x128xbf16, #tpu.memory_space<vmem>>, %arg6: memref<1x128xf32, #tpu.memory_space<vmem>>, %arg7: memref<128x128xbf16, #tpu.memory_space<vmem>>, %arg8: memref<1x128xf32, #tpu.memory_space<vmem>>, %arg9: memref<1x8x16x128xf32, #tpu.memory_space<vmem>>, %arg10: memref<10x18x128xbf16, #tpu.memory_space<vmem>>) attributes {dimension_semantics = [#tpu.dimension_semantics<parallel>, #tpu.dimension_semantics<parallel>], iteration_bounds = array<i64: 2, 2>, scalar_prefetch = 0 : i64, scratch_operands = 1 : i64, tpu.core_type = #tpu.core_type<tc>, window_params = [{transform_indices = @transform_0, window_bounds = array<i64: 1, 16, 16, 128>}, {pipeline_mode = #tpu.pipeline_mode<synchronous>, transform_indices = @transform_1, window_bounds = array<i64: 128, 128>}, {pipeline_mode = #tpu.pipeline_mode<synchronous>, transform_indices = @transform_2, window_bounds = array<i64: 1, 128>}, {pipeline_mode = #tpu.pipeline_mode<synchronous>, transform_indices = @transform_3, window_bounds = array<i64: 9, 128, 128>}, {pipeline_mode = #tpu.pipeline_mode<synchronous>, transform_indices = @transform_4, window_bounds = array<i64: 1, 128>}, {pipeline_mode = #tpu.pipeline_mode<synchronous>, transform_indices = @transform_5, window_bounds = array<i64: 128, 128>}, {pipeline_mode = #tpu.pipeline_mode<synchronous>, transform_indices = @transform_6, window_bounds = array<i64: 1, 128>}, {transform_indices = @transform_7, window_bounds = array<i64: 1, 8, 16, 128>}]} {
    %c8_i32 = arith.constant 8 : i32
    %0 = arith.muli %arg1, %c8_i32 : i32
    %1 = tpu.assume_multiple %0, 8 : i32
    %c0 = arith.constant 0 : index
    %c0_0 = arith.constant 0 : index
    %2 = vector.load %arg3[%c0, %c0_0] : memref<128x128xbf16, #tpu.memory_space<vmem>>, vector<128x128xbf16>
    %c0_1 = arith.constant 0 : index
    %c0_2 = arith.constant 0 : index
    %3 = vector.load %arg4[%c0_1, %c0_2] : memref<1x128xf32, #tpu.memory_space<vmem>>, vector<1x128xf32>
    %cst = arith.constant 0.000000e+00 : bf16
    %4 = vector.broadcast %cst : bf16 to vector<10x1x128xbf16>
    %c0_3 = arith.constant 0 : index
    %c0_4 = arith.constant 0 : index
    %c0_5 = arith.constant 0 : index
    %5 = vector.load %arg10[%c0_3, %c0_4, %c0_5] : memref<10x18x128xbf16, #tpu.memory_space<vmem>>, vector<10x1x128xbf16>
    tpu.vector_store %arg10[%c0_3, %c0_4, %c0_5], %4 {strides = array<i32>} : memref<10x18x128xbf16, #tpu.memory_space<vmem>>, vector<10x1x128xbf16>,
    %c0_6 = arith.constant 0 : index
    %c17 = arith.constant 17 : index
    %c0_7 = arith.constant 0 : index
    %6 = vector.load %arg10[%c0_6, %c17, %c0_7] : memref<10x18x128xbf16, #tpu.memory_space<vmem>>, vector<10x1x128xbf16>
    tpu.vector_store %arg10[%c0_6, %c17, %c0_7], %4 {strides = array<i32>} : memref<10x18x128xbf16, #tpu.memory_space<vmem>>, vector<10x1x128xbf16>,
    %c0_8 = arith.constant 0 : index
    %7 = arith.index_cast %1 : i32 to index
    %c0_9 = arith.constant 0 : index
    %c0_10 = arith.constant 0 : index
    %8 = vector.load %arg2[%c0_8, %7, %c0_9, %c0_10] : memref<1x16x16x128xbf16, #tpu.memory_space<vmem>>, vector<1x8x16x128xbf16>
    %9 = vector.shape_cast %8 : vector<1x8x16x128xbf16> to vector<8x16x128xbf16>
    %10 = vector.shape_cast %9 : vector<8x16x128xbf16> to vector<128x128xbf16>
    %cst_11 = arith.constant dense<0.000000e+00> : vector<128x128xf32>
    %11 = tpu.matmul %10, %2, %cst_11 {dimension_numbers = #tpu.dot_dimension_numbers<[1], [0], [0], [1], [0, 0, 1, 1], [], []>} : vector<128x128xbf16>, vector<128x128xbf16>, vector<128x128xf32> -> vector<128x128xf32>
    %12 = vector.broadcast %3 : vector<1x128xf32> to vector<128x128xf32>
    %13 = arith.addf %11, %12 : vector<128x128xf32>
    %cst_12 = arith.constant 0.000000e+00 : f32
    %14 = vector.broadcast %cst_12 : f32 to vector<128x128xf32>
    %15 = arith.maximumf %13, %14 : vector<128x128xf32>
    %16 = arith.truncf %15 : vector<128x128xf32> to vector<128x128xbf16>
    %17 = vector.shape_cast %16 : vector<128x128xbf16> to vector<8x16x128xbf16>
    %c1 = arith.constant 1 : index
    %c1_13 = arith.constant 1 : index
    %c0_14 = arith.constant 0 : index
    %18 = vector.load %arg10[%c1, %c1_13, %c0_14] : memref<10x18x128xbf16, #tpu.memory_space<vmem>>, vector<8x16x128xbf16>
    tpu.vector_store %arg10[%c1, %c1_13, %c0_14], %17 {strides = array<i32>} : memref<10x18x128xbf16, #tpu.memory_space<vmem>>, vector<8x16x128xbf16>,
    %c0_i32 = arith.constant 0 : i32
    %19 = arith.cmpi sgt, %arg1, %c0_i32 : i32
    %20 = arith.extui %19 : i1 to i32
    %c0_i32_15 = arith.constant 0 : i32
    %21 = arith.cmpi ne, %20, %c0_i32_15 : i32
    scf.if %21 {
      %c1_i32_94 = arith.constant 1 : i32
      %109 = arith.subi %1, %c1_i32_94 : i32
      %c0_95 = arith.constant 0 : index
      %110 = arith.index_cast %109 : i32 to index
      %c0_96 = arith.constant 0 : index
      %c0_97 = arith.constant 0 : index
      %111 = vector.load %arg2[%c0_95, %110, %c0_96, %c0_97] : memref<1x16x16x128xbf16, #tpu.memory_space<vmem>>, vector<1x1x16x128xbf16>
      %112 = vector.shape_cast %111 : vector<1x1x16x128xbf16> to vector<1x16x128xbf16>
      %113 = vector.shape_cast %112 : vector<1x16x128xbf16> to vector<16x128xbf16>
      %cst_98 = arith.constant dense<0.000000e+00> : vector<16x128xf32>
      %114 = tpu.matmul %113, %2, %cst_98 {dimension_numbers = #tpu.dot_dimension_numbers<[1], [0], [0], [1], [0, 0, 1, 1], [], []>} : vector<16x128xbf16>, vector<128x128xbf16>, vector<16x128xf32> -> vector<16x128xf32>
      %115 = vector.broadcast %3 : vector<1x128xf32> to vector<16x128xf32>
      %116 = arith.addf %114, %115 : vector<16x128xf32>
      %cst_99 = arith.constant 0.000000e+00 : f32
      %117 = vector.broadcast %cst_99 : f32 to vector<16x128xf32>
      %118 = arith.maximumf %116, %117 : vector<16x128xf32>
      %119 = arith.truncf %118 : vector<16x128xf32> to vector<16x128xbf16>
      %120 = vector.shape_cast %119 : vector<16x128xbf16> to vector<1x16x128xbf16>
      %c0_100 = arith.constant 0 : index
      %c1_101 = arith.constant 1 : index
      %c0_102 = arith.constant 0 : index
      %121 = vector.load %arg10[%c0_100, %c1_101, %c0_102] : memref<10x18x128xbf16, #tpu.memory_space<vmem>>, vector<1x16x128xbf16>
      tpu.vector_store %arg10[%c0_100, %c1_101, %c0_102], %120 {strides = array<i32>} : memref<10x18x128xbf16, #tpu.memory_space<vmem>>, vector<1x16x128xbf16>,
    } else {
    }
    %c0_i32_16 = arith.constant 0 : i32
    %22 = arith.cmpi eq, %arg1, %c0_i32_16 : i32
    %23 = arith.extui %22 : i1 to i32
    %c0_i32_17 = arith.constant 0 : i32
    %24 = arith.cmpi ne, %23, %c0_i32_17 : i32
    scf.if %24 {
      %cst_94 = arith.constant 0.000000e+00 : bf16
      %109 = vector.broadcast %cst_94 : bf16 to vector<1x16x128xbf16>
      %c0_95 = arith.constant 0 : index
      %c1_96 = arith.constant 1 : index
      %c0_97 = arith.constant 0 : index
      %110 = vector.load %arg10[%c0_95, %c1_96, %c0_97] : memref<10x18x128xbf16, #tpu.memory_space<vmem>>, vector<1x16x128xbf16>
      tpu.vector_store %arg10[%c0_95, %c1_96, %c0_97], %109 {strides = array<i32>} : memref<10x18x128xbf16, #tpu.memory_space<vmem>>, vector<1x16x128xbf16>,
    } else {
    }
    %c1_i32 = arith.constant 1 : i32
    %25 = arith.cmpi slt, %arg1, %c1_i32 : i32
    %26 = arith.extui %25 : i1 to i32
    %c0_i32_18 = arith.constant 0 : i32
    %27 = arith.cmpi ne, %26, %c0_i32_18 : i32
    scf.if %27 {
      %c8_i32_94 = arith.constant 8 : i32
      %109 = arith.addi %1, %c8_i32_94 : i32
      %c0_95 = arith.constant 0 : index
      %110 = arith.index_cast %109 : i32 to index
      %c0_96 = arith.constant 0 : index
      %c0_97 = arith.constant 0 : index
      %111 = vector.load %arg2[%c0_95, %110, %c0_96, %c0_97] : memref<1x16x16x128xbf16, #tpu.memory_space<vmem>>, vector<1x1x16x128xbf16>
      %112 = vector.shape_cast %111 : vector<1x1x16x128xbf16> to vector<1x16x128xbf16>
      %113 = vector.shape_cast %112 : vector<1x16x128xbf16> to vector<16x128xbf16>
      %cst_98 = arith.constant dense<0.000000e+00> : vector<16x128xf32>
      %114 = tpu.matmul %113, %2, %cst_98 {dimension_numbers = #tpu.dot_dimension_numbers<[1], [0], [0], [1], [0, 0, 1, 1], [], []>} : vector<16x128xbf16>, vector<128x128xbf16>, vector<16x128xf32> -> vector<16x128xf32>
      %115 = vector.broadcast %3 : vector<1x128xf32> to vector<16x128xf32>
      %116 = arith.addf %114, %115 : vector<16x128xf32>
      %cst_99 = arith.constant 0.000000e+00 : f32
      %117 = vector.broadcast %cst_99 : f32 to vector<16x128xf32>
      %118 = arith.maximumf %116, %117 : vector<16x128xf32>
      %119 = arith.truncf %118 : vector<16x128xf32> to vector<16x128xbf16>
      %120 = vector.shape_cast %119 : vector<16x128xbf16> to vector<1x16x128xbf16>
      %c9 = arith.constant 9 : index
      %c1_100 = arith.constant 1 : index
      %c0_101 = arith.constant 0 : index
      %121 = vector.load %arg10[%c9, %c1_100, %c0_101] : memref<10x18x128xbf16, #tpu.memory_space<vmem>>, vector<1x16x128xbf16>
      tpu.vector_store %arg10[%c9, %c1_100, %c0_101], %120 {strides = array<i32>} : memref<10x18x128xbf16, #tpu.memory_space<vmem>>, vector<1x16x128xbf16>,
    } else {
    }
    %c1_i32_19 = arith.constant 1 : i32
    %28 = arith.cmpi eq, %arg1, %c1_i32_19 : i32
    %29 = arith.extui %28 : i1 to i32
    %c0_i32_20 = arith.constant 0 : i32
    %30 = arith.cmpi ne, %29, %c0_i32_20 : i32
    scf.if %30 {
      %cst_94 = arith.constant 0.000000e+00 : bf16
      %109 = vector.broadcast %cst_94 : bf16 to vector<1x16x128xbf16>
      %c9 = arith.constant 9 : index
      %c1_95 = arith.constant 1 : index
      %c0_96 = arith.constant 0 : index
      %110 = vector.load %arg10[%c9, %c1_95, %c0_96] : memref<10x18x128xbf16, #tpu.memory_space<vmem>>, vector<1x16x128xbf16>
      tpu.vector_store %arg10[%c9, %c1_95, %c0_96], %109 {strides = array<i32>} : memref<10x18x128xbf16, #tpu.memory_space<vmem>>, vector<1x16x128xbf16>,
    } else {
    }
    %cst_21 = arith.constant 0.000000e+00 : f32
    %31 = vector.broadcast %cst_21 : f32 to vector<128x128xf32>
    %c0_22 = arith.constant 0 : index
    %c0_23 = arith.constant 0 : index
    %c0_24 = arith.constant 0 : index
    %32 = vector.load %arg10[%c0_22, %c0_23, %c0_24] : memref<10x18x128xbf16, #tpu.memory_space<vmem>>, vector<8x16x128xbf16>
    %33 = vector.shape_cast %32 : vector<8x16x128xbf16> to vector<128x128xbf16>
    %c0_25 = arith.constant 0 : index
    %c0_26 = arith.constant 0 : index
    %c0_27 = arith.constant 0 : index
    %34 = vector.load %arg5[%c0_25, %c0_26, %c0_27] : memref<9x128x128xbf16, #tpu.memory_space<vmem>>, vector<1x128x128xbf16>
    %35 = vector.shape_cast %34 : vector<1x128x128xbf16> to vector<128x128xbf16>
    %cst_28 = arith.constant dense<0.000000e+00> : vector<128x128xf32>
    %36 = tpu.matmul %33, %35, %cst_28 {dimension_numbers = #tpu.dot_dimension_numbers<[1], [0], [0], [1], [0, 0, 1, 1], [], []>} : vector<128x128xbf16>, vector<128x128xbf16>, vector<128x128xf32> -> vector<128x128xf32>
    %37 = arith.addf %31, %36 : vector<128x128xf32>
    %c0_29 = arith.constant 0 : index
    %c1_30 = arith.constant 1 : index
    %c0_31 = arith.constant 0 : index
    %38 = vector.load %arg10[%c0_29, %c1_30, %c0_31] : memref<10x18x128xbf16, #tpu.memory_space<vmem>>, vector<8x16x128xbf16>
    %39 = vector.shape_cast %38 : vector<8x16x128xbf16> to vector<128x128xbf16>
    %c1_32 = arith.constant 1 : index
    %c0_33 = arith.constant 0 : index
    %c0_34 = arith.constant 0 : index
    %40 = vector.load %arg5[%c1_32, %c0_33, %c0_34] : memref<9x128x128xbf16, #tpu.memory_space<vmem>>, vector<1x128x128xbf16>
    %41 = vector.shape_cast %40 : vector<1x128x128xbf16> to vector<128x128xbf16>
    %cst_35 = arith.constant dense<0.000000e+00> : vector<128x128xf32>
    %42 = tpu.matmul %39, %41, %cst_35 {dimension_numbers = #tpu.dot_dimension_numbers<[1], [0], [0], [1], [0, 0, 1, 1], [], []>} : vector<128x128xbf16>, vector<128x128xbf16>, vector<128x128xf32> -> vector<128x128xf32>
    %43 = arith.addf %37, %42 : vector<128x128xf32>
    %c0_36 = arith.constant 0 : index
    %c2 = arith.constant 2 : index
    %c0_37 = arith.constant 0 : index
    %44 = vector.load %arg10[%c0_36, %c2, %c0_37] : memref<10x18x128xbf16, #tpu.memory_space<vmem>>, vector<8x16x128xbf16>
    %45 = vector.shape_cast %44 : vector<8x16x128xbf16> to vector<128x128xbf16>
    %c2_38 = arith.constant 2 : index
    %c0_39 = arith.constant 0 : index
    %c0_40 = arith.constant 0 : index
    %46 = vector.load %arg5[%c2_38, %c0_39, %c0_40] : memref<9x128x128xbf16, #tpu.memory_space<vmem>>, vector<1x128x128xbf16>
    %47 = vector.shape_cast %46 : vector<1x128x128xbf16> to vector<128x128xbf16>
    %cst_41 = arith.constant dense<0.000000e+00> : vector<128x128xf32>
    %48 = tpu.matmul %45, %47, %cst_41 {dimension_numbers = #tpu.dot_dimension_numbers<[1], [0], [0], [1], [0, 0, 1, 1], [], []>} : vector<128x128xbf16>, vector<128x128xbf16>, vector<128x128xf32> -> vector<128x128xf32>
    %49 = arith.addf %43, %48 : vector<128x128xf32>
    %c1_42 = arith.constant 1 : index
    %c0_43 = arith.constant 0 : index
    %c0_44 = arith.constant 0 : index
    %50 = vector.load %arg10[%c1_42, %c0_43, %c0_44] : memref<10x18x128xbf16, #tpu.memory_space<vmem>>, vector<8x16x128xbf16>
    %51 = vector.shape_cast %50 : vector<8x16x128xbf16> to vector<128x128xbf16>
    %c3 = arith.constant 3 : index
    %c0_45 = arith.constant 0 : index
    %c0_46 = arith.constant 0 : index
    %52 = vector.load %arg5[%c3, %c0_45, %c0_46] : memref<9x128x128xbf16, #tpu.memory_space<vmem>>, vector<1x128x128xbf16>
    %53 = vector.shape_cast %52 : vector<1x128x128xbf16> to vector<128x128xbf16>
    %cst_47 = arith.constant dense<0.000000e+00> : vector<128x128xf32>
    %54 = tpu.matmul %51, %53, %cst_47 {dimension_numbers = #tpu.dot_dimension_numbers<[1], [0], [0], [1], [0, 0, 1, 1], [], []>} : vector<128x128xbf16>, vector<128x128xbf16>, vector<128x128xf32> -> vector<128x128xf32>
    %55 = arith.addf %49, %54 : vector<128x128xf32>
    %c1_48 = arith.constant 1 : index
    %c1_49 = arith.constant 1 : index
    %c0_50 = arith.constant 0 : index
    %56 = vector.load %arg10[%c1_48, %c1_49, %c0_50] : memref<10x18x128xbf16, #tpu.memory_space<vmem>>, vector<8x16x128xbf16>
    %57 = vector.shape_cast %56 : vector<8x16x128xbf16> to vector<128x128xbf16>
    %c4 = arith.constant 4 : index
    %c0_51 = arith.constant 0 : index
    %c0_52 = arith.constant 0 : index
    %58 = vector.load %arg5[%c4, %c0_51, %c0_52] : memref<9x128x128xbf16, #tpu.memory_space<vmem>>, vector<1x128x128xbf16>
    %59 = vector.shape_cast %58 : vector<1x128x128xbf16> to vector<128x128xbf16>
    %cst_53 = arith.constant dense<0.000000e+00> : vector<128x128xf32>
    %60 = tpu.matmul %57, %59, %cst_53 {dimension_numbers = #tpu.dot_dimension_numbers<[1], [0], [0], [1], [0, 0, 1, 1], [], []>} : vector<128x128xbf16>, vector<128x128xbf16>, vector<128x128xf32> -> vector<128x128xf32>
    %61 = arith.addf %55, %60 : vector<128x128xf32>
    %c1_54 = arith.constant 1 : index
    %c2_55 = arith.constant 2 : index
    %c0_56 = arith.constant 0 : index
    %62 = vector.load %arg10[%c1_54, %c2_55, %c0_56] : memref<10x18x128xbf16, #tpu.memory_space<vmem>>, vector<8x16x128xbf16>
    %63 = vector.shape_cast %62 : vector<8x16x128xbf16> to vector<128x128xbf16>
    %c5 = arith.constant 5 : index
    %c0_57 = arith.constant 0 : index
    %c0_58 = arith.constant 0 : index
    %64 = vector.load %arg5[%c5, %c0_57, %c0_58] : memref<9x128x128xbf16, #tpu.memory_space<vmem>>, vector<1x128x128xbf16>
    %65 = vector.shape_cast %64 : vector<1x128x128xbf16> to vector<128x128xbf16>
    %cst_59 = arith.constant dense<0.000000e+00> : vector<128x128xf32>
    %66 = tpu.matmul %63, %65, %cst_59 {dimension_numbers = #tpu.dot_dimension_numbers<[1], [0], [0], [1], [0, 0, 1, 1], [], []>} : vector<128x128xbf16>, vector<128x128xbf16>, vector<128x128xf32> -> vector<128x128xf32>
    %67 = arith.addf %61, %66 : vector<128x128xf32>
    %c2_60 = arith.constant 2 : index
    %c0_61 = arith.constant 0 : index
    %c0_62 = arith.constant 0 : index
    %68 = vector.load %arg10[%c2_60, %c0_61, %c0_62] : memref<10x18x128xbf16, #tpu.memory_space<vmem>>, vector<8x16x128xbf16>
    %69 = vector.shape_cast %68 : vector<8x16x128xbf16> to vector<128x128xbf16>
    %c6 = arith.constant 6 : index
    %c0_63 = arith.constant 0 : index
    %c0_64 = arith.constant 0 : index
    %70 = vector.load %arg5[%c6, %c0_63, %c0_64] : memref<9x128x128xbf16, #tpu.memory_space<vmem>>, vector<1x128x128xbf16>
    %71 = vector.shape_cast %70 : vector<1x128x128xbf16> to vector<128x128xbf16>
    %cst_65 = arith.constant dense<0.000000e+00> : vector<128x128xf32>
    %72 = tpu.matmul %69, %71, %cst_65 {dimension_numbers = #tpu.dot_dimension_numbers<[1], [0], [0], [1], [0, 0, 1, 1], [], []>} : vector<128x128xbf16>, vector<128x128xbf16>, vector<128x128xf32> -> vector<128x128xf32>
    %73 = arith.addf %67, %72 : vector<128x128xf32>
    %c2_66 = arith.constant 2 : index
    %c1_67 = arith.constant 1 : index
    %c0_68 = arith.constant 0 : index
    %74 = vector.load %arg10[%c2_66, %c1_67, %c0_68] : memref<10x18x128xbf16, #tpu.memory_space<vmem>>, vector<8x16x128xbf16>
    %75 = vector.shape_cast %74 : vector<8x16x128xbf16> to vector<128x128xbf16>
    %c7 = arith.constant 7 : index
    %c0_69 = arith.constant 0 : index
    %c0_70 = arith.constant 0 : index
    %76 = vector.load %arg5[%c7, %c0_69, %c0_70] : memref<9x128x128xbf16, #tpu.memory_space<vmem>>, vector<1x128x128xbf16>
    %77 = vector.shape_cast %76 : vector<1x128x128xbf16> to vector<128x128xbf16>
    %cst_71 = arith.constant dense<0.000000e+00> : vector<128x128xf32>
    %78 = tpu.matmul %75, %77, %cst_71 {dimension_numbers = #tpu.dot_dimension_numbers<[1], [0], [0], [1], [0, 0, 1, 1], [], []>} : vector<128x128xbf16>, vector<128x128xbf16>, vector<128x128xf32> -> vector<128x128xf32>
    %79 = arith.addf %73, %78 : vector<128x128xf32>
    %c2_72 = arith.constant 2 : index
    %c2_73 = arith.constant 2 : index
    %c0_74 = arith.constant 0 : index
    %80 = vector.load %arg10[%c2_72, %c2_73, %c0_74] : memref<10x18x128xbf16, #tpu.memory_space<vmem>>, vector<8x16x128xbf16>
    %81 = vector.shape_cast %80 : vector<8x16x128xbf16> to vector<128x128xbf16>
    %c8 = arith.constant 8 : index
    %c0_75 = arith.constant 0 : index
    %c0_76 = arith.constant 0 : index
    %82 = vector.load %arg5[%c8, %c0_75, %c0_76] : memref<9x128x128xbf16, #tpu.memory_space<vmem>>, vector<1x128x128xbf16>
    %83 = vector.shape_cast %82 : vector<1x128x128xbf16> to vector<128x128xbf16>
    %cst_77 = arith.constant dense<0.000000e+00> : vector<128x128xf32>
    %84 = tpu.matmul %81, %83, %cst_77 {dimension_numbers = #tpu.dot_dimension_numbers<[1], [0], [0], [1], [0, 0, 1, 1], [], []>} : vector<128x128xbf16>, vector<128x128xbf16>, vector<128x128xf32> -> vector<128x128xf32>
    %85 = arith.addf %79, %84 : vector<128x128xf32>
    %c0_78 = arith.constant 0 : index
    %c0_79 = arith.constant 0 : index
    %86 = vector.load %arg6[%c0_78, %c0_79] : memref<1x128xf32, #tpu.memory_space<vmem>>, vector<1x128xf32>
    %87 = vector.broadcast %86 : vector<1x128xf32> to vector<128x128xf32>
    %88 = arith.addf %85, %87 : vector<128x128xf32>
    %cst_80 = arith.constant 0.000000e+00 : f32
    %89 = vector.broadcast %cst_80 : f32 to vector<128x128xf32>
    %90 = arith.maximumf %88, %89 : vector<128x128xf32>
    %91 = arith.truncf %90 : vector<128x128xf32> to vector<128x128xbf16>
    %c0_81 = arith.constant 0 : index
    %c0_82 = arith.constant 0 : index
    %92 = vector.load %arg7[%c0_81, %c0_82] : memref<128x128xbf16, #tpu.memory_space<vmem>>, vector<128x128xbf16>
    %cst_83 = arith.constant dense<0.000000e+00> : vector<128x128xf32>
    %93 = tpu.matmul %91, %92, %cst_83 {dimension_numbers = #tpu.dot_dimension_numbers<[1], [0], [0], [1], [0, 0, 1, 1], [], []>} : vector<128x128xbf16>, vector<128x128xbf16>, vector<128x128xf32> -> vector<128x128xf32>
    %c0_84 = arith.constant 0 : index
    %c0_85 = arith.constant 0 : index
    %94 = vector.load %arg8[%c0_84, %c0_85] : memref<1x128xf32, #tpu.memory_space<vmem>>, vector<1x128xf32>
    %95 = vector.broadcast %94 : vector<1x128xf32> to vector<128x128xf32>
    %96 = arith.addf %93, %95 : vector<128x128xf32>
    %c0_86 = arith.constant 0 : index
    %97 = arith.index_cast %1 : i32 to index
    %c0_87 = arith.constant 0 : index
    %c0_88 = arith.constant 0 : index
    %98 = vector.load %arg2[%c0_86, %97, %c0_87, %c0_88] : memref<1x16x16x128xbf16, #tpu.memory_space<vmem>>, vector<1x8x16x128xbf16>
    %99 = vector.shape_cast %98 : vector<1x8x16x128xbf16> to vector<8x16x128xbf16>
    %100 = arith.extf %99 : vector<8x16x128xbf16> to vector<8x16x128xf32>
    %101 = vector.shape_cast %100 : vector<8x16x128xf32> to vector<128x128xf32>
    %102 = arith.addf %96, %101 : vector<128x128xf32>
    %cst_89 = arith.constant 0.000000e+00 : f32
    %103 = vector.broadcast %cst_89 : f32 to vector<128x128xf32>
    %104 = arith.maximumf %102, %103 : vector<128x128xf32>
    %105 = vector.shape_cast %104 : vector<128x128xf32> to vector<8x16x128xf32>
    %c0_90 = arith.constant 0 : index
    %c0_91 = arith.constant 0 : index
    %c0_92 = arith.constant 0 : index
    %c0_93 = arith.constant 0 : index
    %106 = vector.load %arg9[%c0_90, %c0_91, %c0_92, %c0_93] : memref<1x8x16x128xf32, #tpu.memory_space<vmem>>, vector<1x8x16x128xf32>
    %107 = vector.shape_cast %106 : vector<1x8x16x128xf32> to vector<8x16x128xf32>
    %108 = vector.shape_cast %105 : vector<8x16x128xf32> to vector<1x8x16x128xf32>
    tpu.vector_store %arg9[%c0_90, %c0_91, %c0_92, %c0_93], %108 {strides = array<i32>} : memref<1x8x16x128xf32, #tpu.memory_space<vmem>>, vector<1x8x16x128xf32>,
    return
  }
  func.func @transform_0(%arg0: i32, %arg1: i32) -> (i32, i32, i32, i32) {
    %c0_i32 = arith.constant 0 : i32
    %c0_i32_0 = arith.constant 0 : i32
    %c0_i32_1 = arith.constant 0 : i32
    %c0_i32_2 = arith.constant 0 : i32
    return %arg0, %c0_i32, %c0_i32_0, %c0_i32_1 : i32, i32, i32, i32
  }
  func.func @transform_1(%arg0: i32, %arg1: i32) -> (i32, i32) {
    %c0_i32 = arith.constant 0 : i32
    %c0_i32_0 = arith.constant 0 : i32
    %c0_i32_1 = arith.constant 0 : i32
    return %c0_i32, %c0_i32_0 : i32, i32
  }
  func.func @transform_2(%arg0: i32, %arg1: i32) -> (i32, i32) {
    %c0_i32 = arith.constant 0 : i32
    %c0_i32_0 = arith.constant 0 : i32
    %c0_i32_1 = arith.constant 0 : i32
    return %c0_i32, %c0_i32_0 : i32, i32
  }
  func.func @transform_3(%arg0: i32, %arg1: i32) -> (i32, i32, i32) {
    %c0_i32 = arith.constant 0 : i32
    %c0_i32_0 = arith.constant 0 : i32
    %c0_i32_1 = arith.constant 0 : i32
    %c0_i32_2 = arith.constant 0 : i32
    return %c0_i32, %c0_i32_0, %c0_i32_1 : i32, i32, i32
  }
  func.func @transform_4(%arg0: i32, %arg1: i32) -> (i32, i32) {
    %c0_i32 = arith.constant 0 : i32
    %c0_i32_0 = arith.constant 0 : i32
    %c0_i32_1 = arith.constant 0 : i32
    return %c0_i32, %c0_i32_0 : i32, i32
  }
  func.func @transform_5(%arg0: i32, %arg1: i32) -> (i32, i32) {
    %c0_i32 = arith.constant 0 : i32
    %c0_i32_0 = arith.constant 0 : i32
    %c0_i32_1 = arith.constant 0 : i32
    return %c0_i32, %c0_i32_0 : i32, i32
  }
  func.func @transform_6(%arg0: i32, %arg1: i32) -> (i32, i32) {
    %c0_i32 = arith.constant 0 : i32
    %c0_i32_0 = arith.constant 0 : i32
    %c0_i32_1 = arith.constant 0 : i32
    return %c0_i32, %c0_i32_0 : i32, i32
  }
  func.func @transform_7(%arg0: i32, %arg1: i32) -> (i32, i32, i32, i32) {
    %c0_i32 = arith.constant 0 : i32
    %c0_i32_0 = arith.constant 0 : i32
    %c0_i32_1 = arith.constant 0 : i32
    return %arg0, %arg1, %c0_i32, %c0_i32_0 : i32, i32, i32, i32
  }
}

</mosaic_0001>

<llo_original>
// kernel: tpu_custom_call.1
$region0: #{tpu_custom_call.1}
  #allocation0 [shape = 'u32[]', space=smem, size = 0x4, offset = 0x4, fixed_abs, tag = 'smem constant byte address 0x4 - core index']
  #allocation1 [shape = 'u32[72,128]{1,0:T(1,128)}', space=vmem, size = 0x9000, scoped, tag = 'internal scratch']
  #allocation2 [shape = 'bf16[10,18,128]{2,1,0:T(8,128)(2,1)}', space=vmem, size = 0xf000, scoped, tag = 'scratch operand']
  %s0 = inlined_call_operand.hbm [shape: bf16[2,16,16,128], index: 0, kind: input, shape index: {}]
  %s1 = inlined_call_operand.hbm [shape: bf16[128,128], index: 1, kind: input, shape index: {}]
  %s2 = inlined_call_operand.vmem [shape: f32[1,128], index: 2, kind: input, shape index: {}]
  %s3 = inlined_call_operand.hbm [shape: bf16[9,128,128], index: 3, kind: input, shape index: {}]
  %s4 = inlined_call_operand.vmem [shape: f32[1,128], index: 4, kind: input, shape index: {}]
  %s5 = inlined_call_operand.hbm [shape: bf16[128,128], index: 5, kind: input, shape index: {}]
  %s6 = inlined_call_operand.vmem [shape: f32[1,128], index: 6, kind: input, shape index: {}]
  %s7 = inlined_call_operand.hbm [shape: f32[2,16,16,128], index: 7, kind: output, shape index: {}]
  %s8 = sld [smem:[#allocation0]]
  $region93: #{tpu_custom_call.1} parent=0
    _
  %s10 = ssub.s32 1, %s8
  %s11 = scalar_select 0, %s10, %s8
  $region1: #{tpu_custom_call.1} parent=0
    #allocation3 [shape = 'u8[131072]{0}', space=vmem, size = 0x20000, scoped, tag = 'input window, operand 0']
    #allocation4 [shape = 's32[2]{0}', space=sflag, size = 0x8, scoped, tag = 'scoped memory for tpu_custom_call.1']
    #allocation5 [shape = 's32[2]{0}', space=sflag, size = 0x8, scoped, tag = 'scoped memory for tpu_custom_call.1']
    #allocation6 [shape = 'u8[32768]{0}', space=vmem, size = 0x8000, scoped, tag = 'input window, operand 1, single buffered']
    #allocation7 [shape = 's32[1]{0}', space=sflag, size = 0x4, scoped, tag = 'scoped memory for tpu_custom_call.1']
    #allocation8 [shape = 'u8[294912]{0}', space=vmem, size = 0x48000, scoped, tag = 'input window, operand 3, single buffered']
    #allocation9 [shape = 'u8[32768]{0}', space=vmem, size = 0x8000, scoped, tag = 'input window, operand 5, single buffered']
    #allocation10 [shape = 's32[1]{0}', space=sflag, size = 0x4, scoped, tag = 'scoped memory for tpu_custom_call.1']
    #allocation11 [shape = 'u8[131072]{0}', space=vmem, size = 0x20000, scoped, tag = 'output window, operand 0']
    %12 = vsyncpa [#allocation4], 0
    %s13 = scalar_lea.sflag [#allocation4], 1
    %14 = vsyncpa %s13, 0
    %15 = vsyncpa [#allocation7], 0
    %16 = vsyncpa [#allocation10], 0
    %17 = vsyncpa [#allocation5], 0
    %s18 = scalar_lea.sflag [#allocation5], 1
    %19 = vsyncpa %s18, 0
    loop: start=0, step=1, limit=6
    $region2: #{tpu_custom_call.1} parent=1 // loop_pre_header
      _
    $region3: #{tpu_custom_call.1} parent=1 // loop_header
      %s21 = sphi 0, %s25
      %p22 = scmp.ge.s32.totalorder %s21, 6
      %s28 = sphi 0, %s40
      %s29 = sphi 0, %s36
      %s30 = sphi 0, %s28
      %s31 = sphi 0, %s29
      %s32 = sphi 0, %s30
      %s33 = sphi 0, %s31
      %s43 = sphi 0, %s45
      %s46 = sphi 0, %s43
      %s47 = sphi 0, %s46
      %s63 = sphi 0, %s47
      %s67 = sphi 0, %s67
      %s69 = sphi 0, %s67
      %s70 = sphi 0, %s69
      %s84 = sphi 0, %s70
      %s88 = sphi 0, %s88
      %s90 = sphi 0, %s88
      %s91 = sphi 0, %s90
      %s105 = sphi 0, %s91
      %s109 = sphi 0, %s109
      %s111 = sphi 0, %s109
      %s112 = sphi 0, %s111
      %s126 = sphi 0, %s112
      %s130 = sphi 0, %s130
      %s132 = sphi 0, %s130
      %s133 = sphi 0, %s132
      %s147 = sphi 0, %s133
      %s151 = sphi 0, %s151
      %s153 = sphi 0, %s151
      %s154 = sphi 0, %s153
      %s168 = sphi 0, %s154
      %s172 = sphi 0, %s172
      %s174 = sphi 0, %s172
      %s175 = sphi 0, %s174
      %s189 = sphi 0, %s175
      %s197 = sphi 0, %s199
      %s200 = sphi 0, %s197
      %s201 = sphi 0, %s200
      %s217 = sphi 0, %s201
    $region4: #{tpu_custom_call.1} parent=1 // loop_header_branch
      %24 = sbr.rel (%p22) target = $region8
    $region5: #{tpu_custom_call.1} parent=1 // loop_body
      %s26 = ssub.s32 %s21, 1
      %s27 = ssub.s32 %s21, 2
      %s34 = sadd.s32 1, %s29
      %p35 = scmp.ge.s32.totalorder %s34, 2
      %s36 = scalar_select %p35, 0, %s34
      %s37 = sadd.s32 1, %s28
      %s38 = scalar_select %p35, %s37, %s28
      %p39 = scmp.ge.s32.totalorder %s38, 2
      %s40 = scalar_select %p39, 0, %s38
      %s41 = ssub.s32 %s28, %s40
      %p42 = scmp.eq.s32.totalorder %s41, 0
      %s44 = sadd.s32 %s43, 1
      %s45 = scalar_select %p42, %s43, %s44
      %p48 = pneg %p42
      %p49 = scmp.eq.s32.totalorder %s21, 3
      %p50 = por %p48, %p49
      %p51 = scmp.ne.s32.totalorder %s43, %s46
      %p52 = scmp.eq.s32.totalorder %s21, 0
      %p53 = por %p51, %p52
      %p54 = scmp.ne.s32.totalorder %s43, %s46
      %p55 = scmp.eq.s32.totalorder %s26, 3
      %p56 = por %p54, %p55
      %p57 = scmp.ne.s32.totalorder %s46, %s47
      %p58 = scmp.eq.s32.totalorder %s26, 0
      %p59 = por %p57, %p58
      %p60 = scmp.ne.s32.totalorder %s46, %s47
      %p61 = scmp.eq.s32.totalorder %s27, 3
      %p62 = por %p60, %p61
      %p64 = scmp.ne.s32.totalorder %s47, %s63
      %p65 = scmp.eq.s32.totalorder %s27, 0
      %p66 = por %p64, %p65
      %s68 = sadd.s32 %s67, 1
      %p71 = scmp.eq.s32.totalorder %s21, 3
      %p72 = scmp.ne.s32.totalorder %s67, %s69
      %p73 = scmp.eq.s32.totalorder %s21, 0
      %p74 = por %p72, %p73
      %p75 = scmp.ne.s32.totalorder %s67, %s69
      %p76 = scmp.eq.s32.totalorder %s26, 3
      %p77 = por %p75, %p76
      %p78 = scmp.ne.s32.totalorder %s69, %s70
      %p79 = scmp.eq.s32.totalorder %s26, 0
      %p80 = por %p78, %p79
      %p81 = scmp.ne.s32.totalorder %s69, %s70
      %p82 = scmp.eq.s32.totalorder %s27, 3
      %p83 = por %p81, %p82
      %p85 = scmp.ne.s32.totalorder %s70, %s84
      %p86 = scmp.eq.s32.totalorder %s27, 0
      %p87 = por %p85, %p86
      %s89 = sadd.s32 %s88, 1
      %p92 = scmp.eq.s32.totalorder %s21, 3
      %p93 = scmp.ne.s32.totalorder %s88, %s90
      %p94 = scmp.eq.s32.totalorder %s21, 0
      %p95 = por %p93, %p94
      %p96 = scmp.ne.s32.totalorder %s88, %s90
      %p97 = scmp.eq.s32.totalorder %s26, 3
      %p98 = por %p96, %p97
      %p99 = scmp.ne.s32.totalorder %s90, %s91
      %p100 = scmp.eq.s32.totalorder %s26, 0
      %p101 = por %p99, %p100
      %p102 = scmp.ne.s32.totalorder %s90, %s91
      %p103 = scmp.eq.s32.totalorder %s27, 3
      %p104 = por %p102, %p103
      %p106 = scmp.ne.s32.totalorder %s91, %s105
      %p107 = scmp.eq.s32.totalorder %s27, 0
      %p108 = por %p106, %p107
      %s110 = sadd.s32 %s109, 1
      %p113 = scmp.eq.s32.totalorder %s21, 3
      %p114 = scmp.ne.s32.totalorder %s109, %s111
      %p115 = scmp.eq.s32.totalorder %s21, 0
      %p116 = por %p114, %p115
      %p117 = scmp.ne.s32.totalorder %s109, %s111
      %p118 = scmp.eq.s32.totalorder %s26, 3
      %p119 = por %p117, %p118
      %p120 = scmp.ne.s32.totalorder %s111, %s112
      %p121 = scmp.eq.s32.totalorder %s26, 0
      %p122 = por %p120, %p121
      %p123 = scmp.ne.s32.totalorder %s111, %s112
      %p124 = scmp.eq.s32.totalorder %s27, 3
      %p125 = por %p123, %p124
      %p127 = scmp.ne.s32.totalorder %s112, %s126
      %p128 = scmp.eq.s32.totalorder %s27, 0
      %p129 = por %p127, %p128
      %s131 = sadd.s32 %s130, 1
      %p134 = scmp.eq.s32.totalorder %s21, 3
      %p135 = scmp.ne.s32.totalorder %s130, %s132
      %p136 = scmp.eq.s32.totalorder %s21, 0
      %p137 = por %p135, %p136
      %p138 = scmp.ne.s32.totalorder %s130, %s132
      %p139 = scmp.eq.s32.totalorder %s26, 3
      %p140 = por %p138, %p139
      %p141 = scmp.ne.s32.totalorder %s132, %s133
      %p142 = scmp.eq.s32.totalorder %s26, 0
      %p143 = por %p141, %p142
      %p144 = scmp.ne.s32.totalorder %s132, %s133
      %p145 = scmp.eq.s32.totalorder %s27, 3
      %p146 = por %p144, %p145
      %p148 = scmp.ne.s32.totalorder %s133, %s147
      %p149 = scmp.eq.s32.totalorder %s27, 0
      %p150 = por %p148, %p149
      %s152 = sadd.s32 %s151, 1
      %p155 = scmp.eq.s32.totalorder %s21, 3
      %p156 = scmp.ne.s32.totalorder %s151, %s153
      %p157 = scmp.eq.s32.totalorder %s21, 0
      %p158 = por %p156, %p157
      %p159 = scmp.ne.s32.totalorder %s151, %s153
      %p160 = scmp.eq.s32.totalorder %s26, 3
      %p161 = por %p159, %p160
      %p162 = scmp.ne.s32.totalorder %s153, %s154
      %p163 = scmp.eq.s32.totalorder %s26, 0
      %p164 = por %p162, %p163
      %p165 = scmp.ne.s32.totalorder %s153, %s154
      %p166 = scmp.eq.s32.totalorder %s27, 3
      %p167 = por %p165, %p166
      %p169 = scmp.ne.s32.totalorder %s154, %s168
      %p170 = scmp.eq.s32.totalorder %s27, 0
      %p171 = por %p169, %p170
      %s173 = sadd.s32 %s172, 1
      %p176 = scmp.eq.s32.totalorder %s21, 3
      %p177 = scmp.ne.s32.totalorder %s172, %s174
      %p178 = scmp.eq.s32.totalorder %s21, 0
      %p179 = por %p177, %p178
      %p180 = scmp.ne.s32.totalorder %s172, %s174
      %p181 = scmp.eq.s32.totalorder %s26, 3
      %p182 = por %p180, %p181
      %p183 = scmp.ne.s32.totalorder %s174, %s175
      %p184 = scmp.eq.s32.totalorder %s26, 0
      %p185 = por %p183, %p184
      %p186 = scmp.ne.s32.totalorder %s174, %s175
      %p187 = scmp.eq.s32.totalorder %s27, 3
      %p188 = por %p186, %p187
      %p190 = scmp.ne.s32.totalorder %s175, %s189
      %p191 = scmp.eq.s32.totalorder %s27, 0
      %p192 = por %p190, %p191
      %s193 = ssub.s32 %s28, %s40
      %s194 = ssub.s32 %s29, %s36
      %s195 = sor.u32 %s193, %s194
      %p196 = scmp.eq.s32.totalorder %s195, 0
      %s198 = sadd.s32 %s197, 1
      %s199 = scalar_select %p196, %s197, %s198
      %p202 = pneg %p196
      %p203 = scmp.eq.s32.totalorder %s21, 3
      %p204 = por %p202, %p203
      %p205 = scmp.ne.s32.totalorder %s197, %s200
      %p206 = scmp.eq.s32.totalorder %s21, 0
      %p207 = por %p205, %p206
      %p208 = scmp.ne.s32.totalorder %s197, %s200
      %p209 = scmp.eq.s32.totalorder %s26, 3
      %p210 = por %p208, %p209
      %p211 = scmp.ne.s32.totalorder %s200, %s201
      %p212 = scmp.eq.s32.totalorder %s26, 0
      %p213 = por %p211, %p212
      %p214 = scmp.ne.s32.totalorder %s200, %s201
      %p215 = scmp.eq.s32.totalorder %s27, 3
      %p216 = por %p214, %p215
      %p218 = scmp.ne.s32.totalorder %s201, %s217
      %p219 = scmp.eq.s32.totalorder %s27, 0
      %p220 = por %p218, %p219
      %p221 = scmp.le.s32.totalorder 1, %s21
      %p222 = scmp.lt.s32.totalorder %s21, 5
      %p223 = pnand %p221, %p222
      %p224 = pneg %p223
      // Predicated region
      $region9: #{tpu_custom_call.1} parent=5 // pred_check
        _
      $region10: #{tpu_custom_call.1} parent=5 // pred_check_branch
        %226 = sbr.rel (%p223) target = $region12
      $region11: #{tpu_custom_call.1} parent=5 // pred_region
        %s227 = ssub.s32 %s21, 1
        // Predicated region
        $region13: #{tpu_custom_call.1} parent=11 // pred_check
          %p228 = pneg %p80
        $region14: #{tpu_custom_call.1} parent=11 // pred_check_branch
          %230 = sbr.rel (%p228) target = $region16
        $region15: #{tpu_custom_call.1} parent=11 // pred_region
          %232 = vsyncadd [#allocation7], 0
          %s233 = sshll.u32 %s1, 4
          %s234 = int_to_ptr.hbm [resolvable:$true] %s233
          %s235 = sshll.u32 [#allocation6], 4
          %s236 = int_to_ptr.vmem [resolvable:$true] %s235
          %241 = dma.hbm_to_vmem [thread:$0]  %s234, 1024, %s236, [#allocation7], 64, 64, 4
        $region16: #{tpu_custom_call.1} parent=11 // pred_fallthru
          _
        // Predicated region
        $region17: #{tpu_custom_call.1} parent=11 // pred_check
          %p242 = pneg %p101
        $region18: #{tpu_custom_call.1} parent=11 // pred_check_branch
          %244 = sbr.rel (%p242) target = $region20
        $region19: #{tpu_custom_call.1} parent=11 // pred_region
          _
        $region20: #{tpu_custom_call.1} parent=11 // pred_fallthru
          _
        // Predicated region
        $region21: #{tpu_custom_call.1} parent=11 // pred_check
          %p245 = pneg %p122
        $region22: #{tpu_custom_call.1} parent=11 // pred_check_branch
          %247 = sbr.rel (%p245) target = $region24
        $region23: #{tpu_custom_call.1} parent=11 // pred_region
          %249 = vsyncadd [#allocation7], 0
          %s250 = sshll.u32 %s3, 4
          %s251 = int_to_ptr.hbm [resolvable:$true] %s250
          %s252 = sshll.u32 [#allocation8], 4
          %s253 = int_to_ptr.vmem [resolvable:$true] %s252
          %258 = dma.hbm_to_vmem [thread:$0]  %s251, 9216, %s253, [#allocation7], 64, 64, 4
        $region24: #{tpu_custom_call.1} parent=11 // pred_fallthru
          _
        // Predicated region
        $region25: #{tpu_custom_call.1} parent=11 // pred_check
          %p259 = pneg %p143
        $region26: #{tpu_custom_call.1} parent=11 // pred_check_branch
          %261 = sbr.rel (%p259) target = $region28
        $region27: #{tpu_custom_call.1} parent=11 // pred_region
          _
        $region28: #{tpu_custom_call.1} parent=11 // pred_fallthru
          _
        // Predicated region
        $region29: #{tpu_custom_call.1} parent=11 // pred_check
          %p262 = pneg %p164
        $region30: #{tpu_custom_call.1} parent=11 // pred_check_branch
          %264 = sbr.rel (%p262) target = $region32
        $region31: #{tpu_custom_call.1} parent=11 // pred_region
          %266 = vsyncadd [#allocation10], 0
          %s267 = sshll.u32 %s5, 4
          %s268 = int_to_ptr.hbm [resolvable:$true] %s267
          %s269 = sshll.u32 [#allocation9], 4
          %s270 = int_to_ptr.vmem [resolvable:$true] %s269
          %275 = dma.hbm_to_vmem [thread:$0]  %s268, 1024, %s270, [#allocation10], 64, 64, 4
        $region32: #{tpu_custom_call.1} parent=11 // pred_fallthru
          _
        // Predicated region
        $region33: #{tpu_custom_call.1} parent=11 // pred_check
          %p276 = pneg %p185
        $region34: #{tpu_custom_call.1} parent=11 // pred_check_branch
          %278 = sbr.rel (%p276) target = $region36
        $region35: #{tpu_custom_call.1} parent=11 // pred_region
          _
        $region36: #{tpu_custom_call.1} parent=11 // pred_fallthru
          _
      $region12: #{tpu_custom_call.1} parent=5 // pred_fallthru
        _
      %p279 = scmp.lt.s32.totalorder %s21, 4
      // Predicated region
      $region37: #{tpu_custom_call.1} parent=5 // pred_check
        %p280 = pneg %p279
      $region38: #{tpu_custom_call.1} parent=5 // pred_check_branch
        %282 = sbr.rel (%p280) target = $region40
      $region39: #{tpu_custom_call.1} parent=5 // pred_region
        // Predicated region
        $region41: #{tpu_custom_call.1} parent=39 // pred_check
          %p283 = pneg %p53
        $region42: #{tpu_custom_call.1} parent=39 // pred_check_branch
          %285 = sbr.rel (%p283) target = $region44
        $region43: #{tpu_custom_call.1} parent=39 // pred_region
          %s286 = sand.u32 %s43, 1
          %s287 = scalar_lea.sflag [#allocation4], %s286
          %s288 = sand.u32 %s43, 1
          %s289 = smul.addr %s288, 128
          %s290 = scalar_lea.vmem [#allocation3], %s289
          %292 = vsyncadd %s287, 0
          %s293 = smul.addr %s28, 32
          %s294 = smul.addr %s293, 4
          %s295 = scalar_lea.hbm %s0, %s294
          %s296 = sshll.u32 %s295, 4
          %s297 = int_to_ptr.hbm [resolvable:$true] %s296
          %s298 = sshll.u32 %s290, 4
          %s299 = int_to_ptr.vmem [resolvable:$true] %s298
          %304 = dma.hbm_to_vmem [thread:$0]  %s297, 2048, %s299, %s287, 64, 64, 4
        $region44: #{tpu_custom_call.1} parent=39 // pred_fallthru
          _
      $region40: #{tpu_custom_call.1} parent=5 // pred_fallthru
        _
      %p305 = scmp.le.s32.totalorder 1, %s21
      %p306 = scmp.lt.s32.totalorder %s21, 5
      %p307 = pnand %p305, %p306
      %p308 = pneg %p307
      // Predicated region
      $region45: #{tpu_custom_call.1} parent=5 // pred_check
        _
      $region46: #{tpu_custom_call.1} parent=5 // pred_check_branch
        %310 = sbr.rel (%p307) target = $region48
      $region47: #{tpu_custom_call.1} parent=5 // pred_region
        %s311 = ssub.s32 %s21, 1
        %s312 = sand.u32 %s46, 1
        %s313 = scalar_lea.sflag [#allocation4], %s312
        %s314 = sand.u32 %s46, 1
        %s315 = smul.addr %s314, 128
        %s316 = scalar_lea.vmem [#allocation3], %s315
        // Predicated region
        $region49: #{tpu_custom_call.1} parent=47 // pred_check
          %p317 = pneg %p59
        $region50: #{tpu_custom_call.1} parent=47 // pred_check_branch
          %319 = sbr.rel (%p317) target = $region52
        $region51: #{tpu_custom_call.1} parent=47 // pred_region
          %321 = dma.done %s313, 2048
        $region52: #{tpu_custom_call.1} parent=47 // pred_fallthru
          _
        // Predicated region
        $region53: #{tpu_custom_call.1} parent=47 // pred_check
          %p322 = pneg %p80
        $region54: #{tpu_custom_call.1} parent=47 // pred_check_branch
          %324 = sbr.rel (%p322) target = $region56
        $region55: #{tpu_custom_call.1} parent=47 // pred_region
          %326 = dma.done [#allocation7], 1024
        $region56: #{tpu_custom_call.1} parent=47 // pred_fallthru
          _
        // Predicated region
        $region57: #{tpu_custom_call.1} parent=47 // pred_check
          %p327 = pneg %p122
        $region58: #{tpu_custom_call.1} parent=47 // pred_check_branch
          %329 = sbr.rel (%p327) target = $region60
        $region59: #{tpu_custom_call.1} parent=47 // pred_region
          %331 = dma.done [#allocation7], 9216
        $region60: #{tpu_custom_call.1} parent=47 // pred_fallthru
          _
        // Predicated region
        $region61: #{tpu_custom_call.1} parent=47 // pred_check
          %p332 = pneg %p164
        $region62: #{tpu_custom_call.1} parent=47 // pred_check_branch
          %334 = sbr.rel (%p332) target = $region64
        $region63: #{tpu_custom_call.1} parent=47 // pred_region
          %336 = dma.done [#allocation10], 1024
        $region64: #{tpu_custom_call.1} parent=47 // pred_fallthru
          _
        %s337 = sand.u32 %s46, 1
        %s338 = scalar_lea.sflag [#allocation4], %s337
        %s339 = sand.u32 %s46, 1
        %s340 = smul.addr %s339, 128
        %s341 = scalar_lea.vmem [#allocation3], %s340
        %p342 = pneg %p59
        %p343 = pneg %p56
        %p344 = pneg %p80
        %p345 = pneg %p77
        %p346 = pneg %p101
        %p347 = pneg %p98
        %p348 = pneg %p122
        %p349 = pneg %p119
        %p350 = pneg %p143
        %p351 = pneg %p140
        %p352 = pneg %p164
        %p353 = pneg %p161
        %p354 = pneg %p185
        %p355 = pneg %p182
        %p356 = pneg %p213
        %p357 = pneg %p210
        %s358 = sand.u32 %s200, 1
        %s359 = scalar_lea.sflag [#allocation5], %s358
        %s360 = sand.u32 %s200, 1
        %s361 = smul.addr %s360, 128
        %s362 = scalar_lea.vmem [#allocation11], %s361
        %s363 = smul.u32 8, %s31
        %s365 = smul.u32 %s31, 8
        %v366 = vld [vmem:[#allocation6] sm:$0xf]
        %v367 = vld [vmem:[#allocation6 + $0x4] sm:$0xf]
        %v368 = vld [vmem:[#allocation6 + $0x8] sm:$0xf]
        %v369 = vld [vmem:[#allocation6 + $0xc] sm:$0xf]
        %v370 = vld [vmem:[#allocation6 + $0x10] sm:$0xf]
        %v371 = vld [vmem:[#allocation6 + $0x14] sm:$0xf]
        %v372 = vld [vmem:[#allocation6 + $0x18] sm:$0xf]
        %v373 = vld [vmem:[#allocation6 + $0x1c] sm:$0xf]
        %v374 = vld [vmem:[#allocation6 + $0x20] sm:$0xf]
        %v375 = vld [vmem:[#allocation6 + $0x24] sm:$0xf]
        %v376 = vld [vmem:[#allocation6 + $0x28] sm:$0xf]
        %v377 = vld [vmem:[#allocation6 + $0x2c] sm:$0xf]
        %v378 = vld [vmem:[#allocation6 + $0x30] sm:$0xf]
        %v379 = vld [vmem:[#allocation6 + $0x34] sm:$0xf]
        %v380 = vld [vmem:[#allocation6 + $0x38] sm:$0xf]
        %v381 = vld [vmem:[#allocation6 + $0x3c] sm:$0xf]
        %v382 = vld [vmem:[%s2] sm:$0x1]
        %vm383 = vcmask 1040384
        %vm384 = vsmask.f32 256
        %vm385 = vmand %vm383, %vm384
        %v386 = vld [vmem:[#allocation2] sm:$0x1]
        %v387 = vsel %vm385, 0, %v386
        %388 = vst [vmem:[#allocation2] sm:$0x1] %v387
        %v389 = vld [vmem:[#allocation2 + $0xc] sm:$0x1]
        %v390 = vsel %vm385, 0, %v389
        %391 = vst [vmem:[#allocation2 + $0xc] sm:$0x1] %v390
        %v392 = vld [vmem:[#allocation2 + $0x18] sm:$0x1]
        %v393 = vsel %vm385, 0, %v392
        %394 = vst [vmem:[#allocation2 + $0x18] sm:$0x1] %v393
        %v395 = vld [vmem:[#allocation2 + $0x24] sm:$0x1]
        %v396 = vsel %vm385, 0, %v395
        %397 = vst [vmem:[#allocation2 + $0x24] sm:$0x1] %v396
        %v398 = vld [vmem:[#allocation2 + $0x30] sm:$0x1]
        %v399 = vsel %vm385, 0, %v398
        %400 = vst [vmem:[#allocation2 + $0x30] sm:$0x1] %v399
        %v401 = vld [vmem:[#allocation2 + $0x3c] sm:$0x1]
        %v402 = vsel %vm385, 0, %v401
        %403 = vst [vmem:[#allocation2 + $0x3c] sm:$0x1] %v402
        %v404 = vld [vmem:[#allocation2 + $0x48] sm:$0x1]
        %v405 = vsel %vm385, 0, %v404
        %406 = vst [vmem:[#allocation2 + $0x48] sm:$0x1] %v405
        %v407 = vld [vmem:[#allocation2 + $0x54] sm:$0x1]
        %v408 = vsel %vm385, 0, %v407
        %409 = vst [vmem:[#allocation2 + $0x54] sm:$0x1] %v408
        %v410 = vld [vmem:[#allocation2 + $0x60] sm:$0x1]
        %v411 = vsel %vm385, 0, %v410
        %412 = vst [vmem:[#allocation2 + $0x60] sm:$0x1] %v411
        %v413 = vld [vmem:[#allocation2 + $0x6c] sm:$0x1]
        %v414 = vsel %vm385, 0, %v413
        %415 = vst [vmem:[#allocation2 + $0x6c] sm:$0x1] %v414
        %vm416 = vsmask.f32 7938
        %vm417 = vmand %vm383, %vm416
        %v418 = vld [vmem:[#allocation2 + $0x8] sm:$0x1]
        %v419 = vsel %vm417, 0, %v418
        %420 = vst [vmem:[#allocation2 + $0x8] sm:$0x1] %v419
        %v421 = vld [vmem:[#allocation2 + $0x14] sm:$0x1]
        %v422 = vsel %vm417, 0, %v421
        %423 = vst [vmem:[#allocation2 + $0x14] sm:$0x1] %v422
        %v424 = vld [vmem:[#allocation2 + $0x20] sm:$0x1]
        %v425 = vsel %vm417, 0, %v424
        %426 = vst [vmem:[#allocation2 + $0x20] sm:$0x1] %v425
        %v427 = vld [vmem:[#allocation2 + $0x2c] sm:$0x1]
        %v428 = vsel %vm417, 0, %v427
        %429 = vst [vmem:[#allocation2 + $0x2c] sm:$0x1] %v428
        %v430 = vld [vmem:[#allocation2 + $0x38] sm:$0x1]
        %v431 = vsel %vm417, 0, %v430
        %432 = vst [vmem:[#allocation2 + $0x38] sm:$0x1] %v431
        %v433 = vld [vmem:[#allocation2 + $0x44] sm:$0x1]
        %v434 = vsel %vm417, 0, %v433
        %435 = vst [vmem:[#allocation2 + $0x44] sm:$0x1] %v434
        %v436 = vld [vmem:[#allocation2 + $0x50] sm:$0x1]
        %v437 = vsel %vm417, 0, %v436
        %438 = vst [vmem:[#allocation2 + $0x50] sm:$0x1] %v437
        %v439 = vld [vmem:[#allocation2 + $0x5c] sm:$0x1]
        %v440 = vsel %vm417, 0, %v439
        %441 = vst [vmem:[#allocation2 + $0x5c] sm:$0x1] %v440
        %v442 = vld [vmem:[#allocation2 + $0x68] sm:$0x1]
        %v443 = vsel %vm417, 0, %v442
        %444 = vst [vmem:[#allocation2 + $0x68] sm:$0x1] %v443
        %v445 = vld [vmem:[#allocation2 + $0x74] sm:$0x1]
        %v446 = vsel %vm417, 0, %v445
        %447 = vst [vmem:[#allocation2 + $0x74] sm:$0x1] %v446
        %s448 = smul.u32 %s365, 2
        %s449 = smul.addr %s448, 4
        %s450 = scalar_lea.vmem %s316, %s449 [#allocation3]
        %v451 = vld [vmem:[%s450] sm:$0xf]
        %v452 = vld [vmem:[%s450 + $0x4] sm:$0xf]
        %v453 = vld [vmem:[%s450 + $0x8] sm:$0xf]
        %v454 = vld [vmem:[%s450 + $0xc] sm:$0xf]
        %v455 = vld [vmem:[%s450 + $0x10] sm:$0xf]
        %v456 = vld [vmem:[%s450 + $0x14] sm:$0xf]
        %v457 = vld [vmem:[%s450 + $0x18] sm:$0xf]
        %v458 = vld [vmem:[%s450 + $0x1c] sm:$0xf]
        %v459 = vld [vmem:[%s450 + $0x20] sm:$0xf]
        %v460 = vld [vmem:[%s450 + $0x24] sm:$0xf]
        %v461 = vld [vmem:[%s450 + $0x28] sm:$0xf]
        %v462 = vld [vmem:[%s450 + $0x2c] sm:$0xf]
        %v463 = vld [vmem:[%s450 + $0x30] sm:$0xf]
        %v464 = vld [vmem:[%s450 + $0x34] sm:$0xf]
        %v465 = vld [vmem:[%s450 + $0x38] sm:$0xf]
        %v466 = vld [vmem:[%s450 + $0x3c] sm:$0xf]
        %v468 = vperm.slane %v382, 0
        %v486 = vunpack.c.l.b16 %v451
        %v487 = vunpack.c.l.b16 %v452
        %v488 = vunpack.c.l.b16 %v453
        %v489 = vunpack.c.l.b16 %v454
        %v490 = vunpack.c.l.b16 %v455
        %v491 = vunpack.c.l.b16 %v456
        %v492 = vunpack.c.l.b16 %v457
        %v493 = vunpack.c.l.b16 %v458
        %v494 = vunpack.c.l.b16 %v459
        %v495 = vunpack.c.l.b16 %v460
        %v496 = vunpack.c.l.b16 %v461
        %v497 = vunpack.c.l.b16 %v462
        %v498 = vunpack.c.l.b16 %v463
        %v499 = vunpack.c.l.b16 %v464
        %v500 = vunpack.c.l.b16 %v465
        %v501 = vunpack.c.l.b16 %v466
        %v502 = vpack.c.b16 %v487, %v486
        %v503 = vpack.c.b16 %v489, %v488
        %v504 = vpack.c.b16 %v491, %v490
        %v505 = vpack.c.b16 %v493, %v492
        %v506 = vpack.c.b16 %v495, %v494
        %v507 = vpack.c.b16 %v497, %v496
        %v508 = vpack.c.b16 %v499, %v498
        %v509 = vpack.c.b16 %v501, %v500
        %v534 = vunpack.c.l.b16 %v366
        %v535 = vunpack.c.l.b16 %v367
        %v536 = vunpack.c.l.b16 %v368
        %v537 = vunpack.c.l.b16 %v369
        %v538 = vunpack.c.l.b16 %v370
        %v539 = vunpack.c.l.b16 %v371
        %v540 = vunpack.c.l.b16 %v372
        %v541 = vunpack.c.l.b16 %v373
        %v542 = vunpack.c.l.b16 %v374
        %v543 = vunpack.c.l.b16 %v375
        %v544 = vunpack.c.l.b16 %v376
        %v545 = vunpack.c.l.b16 %v377
        %v546 = vunpack.c.l.b16 %v378
        %v547 = vunpack.c.l.b16 %v379
        %v548 = vunpack.c.l.b16 %v380
        %v549 = vunpack.c.l.b16 %v381
        %v550 = vpack.c.b16 %v535, %v534
        %v551 = vpack.c.b16 %v537, %v536
        %v552 = vpack.c.b16 %v539, %v538
        %v553 = vpack.c.b16 %v541, %v540
        %v554 = vpack.c.b16 %v543, %v542
        %v555 = vpack.c.b16 %v545, %v544
        %v556 = vpack.c.b16 %v547, %v546
        %v557 = vpack.c.b16 %v549, %v548
        %566 = vmatpush.bf16.msra.mxu0 %v557
        %567 = vmatpush.bf16.msra.mxu0 %v556
        %568 = vmatpush.bf16.msra.mxu0 %v555
        %569 = vmatpush.bf16.msra.mxu0 %v554
        %570 = vmatpush.bf16.msra.mxu0 %v553
        %571 = vmatpush.bf16.msra.mxu0 %v552
        %572 = vmatpush.bf16.msra.mxu0 %v551
        %573 = vmatpush.bf16.msra.mxu0 %v550
        %574 = vmatmul.bf16.gmra.mxu0 %v502
        %v575 = vpop.f32.mrf.mxu0
        %v576 = vadd.f32 %v468, %v575
        %v577 = vpop.f32.mrf.mxu0
        %v578 = vadd.f32 %v468, %v577
        %579 = vmatmul.bf16.gmra.mxu0 %v503
        %v580 = vpop.f32.mrf.mxu0
        %v581 = vadd.f32 %v468, %v580
        %v582 = vpop.f32.mrf.mxu0
        %v583 = vadd.f32 %v468, %v582
        %584 = vmatmul.bf16.gmra.mxu0 %v504
        %v585 = vpop.f32.mrf.mxu0
        %v586 = vadd.f32 %v468, %v585
        %v587 = vpop.f32.mrf.mxu0
        %v588 = vadd.f32 %v468, %v587
        %589 = vmatmul.bf16.gmra.mxu0 %v505
        %v590 = vpop.f32.mrf.mxu0
        %v591 = vadd.f32 %v468, %v590
        %v592 = vpop.f32.mrf.mxu0
        %v593 = vadd.f32 %v468, %v592
        %594 = vmatmul.bf16.gmra.mxu0 %v506
        %v595 = vpop.f32.mrf.mxu0
        %v596 = vadd.f32 %v468, %v595
        %v597 = vpop.f32.mrf.mxu0
        %v598 = vadd.f32 %v468, %v597
        %599 = vmatmul.bf16.gmra.mxu0 %v507
        %v600 = vpop.f32.mrf.mxu0
        %v601 = vadd.f32 %v468, %v600
        %v602 = vpop.f32.mrf.mxu0
        %v603 = vadd.f32 %v468, %v602
        %604 = vmatmul.bf16.gmra.mxu0 %v508
        %v605 = vpop.f32.mrf.mxu0
        %v606 = vadd.f32 %v468, %v605
        %v607 = vpop.f32.mrf.mxu0
        %v608 = vadd.f32 %v468, %v607
        %609 = vmatmul.bf16.gmra.mxu0 %v509
        %v610 = vpop.f32.mrf.mxu0
        %v611 = vadd.f32 %v468, %v610
        %v612 = vpop.f32.mrf.mxu0
        %v613 = vadd.f32 %v468, %v612
        %614 = vdwg.mxu0
        %v615 = vmax.f32 %v576, 0.0
        %v616 = vmax.f32 %v578, 0.0
        %v617 = vmax.f32 %v581, 0.0
        %v618 = vmax.f32 %v583, 0.0
        %v619 = vmax.f32 %v586, 0.0
        %v620 = vmax.f32 %v588, 0.0
        %v621 = vmax.f32 %v591, 0.0
        %v622 = vmax.f32 %v593, 0.0
        %v623 = vmax.f32 %v596, 0.0
        %v624 = vmax.f32 %v598, 0.0
        %v625 = vmax.f32 %v601, 0.0
        %v626 = vmax.f32 %v603, 0.0
        %v627 = vmax.f32 %v606, 0.0
        %v628 = vmax.f32 %v608, 0.0
        %v629 = vmax.f32 %v611, 0.0
        %v630 = vmax.f32 %v613, 0.0
        %v631 = vpack.c.bf16 %v615, %v615
        %v632 = vpack.c.bf16 %v616, %v616
        %v633 = vpack.c.bf16 %v617, %v617
        %v634 = vpack.c.bf16 %v618, %v618
        %v635 = vpack.c.bf16 %v619, %v619
        %v636 = vpack.c.bf16 %v620, %v620
        %v637 = vpack.c.bf16 %v621, %v621
        %v638 = vpack.c.bf16 %v622, %v622
        %v639 = vpack.c.bf16 %v623, %v623
        %v640 = vpack.c.bf16 %v624, %v624
        %v641 = vpack.c.bf16 %v625, %v625
        %v642 = vpack.c.bf16 %v626, %v626
        %v643 = vpack.c.bf16 %v627, %v627
        %v644 = vpack.c.bf16 %v628, %v628
        %v645 = vpack.c.bf16 %v629, %v629
        %v646 = vpack.c.bf16 %v630, %v630
        %vm647 = vsmask.f32 4368
        %vm648 = vmor %vm384, %vm647
        %v650 = vshrl.u32 %v631, 16
        %v652 = vrot.slane %v650, 7
        %v653 = vshll.u32 %v631, 16
        %v655 = vor.u32 %v652, %v653
        %v656 = vrot.slane %v652, 4
        %v658 = vshrl.u32 %v632, 16
        %v660 = vrot.slane %v658, 7
        %v661 = vshll.u32 %v632, 16
        %v663 = vor.u32 %v660, %v661
        %v664 = vsel %vm648, %v656, %v663
        %v665 = vrot.slane %v660, 4
        %v667 = vshrl.u32 %v633, 16
        %v669 = vrot.slane %v667, 7
        %v670 = vshll.u32 %v633, 16
        %v672 = vor.u32 %v669, %v670
        %v673 = vrot.slane %v669, 4
        %v675 = vshrl.u32 %v634, 16
        %v677 = vrot.slane %v675, 7
        %v678 = vshll.u32 %v634, 16
        %v680 = vor.u32 %v677, %v678
        %v681 = vsel %vm648, %v673, %v680
        %v682 = vrot.slane %v677, 4
        %v684 = vshrl.u32 %v635, 16
        %v686 = vrot.slane %v684, 7
        %v687 = vshll.u32 %v635, 16
        %v689 = vor.u32 %v686, %v687
        %v690 = vrot.slane %v686, 4
        %v692 = vshrl.u32 %v636, 16
        %v694 = vrot.slane %v692, 7
        %v695 = vshll.u32 %v636, 16
        %v697 = vor.u32 %v694, %v695
        %v698 = vsel %vm648, %v690, %v697
        %v699 = vrot.slane %v694, 4
        %v701 = vshrl.u32 %v637, 16
        %v703 = vrot.slane %v701, 7
        %v704 = vshll.u32 %v637, 16
        %v706 = vor.u32 %v703, %v704
        %v707 = vrot.slane %v703, 4
        %v709 = vshrl.u32 %v638, 16
        %v711 = vrot.slane %v709, 7
        %v712 = vshll.u32 %v638, 16
        %v714 = vor.u32 %v711, %v712
        %v715 = vsel %vm648, %v707, %v714
        %v716 = vrot.slane %v711, 4
        %v718 = vshrl.u32 %v639, 16
        %v720 = vrot.slane %v718, 7
        %v721 = vshll.u32 %v639, 16
        %v723 = vor.u32 %v720, %v721
        %v724 = vrot.slane %v720, 4
        %v726 = vshrl.u32 %v640, 16
        %v728 = vrot.slane %v726, 7
        %v729 = vshll.u32 %v640, 16
        %v731 = vor.u32 %v728, %v729
        %v732 = vsel %vm648, %v724, %v731
        %v733 = vrot.slane %v728, 4
        %v735 = vshrl.u32 %v641, 16
        %v737 = vrot.slane %v735, 7
        %v738 = vshll.u32 %v641, 16
        %v740 = vor.u32 %v737, %v738
        %v741 = vrot.slane %v737, 4
        %v743 = vshrl.u32 %v642, 16
        %v745 = vrot.slane %v743, 7
        %v746 = vshll.u32 %v642, 16
        %v748 = vor.u32 %v745, %v746
        %v749 = vsel %vm648, %v741, %v748
        %v750 = vrot.slane %v745, 4
        %v752 = vshrl.u32 %v643, 16
        %v754 = vrot.slane %v752, 7
        %v755 = vshll.u32 %v643, 16
        %v757 = vor.u32 %v754, %v755
        %v758 = vrot.slane %v754, 4
        %v760 = vshrl.u32 %v644, 16
        %v762 = vrot.slane %v760, 7
        %v763 = vshll.u32 %v644, 16
        %v765 = vor.u32 %v762, %v763
        %v766 = vsel %vm648, %v758, %v765
        %v767 = vrot.slane %v762, 4
        %v769 = vshrl.u32 %v645, 16
        %v771 = vrot.slane %v769, 7
        %v772 = vshll.u32 %v645, 16
        %v774 = vor.u32 %v771, %v772
        %v775 = vrot.slane %v771, 4
        %v777 = vshrl.u32 %v646, 16
        %v779 = vrot.slane %v777, 7
        %v780 = vshll.u32 %v646, 16
        %v782 = vor.u32 %v779, %v780
        %v783 = vsel %vm648, %v775, %v782
        %v784 = vrot.slane %v779, 4
        %s809 = scalar_lea.vmem [#allocation2], 12
        %vm810 = vcmask 1043456
        %vm811 = vmand %vm810, %vm416
        %v812 = vld [vmem:[%s809] sm:$0xf]
        %v813 = vsel %vm811, %v655, %v812
        %814 = vst [vmem:[%s809] sm:$0xf] %v813
        %815 = vst [vmem:[%s809 + $0x4] sm:$0xf] %v664
        %v816 = vld [vmem:[%s809 + $0x8] sm:$0x1]
        %v817 = vsel %vm385, %v665, %v816
        %818 = vst [vmem:[%s809 + $0x8] sm:$0x1] %v817
        %v819 = vld [vmem:[%s809 + $0xc] sm:$0xf]
        %v820 = vsel %vm811, %v672, %v819
        %821 = vst [vmem:[%s809 + $0xc] sm:$0xf] %v820
        %822 = vst [vmem:[%s809 + $0x10] sm:$0xf] %v681
        %v823 = vld [vmem:[%s809 + $0x14] sm:$0x1]
        %v824 = vsel %vm385, %v682, %v823
        %825 = vst [vmem:[%s809 + $0x14] sm:$0x1] %v824
        %v826 = vld [vmem:[%s809 + $0x18] sm:$0xf]
        %v827 = vsel %vm811, %v689, %v826
        %828 = vst [vmem:[%s809 + $0x18] sm:$0xf] %v827
        %829 = vst [vmem:[%s809 + $0x1c] sm:$0xf] %v698
        %v830 = vld [vmem:[%s809 + $0x20] sm:$0x1]
        %v831 = vsel %vm385, %v699, %v830
        %832 = vst [vmem:[%s809 + $0x20] sm:$0x1] %v831
        %v833 = vld [vmem:[%s809 + $0x24] sm:$0xf]
        %v834 = vsel %vm811, %v706, %v833
        %835 = vst [vmem:[%s809 + $0x24] sm:$0xf] %v834
        %836 = vst [vmem:[%s809 + $0x28] sm:$0xf] %v715
        %v837 = vld [vmem:[%s809 + $0x2c] sm:$0x1]
        %v838 = vsel %vm385, %v716, %v837
        %839 = vst [vmem:[%s809 + $0x2c] sm:$0x1] %v838
        %v840 = vld [vmem:[%s809 + $0x30] sm:$0xf]
        %v841 = vsel %vm811, %v723, %v840
        %842 = vst [vmem:[%s809 + $0x30] sm:$0xf] %v841
        %843 = vst [vmem:[%s809 + $0x34] sm:$0xf] %v732
        %v844 = vld [vmem:[%s809 + $0x38] sm:$0x1]
        %v845 = vsel %vm385, %v733, %v844
        %846 = vst [vmem:[%s809 + $0x38] sm:$0x1] %v845
        %v847 = vld [vmem:[%s809 + $0x3c] sm:$0xf]
        %v848 = vsel %vm811, %v740, %v847
        %849 = vst [vmem:[%s809 + $0x3c] sm:$0xf] %v848
        %850 = vst [vmem:[%s809 + $0x40] sm:$0xf] %v749
        %v851 = vld [vmem:[%s809 + $0x44] sm:$0x1]
        %v852 = vsel %vm385, %v750, %v851
        %853 = vst [vmem:[%s809 + $0x44] sm:$0x1] %v852
        %v854 = vld [vmem:[%s809 + $0x48] sm:$0xf]
        %v855 = vsel %vm811, %v757, %v854
        %856 = vst [vmem:[%s809 + $0x48] sm:$0xf] %v855
        %857 = vst [vmem:[%s809 + $0x4c] sm:$0xf] %v766
        %v858 = vld [vmem:[%s809 + $0x50] sm:$0x1]
        %v859 = vsel %vm385, %v767, %v858
        %860 = vst [vmem:[%s809 + $0x50] sm:$0x1] %v859
        %v861 = vld [vmem:[%s809 + $0x54] sm:$0xf]
        %v862 = vsel %vm811, %v774, %v861
        %863 = vst [vmem:[%s809 + $0x54] sm:$0xf] %v862
        %864 = vst [vmem:[%s809 + $0x58] sm:$0xf] %v783
        %v865 = vld [vmem:[%s809 + $0x5c] sm:$0x1]
        %v866 = vsel %vm385, %v784, %v865
        %867 = vst [vmem:[%s809 + $0x5c] sm:$0x1] %v866
        %p868 = scmp.gt.s32.totalorder %s31, 0
        // Predicated region
        $region65: #{tpu_custom_call.1} parent=47 // pred_check
          %p869 = pneg %p868
        $region66: #{tpu_custom_call.1} parent=47 // pred_check_branch
          %871 = sbr.rel (%p869) target = $region68
        $region67: #{tpu_custom_call.1} parent=47 // pred_region
          %s872 = ssub.s32 %s365, 1
          %s873 = smul.u32 %s872, 2
          %s874 = smul.addr %s873, 4
          %s875 = scalar_lea.vmem %s316, %s874 [#allocation3]
          %v876 = vld [vmem:[%s875] sm:$0xf]
          %v877 = vld [vmem:[%s875 + $0x4] sm:$0xf]
          %v880 = vunpack.c.l.b16 %v876
          %v881 = vunpack.c.l.b16 %v877
          %v882 = vpack.c.b16 %v881, %v880
          %884 = vmatpush.bf16.msra.mxu0 %v557
          %885 = vmatpush.bf16.msra.mxu0 %v556
          %886 = vmatpush.bf16.msra.mxu0 %v555
          %887 = vmatpush.bf16.msra.mxu0 %v554
          %888 = vmatpush.bf16.msra.mxu0 %v553
          %889 = vmatpush.bf16.msra.mxu0 %v552
          %890 = vmatpush.bf16.msra.mxu0 %v551
          %891 = vmatpush.bf16.msra.mxu0 %v550
          %892 = vmatmul.bf16.gmra.mxu0 %v882
          %v893 = vpop.f32.mrf.mxu0
          %v894 = vadd.f32 %v468, %v893
          %v895 = vpop.f32.mrf.mxu0
          %v896 = vadd.f32 %v468, %v895
          %897 = vdwg.mxu0
          %v898 = vmax.f32 %v894, 0.0
          %v899 = vmax.f32 %v896, 0.0
          %v900 = vpack.c.bf16 %v898, %v898
          %v901 = vpack.c.bf16 %v899, %v899
          %v903 = vshrl.u32 %v900, 16
          %v905 = vrot.slane %v903, 7
          %v906 = vshll.u32 %v900, 16
          %v908 = vor.u32 %v905, %v906
          %v909 = vrot.slane %v905, 4
          %v911 = vshrl.u32 %v901, 16
          %v913 = vrot.slane %v911, 7
          %v914 = vshll.u32 %v901, 16
          %v916 = vor.u32 %v913, %v914
          %v917 = vsel %vm648, %v909, %v916
          %v918 = vrot.slane %v913, 4
          %v922 = vld [vmem:[#allocation2] sm:$0xf]
          %v923 = vsel %vm811, %v908, %v922
          %924 = vst [vmem:[#allocation2] sm:$0xf] %v923
          %925 = vst [vmem:[#allocation2 + $0x4] sm:$0xf] %v917
          %v926 = vld [vmem:[#allocation2 + $0x8] sm:$0x1]
          %v927 = vsel %vm385, %v918, %v926
          %928 = vst [vmem:[#allocation2 + $0x8] sm:$0x1] %v927
        $region68: #{tpu_custom_call.1} parent=47 // pred_fallthru
          _
        %p929 = scmp.eq.s32.totalorder %s31, 0
        // Predicated region
        $region69: #{tpu_custom_call.1} parent=47 // pred_check
          %p930 = pneg %p929
        $region70: #{tpu_custom_call.1} parent=47 // pred_check_branch
          %932 = sbr.rel (%p930) target = $region72
        $region71: #{tpu_custom_call.1} parent=47 // pred_region
          %v933 = vld [vmem:[#allocation2] sm:$0xf]
          %v934 = vsel %vm811, 0, %v933
          %935 = vst [vmem:[#allocation2] sm:$0xf] %v934
          %936 = vst [vmem:[#allocation2 + $0x4] sm:$0xf] 0
          %v937 = vld [vmem:[#allocation2 + $0x8] sm:$0x1]
          %v938 = vsel %vm385, 0, %v937
          %939 = vst [vmem:[#allocation2 + $0x8] sm:$0x1] %v938
        $region72: #{tpu_custom_call.1} parent=47 // pred_fallthru
          _
        %p940 = scmp.lt.s32.totalorder %s31, 1
        // Predicated region
        $region73: #{tpu_custom_call.1} parent=47 // pred_check
          %p941 = pneg %p940
        $region74: #{tpu_custom_call.1} parent=47 // pred_check_branch
          %943 = sbr.rel (%p941) target = $region76
        $region75: #{tpu_custom_call.1} parent=47 // pred_region
          %s944 = sadd.s32 %s365, 8
          %s945 = smul.u32 %s944, 2
          %s946 = smul.addr %s945, 4
          %s947 = scalar_lea.vmem %s316, %s946 [#allocation3]
          %v948 = vld [vmem:[%s947] sm:$0xf]
          %v949 = vld [vmem:[%s947 + $0x4] sm:$0xf]
          %v952 = vunpack.c.l.b16 %v948
          %v953 = vunpack.c.l.b16 %v949
          %v954 = vpack.c.b16 %v953, %v952
          %956 = vmatpush.bf16.msra.mxu0 %v557
          %957 = vmatpush.bf16.msra.mxu0 %v556
          %958 = vmatpush.bf16.msra.mxu0 %v555
          %959 = vmatpush.bf16.msra.mxu0 %v554
          %960 = vmatpush.bf16.msra.mxu0 %v553
          %961 = vmatpush.bf16.msra.mxu0 %v552
          %962 = vmatpush.bf16.msra.mxu0 %v551
          %963 = vmatpush.bf16.msra.mxu0 %v550
          %964 = vmatmul.bf16.gmra.mxu0 %v954
          %v965 = vpop.f32.mrf.mxu0
          %v966 = vadd.f32 %v468, %v965
          %v967 = vpop.f32.mrf.mxu0
          %v968 = vadd.f32 %v468, %v967
          %969 = vdwg.mxu0
          %v970 = vmax.f32 %v966, 0.0
          %v971 = vmax.f32 %v968, 0.0
          %v972 = vpack.c.bf16 %v970, %v970
          %v973 = vpack.c.bf16 %v971, %v971
          %v975 = vshrl.u32 %v972, 16
          %v977 = vrot.slane %v975, 7
          %v978 = vshll.u32 %v972, 16
          %v980 = vor.u32 %v977, %v978
          %v981 = vrot.slane %v977, 4
          %v983 = vshrl.u32 %v973, 16
          %v985 = vrot.slane %v983, 7
          %v986 = vshll.u32 %v973, 16
          %v988 = vor.u32 %v985, %v986
          %v989 = vsel %vm648, %v981, %v988
          %v990 = vrot.slane %v985, 4
          %s994 = scalar_lea.vmem [#allocation2], 108
          %v995 = vld [vmem:[%s994] sm:$0xf]
          %v996 = vsel %vm811, %v980, %v995
          %997 = vst [vmem:[%s994] sm:$0xf] %v996
          %998 = vst [vmem:[%s994 + $0x4] sm:$0xf] %v989
          %v999 = vld [vmem:[%s994 + $0x8] sm:$0x1]
          %v1000 = vsel %vm385, %v990, %v999
          %1001 = vst [vmem:[%s994 + $0x8] sm:$0x1] %v1000
        $region76: #{tpu_custom_call.1} parent=47 // pred_fallthru
          _
        %p1002 = scmp.eq.s32.totalorder %s31, 1
        // Predicated region
        $region77: #{tpu_custom_call.1} parent=47 // pred_check
          %p1003 = pneg %p1002
        $region78: #{tpu_custom_call.1} parent=47 // pred_check_branch
          %1005 = sbr.rel (%p1003) target = $region80
        $region79: #{tpu_custom_call.1} parent=47 // pred_region
          %s1006 = scalar_lea.vmem [#allocation2], 108
          %v1007 = vld [vmem:[%s1006] sm:$0xf]
          %v1008 = vsel %vm811, 0, %v1007
          %1009 = vst [vmem:[%s1006] sm:$0xf] %v1008
          %1010 = vst [vmem:[%s1006 + $0x4] sm:$0xf] 0
          %v1011 = vld [vmem:[%s1006 + $0x8] sm:$0x1]
          %v1012 = vsel %vm385, 0, %v1011
          %1013 = vst [vmem:[%s1006 + $0x8] sm:$0x1] %v1012
        $region80: #{tpu_custom_call.1} parent=47 // pred_fallthru
          _
        %v1014 = vld [vmem:[#allocation2] sm:$0xf]
        %v1015 = vld [vmem:[#allocation2 + $0x4] sm:$0xf]
        %v1016 = vld [vmem:[#allocation2 + $0xc] sm:$0xf]
        %v1017 = vld [vmem:[#allocation2 + $0x10] sm:$0xf]
        %v1018 = vld [vmem:[#allocation2 + $0x18] sm:$0xf]
        %v1019 = vld [vmem:[#allocation2 + $0x1c] sm:$0xf]
        %v1020 = vld [vmem:[#allocation2 + $0x24] sm:$0xf]
        %v1021 = vld [vmem:[#allocation2 + $0x28] sm:$0xf]
        %v1022 = vld [vmem:[#allocation2 + $0x30] sm:$0xf]
        %v1023 = vld [vmem:[#allocation2 + $0x34] sm:$0xf]
        %v1024 = vld [vmem:[#allocation2 + $0x3c] sm:$0xf]
        %v1025 = vld [vmem:[#allocation2 + $0x40] sm:$0xf]
        %v1026 = vld [vmem:[#allocation2 + $0x48] sm:$0xf]
        %v1027 = vld [vmem:[#allocation2 + $0x4c] sm:$0xf]
        %v1028 = vld [vmem:[#allocation2 + $0x54] sm:$0xf]
        %v1029 = vld [vmem:[#allocation2 + $0x58] sm:$0xf]
        %v1030 = vld [vmem:[#allocation8] sm:$0xf]
        %v1031 = vld [vmem:[#allocation8 + $0x4] sm:$0xf]
        %v1032 = vld [vmem:[#allocation8 + $0x8] sm:$0xf]
        %v1033 = vld [vmem:[#allocation8 + $0xc] sm:$0xf]
        %v1034 = vld [vmem:[#allocation8 + $0x10] sm:$0xf]
        %v1035 = vld [vmem:[#allocation8 + $0x14] sm:$0xf]
        %v1036 = vld [vmem:[#allocation8 + $0x18] sm:$0xf]
        %v1037 = vld [vmem:[#allocation8 + $0x1c] sm:$0xf]
        %v1038 = vld [vmem:[#allocation8 + $0x20] sm:$0xf]
        %v1039 = vld [vmem:[#allocation8 + $0x24] sm:$0xf]
        %v1040 = vld [vmem:[#allocation8 + $0x28] sm:$0xf]
        %v1041 = vld [vmem:[#allocation8 + $0x2c] sm:$0xf]
        %v1042 = vld [vmem:[#allocation8 + $0x30] sm:$0xf]
        %v1043 = vld [vmem:[#allocation8 + $0x34] sm:$0xf]
        %v1044 = vld [vmem:[#allocation8 + $0x38] sm:$0xf]
        %v1045 = vld [vmem:[#allocation8 + $0x3c] sm:$0xf]
        %v1046 = vld [vmem:[#allocation2 + $0x8] sm:$0x1]
        %v1047 = vld [vmem:[#allocation2 + $0x14] sm:$0x1]
        %v1048 = vld [vmem:[#allocation2 + $0x20] sm:$0x1]
        %v1049 = vld [vmem:[#allocation2 + $0x2c] sm:$0x1]
        %v1050 = vld [vmem:[#allocation2 + $0x38] sm:$0x1]
        %v1051 = vld [vmem:[#allocation2 + $0x44] sm:$0x1]
        %v1052 = vld [vmem:[#allocation2 + $0x50] sm:$0x1]
        %v1053 = vld [vmem:[#allocation2 + $0x5c] sm:$0x1]
        %vm1054 = vsmask.f32 3328
        %vm1055 = vsmask.f32 7440
        %vm1056 = vmor %vm1054, %vm1055
        %v1058 = vshrl.u32 %v1014, 16
        %v1060 = vrot.slane %v1058, 4
        %v1061 = vshll.u32 %v1014, 16
        %v1063 = vrot.slane %v1061, 5
        %v1064 = vor.u32 %v1060, %v1063
        %v1065 = vrot.slane %v1064, 4
        %v1067 = vshll.u32 %v1015, 16
        %v1069 = vrot.slane %v1067, 5
        %v1070 = vsel %vm1056, %v1065, %v1069
        %v1071 = vshrl.u32 %v1015, 16
        %v1073 = vrot.slane %v1071, 4
        %v1074 = vor.u32 %v1073, %v1069
        %v1075 = vrot.slane %v1074, 4
        %v1077 = vshll.u32 %v1046, 16
        %v1079 = vrot.slane %v1077, 5
        %v1080 = vsel %vm1056, %v1075, %v1079
        %v1082 = vshrl.u32 %v1016, 16
        %v1084 = vrot.slane %v1082, 4
        %v1085 = vshll.u32 %v1016, 16
        %v1087 = vrot.slane %v1085, 5
        %v1088 = vor.u32 %v1084, %v1087
        %v1089 = vrot.slane %v1088, 4
        %v1091 = vshll.u32 %v1017, 16
        %v1093 = vrot.slane %v1091, 5
        %v1094 = vsel %vm1056, %v1089, %v1093
        %v1095 = vshrl.u32 %v1017, 16
        %v1097 = vrot.slane %v1095, 4
        %v1098 = vor.u32 %v1097, %v1093
        %v1099 = vrot.slane %v1098, 4
        %v1101 = vshll.u32 %v1047, 16
        %v1103 = vrot.slane %v1101, 5
        %v1104 = vsel %vm1056, %v1099, %v1103
        %v1106 = vshrl.u32 %v1018, 16
        %v1108 = vrot.slane %v1106, 4
        %v1109 = vshll.u32 %v1018, 16
        %v1111 = vrot.slane %v1109, 5
        %v1112 = vor.u32 %v1108, %v1111
        %v1113 = vrot.slane %v1112, 4
        %v1115 = vshll.u32 %v1019, 16
        %v1117 = vrot.slane %v1115, 5
        %v1118 = vsel %vm1056, %v1113, %v1117
        %v1119 = vshrl.u32 %v1019, 16
        %v1121 = vrot.slane %v1119, 4
        %v1122 = vor.u32 %v1121, %v1117
        %v1123 = vrot.slane %v1122, 4
        %v1125 = vshll.u32 %v1048, 16
        %v1127 = vrot.slane %v1125, 5
        %v1128 = vsel %vm1056, %v1123, %v1127
        %v1130 = vshrl.u32 %v1020, 16
        %v1132 = vrot.slane %v1130, 4
        %v1133 = vshll.u32 %v1020, 16
        %v1135 = vrot.slane %v1133, 5
        %v1136 = vor.u32 %v1132, %v1135
        %v1137 = vrot.slane %v1136, 4
        %v1139 = vshll.u32 %v1021, 16
        %v1141 = vrot.slane %v1139, 5
        %v1142 = vsel %vm1056, %v1137, %v1141
        %v1143 = vshrl.u32 %v1021, 16
        %v1145 = vrot.slane %v1143, 4
        %v1146 = vor.u32 %v1145, %v1141
        %v1147 = vrot.slane %v1146, 4
        %v1149 = vshll.u32 %v1049, 16
        %v1151 = vrot.slane %v1149, 5
        %v1152 = vsel %vm1056, %v1147, %v1151
        %v1154 = vshrl.u32 %v1022, 16
        %v1156 = vrot.slane %v1154, 4
        %v1157 = vshll.u32 %v1022, 16
        %v1159 = vrot.slane %v1157, 5
        %v1160 = vor.u32 %v1156, %v1159
        %v1161 = vrot.slane %v1160, 4
        %v1163 = vshll.u32 %v1023, 16
        %v1165 = vrot.slane %v1163, 5
        %v1166 = vsel %vm1056, %v1161, %v1165
        %v1167 = vshrl.u32 %v1023, 16
        %v1169 = vrot.slane %v1167, 4
        %v1170 = vor.u32 %v1169, %v1165
        %v1171 = vrot.slane %v1170, 4
        %v1173 = vshll.u32 %v1050, 16
        %v1175 = vrot.slane %v1173, 5
        %v1176 = vsel %vm1056, %v1171, %v1175
        %v1178 = vshrl.u32 %v1024, 16
        %v1180 = vrot.slane %v1178, 4
        %v1181 = vshll.u32 %v1024, 16
        %v1183 = vrot.slane %v1181, 5
        %v1184 = vor.u32 %v1180, %v1183
        %v1185 = vrot.slane %v1184, 4
        %v1187 = vshll.u32 %v1025, 16
        %v1189 = vrot.slane %v1187, 5
        %v1190 = vsel %vm1056, %v1185, %v1189
        %v1191 = vshrl.u32 %v1025, 16
        %v1193 = vrot.slane %v1191, 4
        %v1194 = vor.u32 %v1193, %v1189
        %v1195 = vrot.slane %v1194, 4
        %v1197 = vshll.u32 %v1051, 16
        %v1199 = vrot.slane %v1197, 5
        %v1200 = vsel %vm1056, %v1195, %v1199
        %v1202 = vshrl.u32 %v1026, 16
        %v1204 = vrot.slane %v1202, 4
        %v1205 = vshll.u32 %v1026, 16
        %v1207 = vrot.slane %v1205, 5
        %v1208 = vor.u32 %v1204, %v1207
        %v1209 = vrot.slane %v1208, 4
        %v1211 = vshll.u32 %v1027, 16
        %v1213 = vrot.slane %v1211, 5
        %v1214 = vsel %vm1056, %v1209, %v1213
        %v1215 = vshrl.u32 %v1027, 16
        %v1217 = vrot.slane %v1215, 4
        %v1218 = vor.u32 %v1217, %v1213
        %v1219 = vrot.slane %v1218, 4
        %v1221 = vshll.u32 %v1052, 16
        %v1223 = vrot.slane %v1221, 5
        %v1224 = vsel %vm1056, %v1219, %v1223
        %v1226 = vshrl.u32 %v1028, 16
        %v1228 = vrot.slane %v1226, 4
        %v1229 = vshll.u32 %v1028, 16
        %v1231 = vrot.slane %v1229, 5
        %v1232 = vor.u32 %v1228, %v1231
        %v1233 = vrot.slane %v1232, 4
        %v1235 = vshll.u32 %v1029, 16
        %v1237 = vrot.slane %v1235, 5
        %v1238 = vsel %vm1056, %v1233, %v1237
        %v1239 = vshrl.u32 %v1029, 16
        %v1241 = vrot.slane %v1239, 4
        %v1242 = vor.u32 %v1241, %v1237
        %v1243 = vrot.slane %v1242, 4
        %v1245 = vshll.u32 %v1053, 16
        %v1247 = vrot.slane %v1245, 5
        %v1248 = vsel %vm1056, %v1243, %v1247
        %s1249 = scalar_lea.vmem [#allocation8], 64
        %v1250 = vld [vmem:[%s1249] sm:$0xf]
        %v1251 = vld [vmem:[%s1249 + $0x4] sm:$0xf]
        %v1252 = vld [vmem:[%s1249 + $0x8] sm:$0xf]
        %v1253 = vld [vmem:[%s1249 + $0xc] sm:$0xf]
        %v1254 = vld [vmem:[%s1249 + $0x10] sm:$0xf]
        %v1255 = vld [vmem:[%s1249 + $0x14] sm:$0xf]
        %v1256 = vld [vmem:[%s1249 + $0x18] sm:$0xf]
        %v1257 = vld [vmem:[%s1249 + $0x1c] sm:$0xf]
        %v1258 = vld [vmem:[%s1249 + $0x20] sm:$0xf]
        %v1259 = vld [vmem:[%s1249 + $0x24] sm:$0xf]
        %v1260 = vld [vmem:[%s1249 + $0x28] sm:$0xf]
        %v1261 = vld [vmem:[%s1249 + $0x2c] sm:$0xf]
        %v1262 = vld [vmem:[%s1249 + $0x30] sm:$0xf]
        %v1263 = vld [vmem:[%s1249 + $0x34] sm:$0xf]
        %v1264 = vld [vmem:[%s1249 + $0x38] sm:$0xf]
        %v1265 = vld [vmem:[%s1249 + $0x3c] sm:$0xf]
        %v1266 = vunpack.c.l.b16 %v1070
        %v1267 = vunpack.c.l.b16 %v1080
        %v1268 = vunpack.c.l.b16 %v1094
        %v1269 = vunpack.c.l.b16 %v1104
        %v1270 = vunpack.c.l.b16 %v1118
        %v1271 = vunpack.c.l.b16 %v1128
        %v1272 = vunpack.c.l.b16 %v1142
        %v1273 = vunpack.c.l.b16 %v1152
        %v1274 = vunpack.c.l.b16 %v1166
        %v1275 = vunpack.c.l.b16 %v1176
        %v1276 = vunpack.c.l.b16 %v1190
        %v1277 = vunpack.c.l.b16 %v1200
        %v1278 = vunpack.c.l.b16 %v1214
        %v1279 = vunpack.c.l.b16 %v1224
        %v1280 = vunpack.c.l.b16 %v1238
        %v1281 = vunpack.c.l.b16 %v1248
        %v1282 = vpack.c.b16 %v1267, %v1266
        %v1283 = vpack.c.b16 %v1269, %v1268
        %v1284 = vpack.c.b16 %v1271, %v1270
        %v1285 = vpack.c.b16 %v1273, %v1272
        %v1286 = vpack.c.b16 %v1275, %v1274
        %v1287 = vpack.c.b16 %v1277, %v1276
        %v1288 = vpack.c.b16 %v1279, %v1278
        %v1289 = vpack.c.b16 %v1281, %v1280
        %v1314 = vunpack.c.l.b16 %v1250
        %v1315 = vunpack.c.l.b16 %v1251
        %v1316 = vunpack.c.l.b16 %v1252
        %v1317 = vunpack.c.l.b16 %v1253
        %v1318 = vunpack.c.l.b16 %v1254
        %v1319 = vunpack.c.l.b16 %v1255
        %v1320 = vunpack.c.l.b16 %v1256
        %v1321 = vunpack.c.l.b16 %v1257
        %v1322 = vunpack.c.l.b16 %v1258
        %v1323 = vunpack.c.l.b16 %v1259
        %v1324 = vunpack.c.l.b16 %v1260
        %v1325 = vunpack.c.l.b16 %v1261
        %v1326 = vunpack.c.l.b16 %v1262
        %v1327 = vunpack.c.l.b16 %v1263
        %v1328 = vunpack.c.l.b16 %v1264
        %v1329 = vunpack.c.l.b16 %v1265
        %v1330 = vpack.c.b16 %v1315, %v1314
        %v1331 = vpack.c.b16 %v1317, %v1316
        %v1332 = vpack.c.b16 %v1319, %v1318
        %v1333 = vpack.c.b16 %v1321, %v1320
        %v1334 = vpack.c.b16 %v1323, %v1322
        %v1335 = vpack.c.b16 %v1325, %v1324
        %v1336 = vpack.c.b16 %v1327, %v1326
        %v1337 = vpack.c.b16 %v1329, %v1328
        %1346 = vmatpush.bf16.msra.mxu0 %v1337
        %1347 = vmatpush.bf16.msra.mxu0 %v1336
        %1348 = vmatpush.bf16.msra.mxu0 %v1335
        %1349 = vmatpush.bf16.msra.mxu0 %v1334
        %1350 = vmatpush.bf16.msra.mxu0 %v1333
        %1351 = vmatpush.bf16.msra.mxu0 %v1332
        %1352 = vmatpush.bf16.msra.mxu0 %v1331
        %1353 = vmatpush.bf16.msra.mxu0 %v1330
        %1354 = vmatmul.bf16.gmra.mxu0 %v1282
        %v1355 = vpop.f32.mrf.mxu0
        %v1356 = vadd.f32 0.0, %v1355
        %v1357 = vpop.f32.mrf.mxu0
        %v1358 = vadd.f32 0.0, %v1357
        %1359 = vmatmul.bf16.gmra.mxu0 %v1283
        %v1360 = vpop.f32.mrf.mxu0
        %v1361 = vadd.f32 0.0, %v1360
        %v1362 = vpop.f32.mrf.mxu0
        %v1363 = vadd.f32 0.0, %v1362
        %1364 = vmatmul.bf16.gmra.mxu0 %v1284
        %v1365 = vpop.f32.mrf.mxu0
        %v1366 = vadd.f32 0.0, %v1365
        %v1367 = vpop.f32.mrf.mxu0
        %v1368 = vadd.f32 0.0, %v1367
        %1369 = vmatmul.bf16.gmra.mxu0 %v1285
        %v1370 = vpop.f32.mrf.mxu0
        %v1371 = vadd.f32 0.0, %v1370
        %v1372 = vpop.f32.mrf.mxu0
        %v1373 = vadd.f32 0.0, %v1372
        %1374 = vmatmul.bf16.gmra.mxu0 %v1286
        %v1375 = vpop.f32.mrf.mxu0
        %v1376 = vadd.f32 0.0, %v1375
        %v1377 = vpop.f32.mrf.mxu0
        %v1378 = vadd.f32 0.0, %v1377
        %1379 = vmatmul.bf16.gmra.mxu0 %v1287
        %v1380 = vpop.f32.mrf.mxu0
        %v1381 = vadd.f32 0.0, %v1380
        %v1382 = vpop.f32.mrf.mxu0
        %v1383 = vadd.f32 0.0, %v1382
        %1384 = vmatmul.bf16.gmra.mxu0 %v1288
        %v1385 = vpop.f32.mrf.mxu0
        %v1386 = vadd.f32 0.0, %v1385
        %v1387 = vpop.f32.mrf.mxu0
        %v1388 = vadd.f32 0.0, %v1387
        %1389 = vmatmul.bf16.gmra.mxu0 %v1289
        %v1390 = vpop.f32.mrf.mxu0
        %v1391 = vadd.f32 0.0, %v1390
        %v1392 = vpop.f32.mrf.mxu0
        %v1393 = vadd.f32 0.0, %v1392
        %1394 = vdwg.mxu0
        %v1411 = vunpack.c.l.b16 %v1014
        %v1412 = vunpack.c.l.b16 %v1015
        %v1413 = vunpack.c.l.b16 %v1016
        %v1414 = vunpack.c.l.b16 %v1017
        %v1415 = vunpack.c.l.b16 %v1018
        %v1416 = vunpack.c.l.b16 %v1019
        %v1417 = vunpack.c.l.b16 %v1020
        %v1418 = vunpack.c.l.b16 %v1021
        %v1419 = vunpack.c.l.b16 %v1022
        %v1420 = vunpack.c.l.b16 %v1023
        %v1421 = vunpack.c.l.b16 %v1024
        %v1422 = vunpack.c.l.b16 %v1025
        %v1423 = vunpack.c.l.b16 %v1026
        %v1424 = vunpack.c.l.b16 %v1027
        %v1425 = vunpack.c.l.b16 %v1028
        %v1426 = vunpack.c.l.b16 %v1029
        %v1427 = vpack.c.b16 %v1412, %v1411
        %v1428 = vpack.c.b16 %v1414, %v1413
        %v1429 = vpack.c.b16 %v1416, %v1415
        %v1430 = vpack.c.b16 %v1418, %v1417
        %v1431 = vpack.c.b16 %v1420, %v1419
        %v1432 = vpack.c.b16 %v1422, %v1421
        %v1433 = vpack.c.b16 %v1424, %v1423
        %v1434 = vpack.c.b16 %v1426, %v1425
        %v1459 = vunpack.c.l.b16 %v1030
        %v1460 = vunpack.c.l.b16 %v1031
        %v1461 = vunpack.c.l.b16 %v1032
        %v1462 = vunpack.c.l.b16 %v1033
        %v1463 = vunpack.c.l.b16 %v1034
        %v1464 = vunpack.c.l.b16 %v1035
        %v1465 = vunpack.c.l.b16 %v1036
        %v1466 = vunpack.c.l.b16 %v1037
        %v1467 = vunpack.c.l.b16 %v1038
        %v1468 = vunpack.c.l.b16 %v1039
        %v1469 = vunpack.c.l.b16 %v1040
        %v1470 = vunpack.c.l.b16 %v1041
        %v1471 = vunpack.c.l.b16 %v1042
        %v1472 = vunpack.c.l.b16 %v1043
        %v1473 = vunpack.c.l.b16 %v1044
        %v1474 = vunpack.c.l.b16 %v1045
        %v1475 = vpack.c.b16 %v1460, %v1459
        %v1476 = vpack.c.b16 %v1462, %v1461
        %v1477 = vpack.c.b16 %v1464, %v1463
        %v1478 = vpack.c.b16 %v1466, %v1465
        %v1479 = vpack.c.b16 %v1468, %v1467
        %v1480 = vpack.c.b16 %v1470, %v1469
        %v1481 = vpack.c.b16 %v1472, %v1471
        %v1482 = vpack.c.b16 %v1474, %v1473
        %1491 = vmatpush.bf16.msra.mxu0 %v1482
        %1492 = vmatpush.bf16.msra.mxu0 %v1481
        %1493 = vmatpush.bf16.msra.mxu0 %v1480
        %1494 = vmatpush.bf16.msra.mxu0 %v1479
        %1495 = vmatpush.bf16.msra.mxu0 %v1478
        %1496 = vmatpush.bf16.msra.mxu0 %v1477
        %1497 = vmatpush.bf16.msra.mxu0 %v1476
        %1498 = vmatpush.bf16.msra.mxu0 %v1475
        %1499 = vmatmul.bf16.gmra.mxu0 %v1427
        %v1500 = vpop.f32.mrf.mxu0
        %v1501 = vadd.f32 %v1356, %v1500
        %v1502 = vpop.f32.mrf.mxu0
        %v1503 = vadd.f32 %v1358, %v1502
        %1504 = vmatmul.bf16.gmra.mxu0 %v1428
        %v1505 = vpop.f32.mrf.mxu0
        %v1506 = vadd.f32 %v1361, %v1505
        %v1507 = vpop.f32.mrf.mxu0
        %v1508 = vadd.f32 %v1363, %v1507
        %1509 = vmatmul.bf16.gmra.mxu0 %v1429
        %v1510 = vpop.f32.mrf.mxu0
        %v1511 = vadd.f32 %v1366, %v1510
        %v1512 = vpop.f32.mrf.mxu0
        %v1513 = vadd.f32 %v1368, %v1512
        %1514 = vmatmul.bf16.gmra.mxu0 %v1430
        %v1515 = vpop.f32.mrf.mxu0
        %v1516 = vadd.f32 %v1371, %v1515
        %v1517 = vpop.f32.mrf.mxu0
        %v1518 = vadd.f32 %v1373, %v1517
        %1519 = vmatmul.bf16.gmra.mxu0 %v1431
        %v1520 = vpop.f32.mrf.mxu0
        %v1521 = vadd.f32 %v1376, %v1520
        %v1522 = vpop.f32.mrf.mxu0
        %v1523 = vadd.f32 %v1378, %v1522
        %1524 = vmatmul.bf16.gmra.mxu0 %v1432
        %v1525 = vpop.f32.mrf.mxu0
        %v1526 = vadd.f32 %v1381, %v1525
        %v1527 = vpop.f32.mrf.mxu0
        %v1528 = vadd.f32 %v1383, %v1527
        %1529 = vmatmul.bf16.gmra.mxu0 %v1433
        %v1530 = vpop.f32.mrf.mxu0
        %v1531 = vadd.f32 %v1386, %v1530
        %v1532 = vpop.f32.mrf.mxu0
        %v1533 = vadd.f32 %v1388, %v1532
        %1534 = vmatmul.bf16.gmra.mxu0 %v1434
        %v1535 = vpop.f32.mrf.mxu0
        %v1536 = vadd.f32 %v1391, %v1535
        %v1537 = vpop.f32.mrf.mxu0
        %v1538 = vadd.f32 %v1393, %v1537
        %1539 = vdwg.mxu0
        %v1540 = vld [vmem:[#allocation2] sm:$0xe]
        %v1541 = vld [vmem:[#allocation2 + $0xc] sm:$0xe]
        %v1542 = vld [vmem:[#allocation2 + $0x18] sm:$0xe]
        %v1543 = vld [vmem:[#allocation2 + $0x24] sm:$0xe]
        %v1544 = vld [vmem:[#allocation2 + $0x30] sm:$0xe]
        %v1545 = vld [vmem:[#allocation2 + $0x3c] sm:$0xe]
        %v1546 = vld [vmem:[#allocation2 + $0x48] sm:$0xe]
        %v1547 = vld [vmem:[#allocation2 + $0x54] sm:$0xe]
        %vm1564 = vcmask 1042432
        %vm1565 = vcmask 1046532
        %vm1566 = vmor %vm1564, %vm1565
        %v1567 = vrot.slane %v1540, 5
        %v1568 = vrot.slane %v1567, 4
        %v1569 = vrot.slane %v1015, 5
        %v1570 = vsel %vm1566, %v1568, %v1569
        %v1571 = vrot.slane %v1569, 4
        %v1572 = vrot.slane %v1046, 5
        %v1573 = vsel %vm1566, %v1571, %v1572
        %v1574 = vrot.slane %v1541, 5
        %v1575 = vrot.slane %v1574, 4
        %v1576 = vrot.slane %v1017, 5
        %v1577 = vsel %vm1566, %v1575, %v1576
        %v1578 = vrot.slane %v1576, 4
        %v1579 = vrot.slane %v1047, 5
        %v1580 = vsel %vm1566, %v1578, %v1579
        %v1581 = vrot.slane %v1542, 5
        %v1582 = vrot.slane %v1581, 4
        %v1583 = vrot.slane %v1019, 5
        %v1584 = vsel %vm1566, %v1582, %v1583
        %v1585 = vrot.slane %v1583, 4
        %v1586 = vrot.slane %v1048, 5
        %v1587 = vsel %vm1566, %v1585, %v1586
        %v1588 = vrot.slane %v1543, 5
        %v1589 = vrot.slane %v1588, 4
        %v1590 = vrot.slane %v1021, 5
        %v1591 = vsel %vm1566, %v1589, %v1590
        %v1592 = vrot.slane %v1590, 4
        %v1593 = vrot.slane %v1049, 5
        %v1594 = vsel %vm1566, %v1592, %v1593
        %v1595 = vrot.slane %v1544, 5
        %v1596 = vrot.slane %v1595, 4
        %v1597 = vrot.slane %v1023, 5
        %v1598 = vsel %vm1566, %v1596, %v1597
        %v1599 = vrot.slane %v1597, 4
        %v1600 = vrot.slane %v1050, 5
        %v1601 = vsel %vm1566, %v1599, %v1600
        %v1602 = vrot.slane %v1545, 5
        %v1603 = vrot.slane %v1602, 4
        %v1604 = vrot.slane %v1025, 5
        %v1605 = vsel %vm1566, %v1603, %v1604
        %v1606 = vrot.slane %v1604, 4
        %v1607 = vrot.slane %v1051, 5
        %v1608 = vsel %vm1566, %v1606, %v1607
        %v1609 = vrot.slane %v1546, 5
        %v1610 = vrot.slane %v1609, 4
        %v1611 = vrot.slane %v1027, 5
        %v1612 = vsel %vm1566, %v1610, %v1611
        %v1613 = vrot.slane %v1611, 4
        %v1614 = vrot.slane %v1052, 5
        %v1615 = vsel %vm1566, %v1613, %v1614
        %v1616 = vrot.slane %v1547, 5
        %v1617 = vrot.slane %v1616, 4
        %v1618 = vrot.slane %v1029, 5
        %v1619 = vsel %vm1566, %v1617, %v1618
        %v1620 = vrot.slane %v1618, 4
        %v1621 = vrot.slane %v1053, 5
        %v1622 = vsel %vm1566, %v1620, %v1621
        %s1623 = scalar_lea.vmem [#allocation8], 128
        %v1624 = vld [vmem:[%s1623] sm:$0xf]
        %v1625 = vld [vmem:[%s1623 + $0x4] sm:$0xf]
        %v1626 = vld [vmem:[%s1623 + $0x8] sm:$0xf]
        %v1627 = vld [vmem:[%s1623 + $0xc] sm:$0xf]
        %v1628 = vld [vmem:[%s1623 + $0x10] sm:$0xf]
        %v1629 = vld [vmem:[%s1623 + $0x14] sm:$0xf]
        %v1630 = vld [vmem:[%s1623 + $0x18] sm:$0xf]
        %v1631 = vld [vmem:[%s1623 + $0x1c] sm:$0xf]
        %v1632 = vld [vmem:[%s1623 + $0x20] sm:$0xf]
        %v1633 = vld [vmem:[%s1623 + $0x24] sm:$0xf]
        %v1634 = vld [vmem:[%s1623 + $0x28] sm:$0xf]
        %v1635 = vld [vmem:[%s1623 + $0x2c] sm:$0xf]
        %v1636 = vld [vmem:[%s1623 + $0x30] sm:$0xf]
        %v1637 = vld [vmem:[%s1623 + $0x34] sm:$0xf]
        %v1638 = vld [vmem:[%s1623 + $0x38] sm:$0xf]
        %v1639 = vld [vmem:[%s1623 + $0x3c] sm:$0xf]
        %v1640 = vunpack.c.l.b16 %v1570
        %v1641 = vunpack.c.l.b16 %v1573
        %v1642 = vunpack.c.l.b16 %v1577
        %v1643 = vunpack.c.l.b16 %v1580
        %v1644 = vunpack.c.l.b16 %v1584
        %v1645 = vunpack.c.l.b16 %v1587
        %v1646 = vunpack.c.l.b16 %v1591
        %v1647 = vunpack.c.l.b16 %v1594
        %v1648 = vunpack.c.l.b16 %v1598
        %v1649 = vunpack.c.l.b16 %v1601
        %v1650 = vunpack.c.l.b16 %v1605
        %v1651 = vunpack.c.l.b16 %v1608
        %v1652 = vunpack.c.l.b16 %v1612
        %v1653 = vunpack.c.l.b16 %v1615
        %v1654 = vunpack.c.l.b16 %v1619
        %v1655 = vunpack.c.l.b16 %v1622
        %v1656 = vpack.c.b16 %v1641, %v1640
        %v1657 = vpack.c.b16 %v1643, %v1642
        %v1658 = vpack.c.b16 %v1645, %v1644
        %v1659 = vpack.c.b16 %v1647, %v1646
        %v1660 = vpack.c.b16 %v1649, %v1648
        %v1661 = vpack.c.b16 %v1651, %v1650
        %v1662 = vpack.c.b16 %v1653, %v1652
        %v1663 = vpack.c.b16 %v1655, %v1654
        %v1688 = vunpack.c.l.b16 %v1624
        %v1689 = vunpack.c.l.b16 %v1625
        %v1690 = vunpack.c.l.b16 %v1626
        %v1691 = vunpack.c.l.b16 %v1627
        %v1692 = vunpack.c.l.b16 %v1628
        %v1693 = vunpack.c.l.b16 %v1629
        %v1694 = vunpack.c.l.b16 %v1630
        %v1695 = vunpack.c.l.b16 %v1631
        %v1696 = vunpack.c.l.b16 %v1632
        %v1697 = vunpack.c.l.b16 %v1633
        %v1698 = vunpack.c.l.b16 %v1634
        %v1699 = vunpack.c.l.b16 %v1635
        %v1700 = vunpack.c.l.b16 %v1636
        %v1701 = vunpack.c.l.b16 %v1637
        %v1702 = vunpack.c.l.b16 %v1638
        %v1703 = vunpack.c.l.b16 %v1639
        %v1704 = vpack.c.b16 %v1689, %v1688
        %v1705 = vpack.c.b16 %v1691, %v1690
        %v1706 = vpack.c.b16 %v1693, %v1692
        %v1707 = vpack.c.b16 %v1695, %v1694
        %v1708 = vpack.c.b16 %v1697, %v1696
        %v1709 = vpack.c.b16 %v1699, %v1698
        %v1710 = vpack.c.b16 %v1701, %v1700
        %v1711 = vpack.c.b16 %v1703, %v1702
        %1720 = vmatpush.bf16.msra.mxu0 %v1711
        %1721 = vmatpush.bf16.msra.mxu0 %v1710
        %1722 = vmatpush.bf16.msra.mxu0 %v1709
        %1723 = vmatpush.bf16.msra.mxu0 %v1708
        %1724 = vmatpush.bf16.msra.mxu0 %v1707
        %1725 = vmatpush.bf16.msra.mxu0 %v1706
        %1726 = vmatpush.bf16.msra.mxu0 %v1705
        %1727 = vmatpush.bf16.msra.mxu0 %v1704
        %1728 = vmatmul.bf16.gmra.mxu0 %v1656
        %v1729 = vpop.f32.mrf.mxu0
        %v1730 = vadd.f32 0.0, %v1729
        %v1731 = vpop.f32.mrf.mxu0
        %v1732 = vadd.f32 0.0, %v1731
        %1733 = vmatmul.bf16.gmra.mxu0 %v1657
        %v1734 = vpop.f32.mrf.mxu0
        %v1735 = vadd.f32 0.0, %v1734
        %v1736 = vpop.f32.mrf.mxu0
        %v1737 = vadd.f32 0.0, %v1736
        %1738 = vmatmul.bf16.gmra.mxu0 %v1658
        %v1739 = vpop.f32.mrf.mxu0
        %v1740 = vadd.f32 0.0, %v1739
        %v1741 = vpop.f32.mrf.mxu0
        %v1742 = vadd.f32 0.0, %v1741
        %1743 = vmatmul.bf16.gmra.mxu0 %v1659
        %v1744 = vpop.f32.mrf.mxu0
        %v1745 = vadd.f32 0.0, %v1744
        %v1746 = vpop.f32.mrf.mxu0
        %v1747 = vadd.f32 0.0, %v1746
        %1748 = vmatmul.bf16.gmra.mxu0 %v1660
        %v1749 = vpop.f32.mrf.mxu0
        %v1750 = vadd.f32 0.0, %v1749
        %v1751 = vpop.f32.mrf.mxu0
        %v1752 = vadd.f32 0.0, %v1751
        %1753 = vmatmul.bf16.gmra.mxu0 %v1661
        %v1754 = vpop.f32.mrf.mxu0
        %v1755 = vadd.f32 0.0, %v1754
        %v1756 = vpop.f32.mrf.mxu0
        %v1757 = vadd.f32 0.0, %v1756
        %1758 = vmatmul.bf16.gmra.mxu0 %v1662
        %v1759 = vpop.f32.mrf.mxu0
        %v1760 = vadd.f32 0.0, %v1759
        %v1761 = vpop.f32.mrf.mxu0
        %v1762 = vadd.f32 0.0, %v1761
        %1763 = vmatmul.bf16.gmra.mxu0 %v1663
        %v1764 = vpop.f32.mrf.mxu0
        %v1765 = vadd.f32 0.0, %v1764
        %v1766 = vpop.f32.mrf.mxu0
        %v1767 = vadd.f32 0.0, %v1766
        %1768 = vdwg.mxu0
        %v1769 = vadd.f32 %v1501, %v1730
        %v1770 = vadd.f32 %v1503, %v1732
        %v1771 = vadd.f32 %v1506, %v1735
        %v1772 = vadd.f32 %v1508, %v1737
        %v1773 = vadd.f32 %v1511, %v1740
        %v1774 = vadd.f32 %v1513, %v1742
        %v1775 = vadd.f32 %v1516, %v1745
        %v1776 = vadd.f32 %v1518, %v1747
        %v1777 = vadd.f32 %v1521, %v1750
        %v1778 = vadd.f32 %v1523, %v1752
        %v1779 = vadd.f32 %v1526, %v1755
        %v1780 = vadd.f32 %v1528, %v1757
        %v1781 = vadd.f32 %v1531, %v1760
        %v1782 = vadd.f32 %v1533, %v1762
        %v1783 = vadd.f32 %v1536, %v1765
        %v1784 = vadd.f32 %v1538, %v1767
        %v1785 = vld [vmem:[%s809] sm:$0xf]
        %v1786 = vld [vmem:[%s809 + $0x4] sm:$0xf]
        %v1787 = vld [vmem:[%s809 + $0xc] sm:$0xf]
        %v1788 = vld [vmem:[%s809 + $0x10] sm:$0xf]
        %v1789 = vld [vmem:[%s809 + $0x18] sm:$0xf]
        %v1790 = vld [vmem:[%s809 + $0x1c] sm:$0xf]
        %v1791 = vld [vmem:[%s809 + $0x24] sm:$0xf]
        %v1792 = vld [vmem:[%s809 + $0x28] sm:$0xf]
        %v1793 = vld [vmem:[%s809 + $0x30] sm:$0xf]
        %v1794 = vld [vmem:[%s809 + $0x34] sm:$0xf]
        %v1795 = vld [vmem:[%s809 + $0x3c] sm:$0xf]
        %v1796 = vld [vmem:[%s809 + $0x40] sm:$0xf]
        %v1797 = vld [vmem:[%s809 + $0x48] sm:$0xf]
        %v1798 = vld [vmem:[%s809 + $0x4c] sm:$0xf]
        %v1799 = vld [vmem:[%s809 + $0x54] sm:$0xf]
        %v1800 = vld [vmem:[%s809 + $0x58] sm:$0xf]
        %s1801 = scalar_lea.vmem [#allocation8], 192
        %v1802 = vld [vmem:[%s1801] sm:$0xf]
        %v1803 = vld [vmem:[%s1801 + $0x4] sm:$0xf]
        %v1804 = vld [vmem:[%s1801 + $0x8] sm:$0xf]
        %v1805 = vld [vmem:[%s1801 + $0xc] sm:$0xf]
        %v1806 = vld [vmem:[%s1801 + $0x10] sm:$0xf]
        %v1807 = vld [vmem:[%s1801 + $0x14] sm:$0xf]
        %v1808 = vld [vmem:[%s1801 + $0x18] sm:$0xf]
        %v1809 = vld [vmem:[%s1801 + $0x1c] sm:$0xf]
        %v1810 = vld [vmem:[%s1801 + $0x20] sm:$0xf]
        %v1811 = vld [vmem:[%s1801 + $0x24] sm:$0xf]
        %v1812 = vld [vmem:[%s1801 + $0x28] sm:$0xf]
        %v1813 = vld [vmem:[%s1801 + $0x2c] sm:$0xf]
        %v1814 = vld [vmem:[%s1801 + $0x30] sm:$0xf]
        %v1815 = vld [vmem:[%s1801 + $0x34] sm:$0xf]
        %v1816 = vld [vmem:[%s1801 + $0x38] sm:$0xf]
        %v1817 = vld [vmem:[%s1801 + $0x3c] sm:$0xf]
        %v1834 = vunpack.c.l.b16 %v1785
        %v1835 = vunpack.c.l.b16 %v1786
        %v1836 = vunpack.c.l.b16 %v1787
        %v1837 = vunpack.c.l.b16 %v1788
        %v1838 = vunpack.c.l.b16 %v1789
        %v1839 = vunpack.c.l.b16 %v1790
        %v1840 = vunpack.c.l.b16 %v1791
        %v1841 = vunpack.c.l.b16 %v1792
        %v1842 = vunpack.c.l.b16 %v1793
        %v1843 = vunpack.c.l.b16 %v1794
        %v1844 = vunpack.c.l.b16 %v1795
        %v1845 = vunpack.c.l.b16 %v1796
        %v1846 = vunpack.c.l.b16 %v1797
        %v1847 = vunpack.c.l.b16 %v1798
        %v1848 = vunpack.c.l.b16 %v1799
        %v1849 = vunpack.c.l.b16 %v1800
        %v1850 = vpack.c.b16 %v1835, %v1834
        %v1851 = vpack.c.b16 %v1837, %v1836
        %v1852 = vpack.c.b16 %v1839, %v1838
        %v1853 = vpack.c.b16 %v1841, %v1840
        %v1854 = vpack.c.b16 %v1843, %v1842
        %v1855 = vpack.c.b16 %v1845, %v1844
        %v1856 = vpack.c.b16 %v1847, %v1846
        %v1857 = vpack.c.b16 %v1849, %v1848
        %v1882 = vunpack.c.l.b16 %v1802
        %v1883 = vunpack.c.l.b16 %v1803
        %v1884 = vunpack.c.l.b16 %v1804
        %v1885 = vunpack.c.l.b16 %v1805
        %v1886 = vunpack.c.l.b16 %v1806
        %v1887 = vunpack.c.l.b16 %v1807
        %v1888 = vunpack.c.l.b16 %v1808
        %v1889 = vunpack.c.l.b16 %v1809
        %v1890 = vunpack.c.l.b16 %v1810
        %v1891 = vunpack.c.l.b16 %v1811
        %v1892 = vunpack.c.l.b16 %v1812
        %v1893 = vunpack.c.l.b16 %v1813
        %v1894 = vunpack.c.l.b16 %v1814
        %v1895 = vunpack.c.l.b16 %v1815
        %v1896 = vunpack.c.l.b16 %v1816
        %v1897 = vunpack.c.l.b16 %v1817
        %v1898 = vpack.c.b16 %v1883, %v1882
        %v1899 = vpack.c.b16 %v1885, %v1884
        %v1900 = vpack.c.b16 %v1887, %v1886
        %v1901 = vpack.c.b16 %v1889, %v1888
        %v1902 = vpack.c.b16 %v1891, %v1890
        %v1903 = vpack.c.b16 %v1893, %v1892
        %v1904 = vpack.c.b16 %v1895, %v1894
        %v1905 = vpack.c.b16 %v1897, %v1896
        %1914 = vmatpush.bf16.msra.mxu0 %v1905
        %1915 = vmatpush.bf16.msra.mxu0 %v1904
        %1916 = vmatpush.bf16.msra.mxu0 %v1903
        %1917 = vmatpush.bf16.msra.mxu0 %v1902
        %1918 = vmatpush.bf16.msra.mxu0 %v1901
        %1919 = vmatpush.bf16.msra.mxu0 %v1900
        %1920 = vmatpush.bf16.msra.mxu0 %v1899
        %1921 = vmatpush.bf16.msra.mxu0 %v1898
        %1922 = vmatmul.bf16.gmra.mxu0 %v1850
        %v1923 = vpop.f32.mrf.mxu0
        %v1924 = vadd.f32 0.0, %v1923
        %v1925 = vpop.f32.mrf.mxu0
        %v1926 = vadd.f32 0.0, %v1925
        %1927 = vmatmul.bf16.gmra.mxu0 %v1851
        %v1928 = vpop.f32.mrf.mxu0
        %v1929 = vadd.f32 0.0, %v1928
        %v1930 = vpop.f32.mrf.mxu0
        %v1931 = vadd.f32 0.0, %v1930
        %1932 = vmatmul.bf16.gmra.mxu0 %v1852
        %v1933 = vpop.f32.mrf.mxu0
        %v1934 = vadd.f32 0.0, %v1933
        %v1935 = vpop.f32.mrf.mxu0
        %v1936 = vadd.f32 0.0, %v1935
        %1937 = vmatmul.bf16.gmra.mxu0 %v1853
        %v1938 = vpop.f32.mrf.mxu0
        %v1939 = vadd.f32 0.0, %v1938
        %v1940 = vpop.f32.mrf.mxu0
        %v1941 = vadd.f32 0.0, %v1940
        %1942 = vmatmul.bf16.gmra.mxu0 %v1854
        %v1943 = vpop.f32.mrf.mxu0
        %v1944 = vadd.f32 0.0, %v1943
        %v1945 = vpop.f32.mrf.mxu0
        %v1946 = vadd.f32 0.0, %v1945
        %1947 = vmatmul.bf16.gmra.mxu0 %v1855
        %v1948 = vpop.f32.mrf.mxu0
        %v1949 = vadd.f32 0.0, %v1948
        %v1950 = vpop.f32.mrf.mxu0
        %v1951 = vadd.f32 0.0, %v1950
        %1952 = vmatmul.bf16.gmra.mxu0 %v1856
        %v1953 = vpop.f32.mrf.mxu0
        %v1954 = vadd.f32 0.0, %v1953
        %v1955 = vpop.f32.mrf.mxu0
        %v1956 = vadd.f32 0.0, %v1955
        %1957 = vmatmul.bf16.gmra.mxu0 %v1857
        %v1958 = vpop.f32.mrf.mxu0
        %v1959 = vadd.f32 0.0, %v1958
        %v1960 = vpop.f32.mrf.mxu0
        %v1961 = vadd.f32 0.0, %v1960
        %1962 = vdwg.mxu0
        %v1963 = vadd.f32 %v1769, %v1924
        %v1964 = vadd.f32 %v1770, %v1926
        %v1965 = vadd.f32 %v1771, %v1929
        %v1966 = vadd.f32 %v1772, %v1931
        %v1967 = vadd.f32 %v1773, %v1934
        %v1968 = vadd.f32 %v1774, %v1936
        %v1969 = vadd.f32 %v1775, %v1939
        %v1970 = vadd.f32 %v1776, %v1941
        %v1971 = vadd.f32 %v1777, %v1944
        %v1972 = vadd.f32 %v1778, %v1946
        %v1973 = vadd.f32 %v1779, %v1949
        %v1974 = vadd.f32 %v1780, %v1951
        %v1975 = vadd.f32 %v1781, %v1954
        %v1976 = vadd.f32 %v1782, %v1956
        %v1977 = vadd.f32 %v1783, %v1959
        %v1978 = vadd.f32 %v1784, %v1961
        %v1979 = vld [vmem:[%s809] sm:$0xf]
        %v1980 = vld [vmem:[%s809 + $0x4] sm:$0xf]
        %v1981 = vld [vmem:[%s809 + $0x8] sm:$0x1]
        %v1982 = vld [vmem:[%s809 + $0xc] sm:$0xf]
        %v1983 = vld [vmem:[%s809 + $0x10] sm:$0xf]
        %v1984 = vld [vmem:[%s809 + $0x14] sm:$0x1]
        %v1985 = vld [vmem:[%s809 + $0x18] sm:$0xf]
        %v1986 = vld [vmem:[%s809 + $0x1c] sm:$0xf]
        %v1987 = vld [vmem:[%s809 + $0x20] sm:$0x1]
        %v1988 = vld [vmem:[%s809 + $0x24] sm:$0xf]
        %v1989 = vld [vmem:[%s809 + $0x28] sm:$0xf]
        %v1990 = vld [vmem:[%s809 + $0x2c] sm:$0x1]
        %v1991 = vld [vmem:[%s809 + $0x30] sm:$0xf]
        %v1992 = vld [vmem:[%s809 + $0x34] sm:$0xf]
        %v1993 = vld [vmem:[%s809 + $0x38] sm:$0x1]
        %v1994 = vld [vmem:[%s809 + $0x3c] sm:$0xf]
        %v1995 = vld [vmem:[%s809 + $0x40] sm:$0xf]
        %v1996 = vld [vmem:[%s809 + $0x44] sm:$0x1]
        %v1997 = vld [vmem:[%s809 + $0x48] sm:$0xf]
        %v1998 = vld [vmem:[%s809 + $0x4c] sm:$0xf]
        %v1999 = vld [vmem:[%s809 + $0x50] sm:$0x1]
        %v2000 = vld [vmem:[%s809 + $0x54] sm:$0xf]
        %v2001 = vld [vmem:[%s809 + $0x58] sm:$0xf]
        %v2002 = vld [vmem:[%s809 + $0x5c] sm:$0x1]
        %v2004 = vshrl.u32 %v1979, 16
        %v2006 = vrot.slane %v2004, 4
        %v2007 = vshll.u32 %v1979, 16
        %v2009 = vrot.slane %v2007, 5
        %v2010 = vor.u32 %v2006, %v2009
        %v2011 = vrot.slane %v2010, 4
        %v2013 = vshll.u32 %v1980, 16
        %v2015 = vrot.slane %v2013, 5
        %v2016 = vsel %vm1056, %v2011, %v2015
        %v2017 = vshrl.u32 %v1980, 16
        %v2019 = vrot.slane %v2017, 4
        %v2020 = vor.u32 %v2019, %v2015
        %v2021 = vrot.slane %v2020, 4
        %v2023 = vshll.u32 %v1981, 16
        %v2025 = vrot.slane %v2023, 5
        %v2026 = vsel %vm1056, %v2021, %v2025
        %v2028 = vshrl.u32 %v1982, 16
        %v2030 = vrot.slane %v2028, 4
        %v2031 = vshll.u32 %v1982, 16
        %v2033 = vrot.slane %v2031, 5
        %v2034 = vor.u32 %v2030, %v2033
        %v2035 = vrot.slane %v2034, 4
        %v2037 = vshll.u32 %v1983, 16
        %v2039 = vrot.slane %v2037, 5
        %v2040 = vsel %vm1056, %v2035, %v2039
        %v2041 = vshrl.u32 %v1983, 16
        %v2043 = vrot.slane %v2041, 4
        %v2044 = vor.u32 %v2043, %v2039
        %v2045 = vrot.slane %v2044, 4
        %v2047 = vshll.u32 %v1984, 16
        %v2049 = vrot.slane %v2047, 5
        %v2050 = vsel %vm1056, %v2045, %v2049
        %v2052 = vshrl.u32 %v1985, 16
        %v2054 = vrot.slane %v2052, 4
        %v2055 = vshll.u32 %v1985, 16
        %v2057 = vrot.slane %v2055, 5
        %v2058 = vor.u32 %v2054, %v2057
        %v2059 = vrot.slane %v2058, 4
        %v2061 = vshll.u32 %v1986, 16
        %v2063 = vrot.slane %v2061, 5
        %v2064 = vsel %vm1056, %v2059, %v2063
        %v2065 = vshrl.u32 %v1986, 16
        %v2067 = vrot.slane %v2065, 4
        %v2068 = vor.u32 %v2067, %v2063
        %v2069 = vrot.slane %v2068, 4
        %v2071 = vshll.u32 %v1987, 16
        %v2073 = vrot.slane %v2071, 5
        %v2074 = vsel %vm1056, %v2069, %v2073
        %v2076 = vshrl.u32 %v1988, 16
        %v2078 = vrot.slane %v2076, 4
        %v2079 = vshll.u32 %v1988, 16
        %v2081 = vrot.slane %v2079, 5
        %v2082 = vor.u32 %v2078, %v2081
        %v2083 = vrot.slane %v2082, 4
        %v2085 = vshll.u32 %v1989, 16
        %v2087 = vrot.slane %v2085, 5
        %v2088 = vsel %vm1056, %v2083, %v2087
        %v2089 = vshrl.u32 %v1989, 16
        %v2091 = vrot.slane %v2089, 4
        %v2092 = vor.u32 %v2091, %v2087
        %v2093 = vrot.slane %v2092, 4
        %v2095 = vshll.u32 %v1990, 16
        %v2097 = vrot.slane %v2095, 5
        %v2098 = vsel %vm1056, %v2093, %v2097
        %v2100 = vshrl.u32 %v1991, 16
        %v2102 = vrot.slane %v2100, 4
        %v2103 = vshll.u32 %v1991, 16
        %v2105 = vrot.slane %v2103, 5
        %v2106 = vor.u32 %v2102, %v2105
        %v2107 = vrot.slane %v2106, 4
        %v2109 = vshll.u32 %v1992, 16
        %v2111 = vrot.slane %v2109, 5
        %v2112 = vsel %vm1056, %v2107, %v2111
        %v2113 = vshrl.u32 %v1992, 16
        %v2115 = vrot.slane %v2113, 4
        %v2116 = vor.u32 %v2115, %v2111
        %v2117 = vrot.slane %v2116, 4
        %v2119 = vshll.u32 %v1993, 16
        %v2121 = vrot.slane %v2119, 5
        %v2122 = vsel %vm1056, %v2117, %v2121
        %v2124 = vshrl.u32 %v1994, 16
        %v2126 = vrot.slane %v2124, 4
        %v2127 = vshll.u32 %v1994, 16
        %v2129 = vrot.slane %v2127, 5
        %v2130 = vor.u32 %v2126, %v2129
        %v2131 = vrot.slane %v2130, 4
        %v2133 = vshll.u32 %v1995, 16
        %v2135 = vrot.slane %v2133, 5
        %v2136 = vsel %vm1056, %v2131, %v2135
        %v2137 = vshrl.u32 %v1995, 16
        %v2139 = vrot.slane %v2137, 4
        %v2140 = vor.u32 %v2139, %v2135
        %v2141 = vrot.slane %v2140, 4
        %v2143 = vshll.u32 %v1996, 16
        %v2145 = vrot.slane %v2143, 5
        %v2146 = vsel %vm1056, %v2141, %v2145
        %v2148 = vshrl.u32 %v1997, 16
        %v2150 = vrot.slane %v2148, 4
        %v2151 = vshll.u32 %v1997, 16
        %v2153 = vrot.slane %v2151, 5
        %v2154 = vor.u32 %v2150, %v2153
        %v2155 = vrot.slane %v2154, 4
        %v2157 = vshll.u32 %v1998, 16
        %v2159 = vrot.slane %v2157, 5
        %v2160 = vsel %vm1056, %v2155, %v2159
        %v2161 = vshrl.u32 %v1998, 16
        %v2163 = vrot.slane %v2161, 4
        %v2164 = vor.u32 %v2163, %v2159
        %v2165 = vrot.slane %v2164, 4
        %v2167 = vshll.u32 %v1999, 16
        %v2169 = vrot.slane %v2167, 5
        %v2170 = vsel %vm1056, %v2165, %v2169
        %v2172 = vshrl.u32 %v2000, 16
        %v2174 = vrot.slane %v2172, 4
        %v2175 = vshll.u32 %v2000, 16
        %v2177 = vrot.slane %v2175, 5
        %v2178 = vor.u32 %v2174, %v2177
        %v2179 = vrot.slane %v2178, 4
        %v2181 = vshll.u32 %v2001, 16
        %v2183 = vrot.slane %v2181, 5
        %v2184 = vsel %vm1056, %v2179, %v2183
        %v2185 = vshrl.u32 %v2001, 16
        %v2187 = vrot.slane %v2185, 4
        %v2188 = vor.u32 %v2187, %v2183
        %v2189 = vrot.slane %v2188, 4
        %v2191 = vshll.u32 %v2002, 16
        %v2193 = vrot.slane %v2191, 5
        %v2194 = vsel %vm1056, %v2189, %v2193
        %s2195 = scalar_lea.vmem [#allocation8], 256
        %v2196 = vld [vmem:[%s2195] sm:$0xf]
        %v2197 = vld [vmem:[%s2195 + $0x4] sm:$0xf]
        %v2198 = vld [vmem:[%s2195 + $0x8] sm:$0xf]
        %v2199 = vld [vmem:[%s2195 + $0xc] sm:$0xf]
        %v2200 = vld [vmem:[%s2195 + $0x10] sm:$0xf]
        %v2201 = vld [vmem:[%s2195 + $0x14] sm:$0xf]
        %v2202 = vld [vmem:[%s2195 + $0x18] sm:$0xf]
        %v2203 = vld [vmem:[%s2195 + $0x1c] sm:$0xf]
        %v2204 = vld [vmem:[%s2195 + $0x20] sm:$0xf]
        %v2205 = vld [vmem:[%s2195 + $0x24] sm:$0xf]
        %v2206 = vld [vmem:[%s2195 + $0x28] sm:$0xf]
        %v2207 = vld [vmem:[%s2195 + $0x2c] sm:$0xf]
        %v2208 = vld [vmem:[%s2195 + $0x30] sm:$0xf]
        %v2209 = vld [vmem:[%s2195 + $0x34] sm:$0xf]
        %v2210 = vld [vmem:[%s2195 + $0x38] sm:$0xf]
        %v2211 = vld [vmem:[%s2195 + $0x3c] sm:$0xf]
        %v2212 = vunpack.c.l.b16 %v2016
        %v2213 = vunpack.c.l.b16 %v2026
        %v2214 = vunpack.c.l.b16 %v2040
        %v2215 = vunpack.c.l.b16 %v2050
        %v2216 = vunpack.c.l.b16 %v2064
        %v2217 = vunpack.c.l.b16 %v2074
        %v2218 = vunpack.c.l.b16 %v2088
        %v2219 = vunpack.c.l.b16 %v2098
        %v2220 = vunpack.c.l.b16 %v2112
        %v2221 = vunpack.c.l.b16 %v2122
        %v2222 = vunpack.c.l.b16 %v2136
        %v2223 = vunpack.c.l.b16 %v2146
        %v2224 = vunpack.c.l.b16 %v2160
        %v2225 = vunpack.c.l.b16 %v2170
        %v2226 = vunpack.c.l.b16 %v2184
        %v2227 = vunpack.c.l.b16 %v2194
        %v2228 = vpack.c.b16 %v2213, %v2212
        %v2229 = vpack.c.b16 %v2215, %v2214
        %v2230 = vpack.c.b16 %v2217, %v2216
        %v2231 = vpack.c.b16 %v2219, %v2218
        %v2232 = vpack.c.b16 %v2221, %v2220
        %v2233 = vpack.c.b16 %v2223, %v2222
        %v2234 = vpack.c.b16 %v2225, %v2224
        %v2235 = vpack.c.b16 %v2227, %v2226
        %v2260 = vunpack.c.l.b16 %v2196
        %v2261 = vunpack.c.l.b16 %v2197
        %v2262 = vunpack.c.l.b16 %v2198
        %v2263 = vunpack.c.l.b16 %v2199
        %v2264 = vunpack.c.l.b16 %v2200
        %v2265 = vunpack.c.l.b16 %v2201
        %v2266 = vunpack.c.l.b16 %v2202
        %v2267 = vunpack.c.l.b16 %v2203
        %v2268 = vunpack.c.l.b16 %v2204
        %v2269 = vunpack.c.l.b16 %v2205
        %v2270 = vunpack.c.l.b16 %v2206
        %v2271 = vunpack.c.l.b16 %v2207
        %v2272 = vunpack.c.l.b16 %v2208
        %v2273 = vunpack.c.l.b16 %v2209
        %v2274 = vunpack.c.l.b16 %v2210
        %v2275 = vunpack.c.l.b16 %v2211
        %v2276 = vpack.c.b16 %v2261, %v2260
        %v2277 = vpack.c.b16 %v2263, %v2262
        %v2278 = vpack.c.b16 %v2265, %v2264
        %v2279 = vpack.c.b16 %v2267, %v2266
        %v2280 = vpack.c.b16 %v2269, %v2268
        %v2281 = vpack.c.b16 %v2271, %v2270
        %v2282 = vpack.c.b16 %v2273, %v2272
        %v2283 = vpack.c.b16 %v2275, %v2274
        %2292 = vmatpush.bf16.msra.mxu0 %v2283
        %2293 = vmatpush.bf16.msra.mxu0 %v2282
        %2294 = vmatpush.bf16.msra.mxu0 %v2281
        %2295 = vmatpush.bf16.msra.mxu0 %v2280
        %2296 = vmatpush.bf16.msra.mxu0 %v2279
        %2297 = vmatpush.bf16.msra.mxu0 %v2278
        %2298 = vmatpush.bf16.msra.mxu0 %v2277
        %2299 = vmatpush.bf16.msra.mxu0 %v2276
        %2300 = vmatmul.bf16.gmra.mxu0 %v2228
        %v2301 = vpop.f32.mrf.mxu0
        %v2302 = vadd.f32 0.0, %v2301
        %v2303 = vpop.f32.mrf.mxu0
        %v2304 = vadd.f32 0.0, %v2303
        %2305 = vmatmul.bf16.gmra.mxu0 %v2229
        %v2306 = vpop.f32.mrf.mxu0
        %v2307 = vadd.f32 0.0, %v2306
        %v2308 = vpop.f32.mrf.mxu0
        %v2309 = vadd.f32 0.0, %v2308
        %2310 = vmatmul.bf16.gmra.mxu0 %v2230
        %v2311 = vpop.f32.mrf.mxu0
        %v2312 = vadd.f32 0.0, %v2311
        %v2313 = vpop.f32.mrf.mxu0
        %v2314 = vadd.f32 0.0, %v2313
        %2315 = vmatmul.bf16.gmra.mxu0 %v2231
        %v2316 = vpop.f32.mrf.mxu0
        %v2317 = vadd.f32 0.0, %v2316
        %v2318 = vpop.f32.mrf.mxu0
        %v2319 = vadd.f32 0.0, %v2318
        %2320 = vmatmul.bf16.gmra.mxu0 %v2232
        %v2321 = vpop.f32.mrf.mxu0
        %v2322 = vadd.f32 0.0, %v2321
        %v2323 = vpop.f32.mrf.mxu0
        %v2324 = vadd.f32 0.0, %v2323
        %2325 = vmatmul.bf16.gmra.mxu0 %v2233
        %v2326 = vpop.f32.mrf.mxu0
        %v2327 = vadd.f32 0.0, %v2326
        %v2328 = vpop.f32.mrf.mxu0
        %v2329 = vadd.f32 0.0, %v2328
        %2330 = vmatmul.bf16.gmra.mxu0 %v2234
        %v2331 = vpop.f32.mrf.mxu0
        %v2332 = vadd.f32 0.0, %v2331
        %v2333 = vpop.f32.mrf.mxu0
        %v2334 = vadd.f32 0.0, %v2333
        %2335 = vmatmul.bf16.gmra.mxu0 %v2235
        %v2336 = vpop.f32.mrf.mxu0
        %v2337 = vadd.f32 0.0, %v2336
        %v2338 = vpop.f32.mrf.mxu0
        %v2339 = vadd.f32 0.0, %v2338
        %2340 = vdwg.mxu0
        %v2341 = vadd.f32 %v1963, %v2302
        %v2342 = vadd.f32 %v1964, %v2304
        %v2343 = vadd.f32 %v1965, %v2307
        %v2344 = vadd.f32 %v1966, %v2309
        %v2345 = vadd.f32 %v1967, %v2312
        %v2346 = vadd.f32 %v1968, %v2314
        %v2347 = vadd.f32 %v1969, %v2317
        %v2348 = vadd.f32 %v1970, %v2319
        %v2349 = vadd.f32 %v1971, %v2322
        %v2350 = vadd.f32 %v1972, %v2324
        %v2351 = vadd.f32 %v1973, %v2327
        %v2352 = vadd.f32 %v1974, %v2329
        %v2353 = vadd.f32 %v1975, %v2332
        %v2354 = vadd.f32 %v1976, %v2334
        %v2355 = vadd.f32 %v1977, %v2337
        %v2356 = vadd.f32 %v1978, %v2339
        %v2357 = vld [vmem:[%s809] sm:$0xe]
        %v2358 = vld [vmem:[%s809 + $0xc] sm:$0xe]
        %v2359 = vld [vmem:[%s809 + $0x18] sm:$0xe]
        %v2360 = vld [vmem:[%s809 + $0x24] sm:$0xe]
        %v2361 = vld [vmem:[%s809 + $0x30] sm:$0xe]
        %v2362 = vld [vmem:[%s809 + $0x3c] sm:$0xe]
        %v2363 = vld [vmem:[%s809 + $0x48] sm:$0xe]
        %v2364 = vld [vmem:[%s809 + $0x54] sm:$0xe]
        %v2389 = vrot.slane %v2357, 5
        %v2390 = vrot.slane %v2389, 4
        %v2391 = vrot.slane %v1980, 5
        %v2392 = vsel %vm1566, %v2390, %v2391
        %v2393 = vrot.slane %v2391, 4
        %v2394 = vrot.slane %v1981, 5
        %v2395 = vsel %vm1566, %v2393, %v2394
        %v2396 = vrot.slane %v2358, 5
        %v2397 = vrot.slane %v2396, 4
        %v2398 = vrot.slane %v1983, 5
        %v2399 = vsel %vm1566, %v2397, %v2398
        %v2400 = vrot.slane %v2398, 4
        %v2401 = vrot.slane %v1984, 5
        %v2402 = vsel %vm1566, %v2400, %v2401
        %v2403 = vrot.slane %v2359, 5
        %v2404 = vrot.slane %v2403, 4
        %v2405 = vrot.slane %v1986, 5
        %v2406 = vsel %vm1566, %v2404, %v2405
        %v2407 = vrot.slane %v2405, 4
        %v2408 = vrot.slane %v1987, 5
        %v2409 = vsel %vm1566, %v2407, %v2408
        %v2410 = vrot.slane %v2360, 5
        %v2411 = vrot.slane %v2410, 4
        %v2412 = vrot.slane %v1989, 5
        %v2413 = vsel %vm1566, %v2411, %v2412
        %v2414 = vrot.slane %v2412, 4
        %v2415 = vrot.slane %v1990, 5
        %v2416 = vsel %vm1566, %v2414, %v2415
        %v2417 = vrot.slane %v2361, 5
        %v2418 = vrot.slane %v2417, 4
        %v2419 = vrot.slane %v1992, 5
        %v2420 = vsel %vm1566, %v2418, %v2419
        %v2421 = vrot.slane %v2419, 4
        %v2422 = vrot.slane %v1993, 5
        %v2423 = vsel %vm1566, %v2421, %v2422
        %v2424 = vrot.slane %v2362, 5
        %v2425 = vrot.slane %v2424, 4
        %v2426 = vrot.slane %v1995, 5
        %v2427 = vsel %vm1566, %v2425, %v2426
        %v2428 = vrot.slane %v2426, 4
        %v2429 = vrot.slane %v1996, 5
        %v2430 = vsel %vm1566, %v2428, %v2429
        %v2431 = vrot.slane %v2363, 5
        %v2432 = vrot.slane %v2431, 4
        %v2433 = vrot.slane %v1998, 5
        %v2434 = vsel %vm1566, %v2432, %v2433
        %v2435 = vrot.slane %v2433, 4
        %v2436 = vrot.slane %v1999, 5
        %v2437 = vsel %vm1566, %v2435, %v2436
        %v2438 = vrot.slane %v2364, 5
        %v2439 = vrot.slane %v2438, 4
        %v2440 = vrot.slane %v2001, 5
        %v2441 = vsel %vm1566, %v2439, %v2440
        %v2442 = vrot.slane %v2440, 4
        %v2443 = vrot.slane %v2002, 5
        %v2444 = vsel %vm1566, %v2442, %v2443
        %s2445 = scalar_lea.vmem [#allocation8], 320
        %v2446 = vld [vmem:[%s2445] sm:$0xf]
        %v2447 = vld [vmem:[%s2445 + $0x4] sm:$0xf]
        %v2448 = vld [vmem:[%s2445 + $0x8] sm:$0xf]
        %v2449 = vld [vmem:[%s2445 + $0xc] sm:$0xf]
        %v2450 = vld [vmem:[%s2445 + $0x10] sm:$0xf]
        %v2451 = vld [vmem:[%s2445 + $0x14] sm:$0xf]
        %v2452 = vld [vmem:[%s2445 + $0x18] sm:$0xf]
        %v2453 = vld [vmem:[%s2445 + $0x1c] sm:$0xf]
        %v2454 = vld [vmem:[%s2445 + $0x20] sm:$0xf]
        %v2455 = vld [vmem:[%s2445 + $0x24] sm:$0xf]
        %v2456 = vld [vmem:[%s2445 + $0x28] sm:$0xf]
        %v2457 = vld [vmem:[%s2445 + $0x2c] sm:$0xf]
        %v2458 = vld [vmem:[%s2445 + $0x30] sm:$0xf]
        %v2459 = vld [vmem:[%s2445 + $0x34] sm:$0xf]
        %v2460 = vld [vmem:[%s2445 + $0x38] sm:$0xf]
        %v2461 = vld [vmem:[%s2445 + $0x3c] sm:$0xf]
        %v2462 = vunpack.c.l.b16 %v2392
        %v2463 = vunpack.c.l.b16 %v2395
        %v2464 = vunpack.c.l.b16 %v2399
        %v2465 = vunpack.c.l.b16 %v2402
        %v2466 = vunpack.c.l.b16 %v2406
        %v2467 = vunpack.c.l.b16 %v2409
        %v2468 = vunpack.c.l.b16 %v2413
        %v2469 = vunpack.c.l.b16 %v2416
        %v2470 = vunpack.c.l.b16 %v2420
        %v2471 = vunpack.c.l.b16 %v2423
        %v2472 = vunpack.c.l.b16 %v2427
        %v2473 = vunpack.c.l.b16 %v2430
        %v2474 = vunpack.c.l.b16 %v2434
        %v2475 = vunpack.c.l.b16 %v2437
        %v2476 = vunpack.c.l.b16 %v2441
        %v2477 = vunpack.c.l.b16 %v2444
        %v2478 = vpack.c.b16 %v2463, %v2462
        %v2479 = vpack.c.b16 %v2465, %v2464
        %v2480 = vpack.c.b16 %v2467, %v2466
        %v2481 = vpack.c.b16 %v2469, %v2468
        %v2482 = vpack.c.b16 %v2471, %v2470
        %v2483 = vpack.c.b16 %v2473, %v2472
        %v2484 = vpack.c.b16 %v2475, %v2474
        %v2485 = vpack.c.b16 %v2477, %v2476
        %v2510 = vunpack.c.l.b16 %v2446
        %v2511 = vunpack.c.l.b16 %v2447
        %v2512 = vunpack.c.l.b16 %v2448
        %v2513 = vunpack.c.l.b16 %v2449
        %v2514 = vunpack.c.l.b16 %v2450
        %v2515 = vunpack.c.l.b16 %v2451
        %v2516 = vunpack.c.l.b16 %v2452
        %v2517 = vunpack.c.l.b16 %v2453
        %v2518 = vunpack.c.l.b16 %v2454
        %v2519 = vunpack.c.l.b16 %v2455
        %v2520 = vunpack.c.l.b16 %v2456
        %v2521 = vunpack.c.l.b16 %v2457
        %v2522 = vunpack.c.l.b16 %v2458
        %v2523 = vunpack.c.l.b16 %v2459
        %v2524 = vunpack.c.l.b16 %v2460
        %v2525 = vunpack.c.l.b16 %v2461
        %v2526 = vpack.c.b16 %v2511, %v2510
        %v2527 = vpack.c.b16 %v2513, %v2512
        %v2528 = vpack.c.b16 %v2515, %v2514
        %v2529 = vpack.c.b16 %v2517, %v2516
        %v2530 = vpack.c.b16 %v2519, %v2518
        %v2531 = vpack.c.b16 %v2521, %v2520
        %v2532 = vpack.c.b16 %v2523, %v2522
        %v2533 = vpack.c.b16 %v2525, %v2524
        %2542 = vmatpush.bf16.msra.mxu0 %v2533
        %2543 = vmatpush.bf16.msra.mxu0 %v2532
        %2544 = vmatpush.bf16.msra.mxu0 %v2531
        %2545 = vmatpush.bf16.msra.mxu0 %v2530
        %2546 = vmatpush.bf16.msra.mxu0 %v2529
        %2547 = vmatpush.bf16.msra.mxu0 %v2528
        %2548 = vmatpush.bf16.msra.mxu0 %v2527
        %2549 = vmatpush.bf16.msra.mxu0 %v2526
        %2550 = vmatmul.bf16.gmra.mxu0 %v2478
        %v2551 = vpop.f32.mrf.mxu0
        %v2552 = vadd.f32 0.0, %v2551
        %v2553 = vpop.f32.mrf.mxu0
        %v2554 = vadd.f32 0.0, %v2553
        %2555 = vmatmul.bf16.gmra.mxu0 %v2479
        %v2556 = vpop.f32.mrf.mxu0
        %v2557 = vadd.f32 0.0, %v2556
        %v2558 = vpop.f32.mrf.mxu0
        %v2559 = vadd.f32 0.0, %v2558
        %2560 = vmatmul.bf16.gmra.mxu0 %v2480
        %v2561 = vpop.f32.mrf.mxu0
        %v2562 = vadd.f32 0.0, %v2561
        %v2563 = vpop.f32.mrf.mxu0
        %v2564 = vadd.f32 0.0, %v2563
        %2565 = vmatmul.bf16.gmra.mxu0 %v2481
        %v2566 = vpop.f32.mrf.mxu0
        %v2567 = vadd.f32 0.0, %v2566
        %v2568 = vpop.f32.mrf.mxu0
        %v2569 = vadd.f32 0.0, %v2568
        %2570 = vmatmul.bf16.gmra.mxu0 %v2482
        %v2571 = vpop.f32.mrf.mxu0
        %v2572 = vadd.f32 0.0, %v2571
        %v2573 = vpop.f32.mrf.mxu0
        %v2574 = vadd.f32 0.0, %v2573
        %2575 = vmatmul.bf16.gmra.mxu0 %v2483
        %v2576 = vpop.f32.mrf.mxu0
        %v2577 = vadd.f32 0.0, %v2576
        %v2578 = vpop.f32.mrf.mxu0
        %v2579 = vadd.f32 0.0, %v2578
        %2580 = vmatmul.bf16.gmra.mxu0 %v2484
        %v2581 = vpop.f32.mrf.mxu0
        %v2582 = vadd.f32 0.0, %v2581
        %v2583 = vpop.f32.mrf.mxu0
        %v2584 = vadd.f32 0.0, %v2583
        %2585 = vmatmul.bf16.gmra.mxu0 %v2485
        %v2586 = vpop.f32.mrf.mxu0
        %v2587 = vadd.f32 0.0, %v2586
        %v2588 = vpop.f32.mrf.mxu0
        %v2589 = vadd.f32 0.0, %v2588
        %2590 = vdwg.mxu0
        %v2591 = vadd.f32 %v2341, %v2552
        %v2592 = vadd.f32 %v2342, %v2554
        %v2593 = vadd.f32 %v2343, %v2557
        %v2594 = vadd.f32 %v2344, %v2559
        %v2595 = vadd.f32 %v2345, %v2562
        %v2596 = vadd.f32 %v2346, %v2564
        %v2597 = vadd.f32 %v2347, %v2567
        %v2598 = vadd.f32 %v2348, %v2569
        %v2599 = vadd.f32 %v2349, %v2572
        %v2600 = vadd.f32 %v2350, %v2574
        %v2601 = vadd.f32 %v2351, %v2577
        %v2602 = vadd.f32 %v2352, %v2579
        %v2603 = vadd.f32 %v2353, %v2582
        %v2604 = vadd.f32 %v2354, %v2584
        %v2605 = vadd.f32 %v2355, %v2587
        %v2606 = vadd.f32 %v2356, %v2589
        %s2607 = scalar_lea.vmem [#allocation2], 24
        %v2608 = vld [vmem:[%s2607] sm:$0xf]
        %v2609 = vld [vmem:[%s2607 + $0x4] sm:$0xf]
        %v2610 = vld [vmem:[%s2607 + $0xc] sm:$0xf]
        %v2611 = vld [vmem:[%s2607 + $0x10] sm:$0xf]
        %v2612 = vld [vmem:[%s2607 + $0x18] sm:$0xf]
        %v2613 = vld [vmem:[%s2607 + $0x1c] sm:$0xf]
        %v2614 = vld [vmem:[%s2607 + $0x24] sm:$0xf]
        %v2615 = vld [vmem:[%s2607 + $0x28] sm:$0xf]
        %v2616 = vld [vmem:[%s2607 + $0x30] sm:$0xf]
        %v2617 = vld [vmem:[%s2607 + $0x34] sm:$0xf]
        %v2618 = vld [vmem:[%s2607 + $0x3c] sm:$0xf]
        %v2619 = vld [vmem:[%s2607 + $0x40] sm:$0xf]
        %v2620 = vld [vmem:[%s2607 + $0x48] sm:$0xf]
        %v2621 = vld [vmem:[%s2607 + $0x4c] sm:$0xf]
        %v2622 = vld [vmem:[%s2607 + $0x54] sm:$0xf]
        %v2623 = vld [vmem:[%s2607 + $0x58] sm:$0xf]
        %s2624 = scalar_lea.vmem [#allocation8], 384
        %v2625 = vld [vmem:[%s2624] sm:$0xf]
        %v2626 = vld [vmem:[%s2624 + $0x4] sm:$0xf]
        %v2627 = vld [vmem:[%s2624 + $0x8] sm:$0xf]
        %v2628 = vld [vmem:[%s2624 + $0xc] sm:$0xf]
        %v2629 = vld [vmem:[%s2624 + $0x10] sm:$0xf]
        %v2630 = vld [vmem:[%s2624 + $0x14] sm:$0xf]
        %v2631 = vld [vmem:[%s2624 + $0x18] sm:$0xf]
        %v2632 = vld [vmem:[%s2624 + $0x1c] sm:$0xf]
        %v2633 = vld [vmem:[%s2624 + $0x20] sm:$0xf]
        %v2634 = vld [vmem:[%s2624 + $0x24] sm:$0xf]
        %v2635 = vld [vmem:[%s2624 + $0x28] sm:$0xf]
        %v2636 = vld [vmem:[%s2624 + $0x2c] sm:$0xf]
        %v2637 = vld [vmem:[%s2624 + $0x30] sm:$0xf]
        %v2638 = vld [vmem:[%s2624 + $0x34] sm:$0xf]
        %v2639 = vld [vmem:[%s2624 + $0x38] sm:$0xf]
        %v2640 = vld [vmem:[%s2624 + $0x3c] sm:$0xf]
        %v2657 = vunpack.c.l.b16 %v2608
        %v2658 = vunpack.c.l.b16 %v2609
        %v2659 = vunpack.c.l.b16 %v2610
        %v2660 = vunpack.c.l.b16 %v2611
        %v2661 = vunpack.c.l.b16 %v2612
        %v2662 = vunpack.c.l.b16 %v2613
        %v2663 = vunpack.c.l.b16 %v2614
        %v2664 = vunpack.c.l.b16 %v2615
        %v2665 = vunpack.c.l.b16 %v2616
        %v2666 = vunpack.c.l.b16 %v2617
        %v2667 = vunpack.c.l.b16 %v2618
        %v2668 = vunpack.c.l.b16 %v2619
        %v2669 = vunpack.c.l.b16 %v2620
        %v2670 = vunpack.c.l.b16 %v2621
        %v2671 = vunpack.c.l.b16 %v2622
        %v2672 = vunpack.c.l.b16 %v2623
        %v2673 = vpack.c.b16 %v2658, %v2657
        %v2674 = vpack.c.b16 %v2660, %v2659
        %v2675 = vpack.c.b16 %v2662, %v2661
        %v2676 = vpack.c.b16 %v2664, %v2663
        %v2677 = vpack.c.b16 %v2666, %v2665
        %v2678 = vpack.c.b16 %v2668, %v2667
        %v2679 = vpack.c.b16 %v2670, %v2669
        %v2680 = vpack.c.b16 %v2672, %v2671
        %v2705 = vunpack.c.l.b16 %v2625
        %v2706 = vunpack.c.l.b16 %v2626
        %v2707 = vunpack.c.l.b16 %v2627
        %v2708 = vunpack.c.l.b16 %v2628
        %v2709 = vunpack.c.l.b16 %v2629
        %v2710 = vunpack.c.l.b16 %v2630
        %v2711 = vunpack.c.l.b16 %v2631
        %v2712 = vunpack.c.l.b16 %v2632
        %v2713 = vunpack.c.l.b16 %v2633
        %v2714 = vunpack.c.l.b16 %v2634
        %v2715 = vunpack.c.l.b16 %v2635
        %v2716 = vunpack.c.l.b16 %v2636
        %v2717 = vunpack.c.l.b16 %v2637
        %v2718 = vunpack.c.l.b16 %v2638
        %v2719 = vunpack.c.l.b16 %v2639
        %v2720 = vunpack.c.l.b16 %v2640
        %v2721 = vpack.c.b16 %v2706, %v2705
        %v2722 = vpack.c.b16 %v2708, %v2707
        %v2723 = vpack.c.b16 %v2710, %v2709
        %v2724 = vpack.c.b16 %v2712, %v2711
        %v2725 = vpack.c.b16 %v2714, %v2713
        %v2726 = vpack.c.b16 %v2716, %v2715
        %v2727 = vpack.c.b16 %v2718, %v2717
        %v2728 = vpack.c.b16 %v2720, %v2719
        %2737 = vmatpush.bf16.msra.mxu0 %v2728
        %2738 = vmatpush.bf16.msra.mxu0 %v2727
        %2739 = vmatpush.bf16.msra.mxu0 %v2726
        %2740 = vmatpush.bf16.msra.mxu0 %v2725
        %2741 = vmatpush.bf16.msra.mxu0 %v2724
        %2742 = vmatpush.bf16.msra.mxu0 %v2723
        %2743 = vmatpush.bf16.msra.mxu0 %v2722
        %2744 = vmatpush.bf16.msra.mxu0 %v2721
        %2745 = vmatmul.bf16.gmra.mxu0 %v2673
        %v2746 = vpop.f32.mrf.mxu0
        %v2747 = vadd.f32 0.0, %v2746
        %v2748 = vpop.f32.mrf.mxu0
        %v2749 = vadd.f32 0.0, %v2748
        %2750 = vmatmul.bf16.gmra.mxu0 %v2674
        %v2751 = vpop.f32.mrf.mxu0
        %v2752 = vadd.f32 0.0, %v2751
        %v2753 = vpop.f32.mrf.mxu0
        %v2754 = vadd.f32 0.0, %v2753
        %2755 = vmatmul.bf16.gmra.mxu0 %v2675
        %v2756 = vpop.f32.mrf.mxu0
        %v2757 = vadd.f32 0.0, %v2756
        %v2758 = vpop.f32.mrf.mxu0
        %v2759 = vadd.f32 0.0, %v2758
        %2760 = vmatmul.bf16.gmra.mxu0 %v2676
        %v2761 = vpop.f32.mrf.mxu0
        %v2762 = vadd.f32 0.0, %v2761
        %v2763 = vpop.f32.mrf.mxu0
        %v2764 = vadd.f32 0.0, %v2763
        %2765 = vmatmul.bf16.gmra.mxu0 %v2677
        %v2766 = vpop.f32.mrf.mxu0
        %v2767 = vadd.f32 0.0, %v2766
        %v2768 = vpop.f32.mrf.mxu0
        %v2769 = vadd.f32 0.0, %v2768
        %2770 = vmatmul.bf16.gmra.mxu0 %v2678
        %v2771 = vpop.f32.mrf.mxu0
        %v2772 = vadd.f32 0.0, %v2771
        %v2773 = vpop.f32.mrf.mxu0
        %v2774 = vadd.f32 0.0, %v2773
        %2775 = vmatmul.bf16.gmra.mxu0 %v2679
        %v2776 = vpop.f32.mrf.mxu0
        %v2777 = vadd.f32 0.0, %v2776
        %v2778 = vpop.f32.mrf.mxu0
        %v2779 = vadd.f32 0.0, %v2778
        %2780 = vmatmul.bf16.gmra.mxu0 %v2680
        %v2781 = vpop.f32.mrf.mxu0
        %v2782 = vadd.f32 0.0, %v2781
        %v2783 = vpop.f32.mrf.mxu0
        %v2784 = vadd.f32 0.0, %v2783
        %2785 = vdwg.mxu0
        %v2786 = vadd.f32 %v2591, %v2747
        %v2787 = vadd.f32 %v2592, %v2749
        %v2788 = vadd.f32 %v2593, %v2752
        %v2789 = vadd.f32 %v2594, %v2754
        %v2790 = vadd.f32 %v2595, %v2757
        %v2791 = vadd.f32 %v2596, %v2759
        %v2792 = vadd.f32 %v2597, %v2762
        %v2793 = vadd.f32 %v2598, %v2764
        %v2794 = vadd.f32 %v2599, %v2767
        %v2795 = vadd.f32 %v2600, %v2769
        %v2796 = vadd.f32 %v2601, %v2772
        %v2797 = vadd.f32 %v2602, %v2774
        %v2798 = vadd.f32 %v2603, %v2777
        %v2799 = vadd.f32 %v2604, %v2779
        %v2800 = vadd.f32 %v2605, %v2782
        %v2801 = vadd.f32 %v2606, %v2784
        %v2802 = vld [vmem:[%s2607] sm:$0xf]
        %v2803 = vld [vmem:[%s2607 + $0x4] sm:$0xf]
        %v2804 = vld [vmem:[%s2607 + $0x8] sm:$0x1]
        %v2805 = vld [vmem:[%s2607 + $0xc] sm:$0xf]
        %v2806 = vld [vmem:[%s2607 + $0x10] sm:$0xf]
        %v2807 = vld [vmem:[%s2607 + $0x14] sm:$0x1]
        %v2808 = vld [vmem:[%s2607 + $0x18] sm:$0xf]
        %v2809 = vld [vmem:[%s2607 + $0x1c] sm:$0xf]
        %v2810 = vld [vmem:[%s2607 + $0x20] sm:$0x1]
        %v2811 = vld [vmem:[%s2607 + $0x24] sm:$0xf]
        %v2812 = vld [vmem:[%s2607 + $0x28] sm:$0xf]
        %v2813 = vld [vmem:[%s2607 + $0x2c] sm:$0x1]
        %v2814 = vld [vmem:[%s2607 + $0x30] sm:$0xf]
        %v2815 = vld [vmem:[%s2607 + $0x34] sm:$0xf]
        %v2816 = vld [vmem:[%s2607 + $0x38] sm:$0x1]
        %v2817 = vld [vmem:[%s2607 + $0x3c] sm:$0xf]
        %v2818 = vld [vmem:[%s2607 + $0x40] sm:$0xf]
        %v2819 = vld [vmem:[%s2607 + $0x44] sm:$0x1]
        %v2820 = vld [vmem:[%s2607 + $0x48] sm:$0xf]
        %v2821 = vld [vmem:[%s2607 + $0x4c] sm:$0xf]
        %v2822 = vld [vmem:[%s2607 + $0x50] sm:$0x1]
        %v2823 = vld [vmem:[%s2607 + $0x54] sm:$0xf]
        %v2824 = vld [vmem:[%s2607 + $0x58] sm:$0xf]
        %v2825 = vld [vmem:[%s2607 + $0x5c] sm:$0x1]
        %v2827 = vshrl.u32 %v2802, 16
        %v2829 = vrot.slane %v2827, 4
        %v2830 = vshll.u32 %v2802, 16
        %v2832 = vrot.slane %v2830, 5
        %v2833 = vor.u32 %v2829, %v2832
        %v2834 = vrot.slane %v2833, 4
        %v2836 = vshll.u32 %v2803, 16
        %v2838 = vrot.slane %v2836, 5
        %v2839 = vsel %vm1056, %v2834, %v2838
        %v2840 = vshrl.u32 %v2803, 16
        %v2842 = vrot.slane %v2840, 4
        %v2843 = vor.u32 %v2842, %v2838
        %v2844 = vrot.slane %v2843, 4
        %v2846 = vshll.u32 %v2804, 16
        %v2848 = vrot.slane %v2846, 5
        %v2849 = vsel %vm1056, %v2844, %v2848
        %v2851 = vshrl.u32 %v2805, 16
        %v2853 = vrot.slane %v2851, 4
        %v2854 = vshll.u32 %v2805, 16
        %v2856 = vrot.slane %v2854, 5
        %v2857 = vor.u32 %v2853, %v2856
        %v2858 = vrot.slane %v2857, 4
        %v2860 = vshll.u32 %v2806, 16
        %v2862 = vrot.slane %v2860, 5
        %v2863 = vsel %vm1056, %v2858, %v2862
        %v2864 = vshrl.u32 %v2806, 16
        %v2866 = vrot.slane %v2864, 4
        %v2867 = vor.u32 %v2866, %v2862
        %v2868 = vrot.slane %v2867, 4
        %v2870 = vshll.u32 %v2807, 16
        %v2872 = vrot.slane %v2870, 5
        %v2873 = vsel %vm1056, %v2868, %v2872
        %v2875 = vshrl.u32 %v2808, 16
        %v2877 = vrot.slane %v2875, 4
        %v2878 = vshll.u32 %v2808, 16
        %v2880 = vrot.slane %v2878, 5
        %v2881 = vor.u32 %v2877, %v2880
        %v2882 = vrot.slane %v2881, 4
        %v2884 = vshll.u32 %v2809, 16
        %v2886 = vrot.slane %v2884, 5
        %v2887 = vsel %vm1056, %v2882, %v2886
        %v2888 = vshrl.u32 %v2809, 16
        %v2890 = vrot.slane %v2888, 4
        %v2891 = vor.u32 %v2890, %v2886
        %v2892 = vrot.slane %v2891, 4
        %v2894 = vshll.u32 %v2810, 16
        %v2896 = vrot.slane %v2894, 5
        %v2897 = vsel %vm1056, %v2892, %v2896
        %v2899 = vshrl.u32 %v2811, 16
        %v2901 = vrot.slane %v2899, 4
        %v2902 = vshll.u32 %v2811, 16
        %v2904 = vrot.slane %v2902, 5
        %v2905 = vor.u32 %v2901, %v2904
        %v2906 = vrot.slane %v2905, 4
        %v2908 = vshll.u32 %v2812, 16
        %v2910 = vrot.slane %v2908, 5
        %v2911 = vsel %vm1056, %v2906, %v2910
        %v2912 = vshrl.u32 %v2812, 16
        %v2914 = vrot.slane %v2912, 4
        %v2915 = vor.u32 %v2914, %v2910
        %v2916 = vrot.slane %v2915, 4
        %v2918 = vshll.u32 %v2813, 16
        %v2920 = vrot.slane %v2918, 5
        %v2921 = vsel %vm1056, %v2916, %v2920
        %v2923 = vshrl.u32 %v2814, 16
        %v2925 = vrot.slane %v2923, 4
        %v2926 = vshll.u32 %v2814, 16
        %v2928 = vrot.slane %v2926, 5
        %v2929 = vor.u32 %v2925, %v2928
        %v2930 = vrot.slane %v2929, 4
        %v2932 = vshll.u32 %v2815, 16
        %v2934 = vrot.slane %v2932, 5
        %v2935 = vsel %vm1056, %v2930, %v2934
        %v2936 = vshrl.u32 %v2815, 16
        %v2938 = vrot.slane %v2936, 4
        %v2939 = vor.u32 %v2938, %v2934
        %v2940 = vrot.slane %v2939, 4
        %v2942 = vshll.u32 %v2816, 16
        %v2944 = vrot.slane %v2942, 5
        %v2945 = vsel %vm1056, %v2940, %v2944
        %v2947 = vshrl.u32 %v2817, 16
        %v2949 = vrot.slane %v2947, 4
        %v2950 = vshll.u32 %v2817, 16
        %v2952 = vrot.slane %v2950, 5
        %v2953 = vor.u32 %v2949, %v2952
        %v2954 = vrot.slane %v2953, 4
        %v2956 = vshll.u32 %v2818, 16
        %v2958 = vrot.slane %v2956, 5
        %v2959 = vsel %vm1056, %v2954, %v2958
        %v2960 = vshrl.u32 %v2818, 16
        %v2962 = vrot.slane %v2960, 4
        %v2963 = vor.u32 %v2962, %v2958
        %v2964 = vrot.slane %v2963, 4
        %v2966 = vshll.u32 %v2819, 16
        %v2968 = vrot.slane %v2966, 5
        %v2969 = vsel %vm1056, %v2964, %v2968
        %v2971 = vshrl.u32 %v2820, 16
        %v2973 = vrot.slane %v2971, 4
        %v2974 = vshll.u32 %v2820, 16
        %v2976 = vrot.slane %v2974, 5
        %v2977 = vor.u32 %v2973, %v2976
        %v2978 = vrot.slane %v2977, 4
        %v2980 = vshll.u32 %v2821, 16
        %v2982 = vrot.slane %v2980, 5
        %v2983 = vsel %vm1056, %v2978, %v2982
        %v2984 = vshrl.u32 %v2821, 16
        %v2986 = vrot.slane %v2984, 4
        %v2987 = vor.u32 %v2986, %v2982
        %v2988 = vrot.slane %v2987, 4
        %v2990 = vshll.u32 %v2822, 16
        %v2992 = vrot.slane %v2990, 5
        %v2993 = vsel %vm1056, %v2988, %v2992
        %v2995 = vshrl.u32 %v2823, 16
        %v2997 = vrot.slane %v2995, 4
        %v2998 = vshll.u32 %v2823, 16
        %v3000 = vrot.slane %v2998, 5
        %v3001 = vor.u32 %v2997, %v3000
        %v3002 = vrot.slane %v3001, 4
        %v3004 = vshll.u32 %v2824, 16
        %v3006 = vrot.slane %v3004, 5
        %v3007 = vsel %vm1056, %v3002, %v3006
        %v3008 = vshrl.u32 %v2824, 16
        %v3010 = vrot.slane %v3008, 4
        %v3011 = vor.u32 %v3010, %v3006
        %v3012 = vrot.slane %v3011, 4
        %v3014 = vshll.u32 %v2825, 16
        %v3016 = vrot.slane %v3014, 5
        %v3017 = vsel %vm1056, %v3012, %v3016
        %s3018 = scalar_lea.vmem [#allocation8], 448
        %v3019 = vld [vmem:[%s3018] sm:$0xf]
        %v3020 = vld [vmem:[%s3018 + $0x4] sm:$0xf]
        %v3021 = vld [vmem:[%s3018 + $0x8] sm:$0xf]
        %v3022 = vld [vmem:[%s3018 + $0xc] sm:$0xf]
        %v3023 = vld [vmem:[%s3018 + $0x10] sm:$0xf]
        %v3024 = vld [vmem:[%s3018 + $0x14] sm:$0xf]
        %v3025 = vld [vmem:[%s3018 + $0x18] sm:$0xf]
        %v3026 = vld [vmem:[%s3018 + $0x1c] sm:$0xf]
        %v3027 = vld [vmem:[%s3018 + $0x20] sm:$0xf]
        %v3028 = vld [vmem:[%s3018 + $0x24] sm:$0xf]
        %v3029 = vld [vmem:[%s3018 + $0x28] sm:$0xf]
        %v3030 = vld [vmem:[%s3018 + $0x2c] sm:$0xf]
        %v3031 = vld [vmem:[%s3018 + $0x30] sm:$0xf]
        %v3032 = vld [vmem:[%s3018 + $0x34] sm:$0xf]
        %v3033 = vld [vmem:[%s3018 + $0x38] sm:$0xf]
        %v3034 = vld [vmem:[%s3018 + $0x3c] sm:$0xf]
        %v3035 = vunpack.c.l.b16 %v2839
        %v3036 = vunpack.c.l.b16 %v2849
        %v3037 = vunpack.c.l.b16 %v2863
        %v3038 = vunpack.c.l.b16 %v2873
        %v3039 = vunpack.c.l.b16 %v2887
        %v3040 = vunpack.c.l.b16 %v2897
        %v3041 = vunpack.c.l.b16 %v2911
        %v3042 = vunpack.c.l.b16 %v2921
        %v3043 = vunpack.c.l.b16 %v2935
        %v3044 = vunpack.c.l.b16 %v2945
        %v3045 = vunpack.c.l.b16 %v2959
        %v3046 = vunpack.c.l.b16 %v2969
        %v3047 = vunpack.c.l.b16 %v2983
        %v3048 = vunpack.c.l.b16 %v2993
        %v3049 = vunpack.c.l.b16 %v3007
        %v3050 = vunpack.c.l.b16 %v3017
        %v3051 = vpack.c.b16 %v3036, %v3035
        %v3052 = vpack.c.b16 %v3038, %v3037
        %v3053 = vpack.c.b16 %v3040, %v3039
        %v3054 = vpack.c.b16 %v3042, %v3041
        %v3055 = vpack.c.b16 %v3044, %v3043
        %v3056 = vpack.c.b16 %v3046, %v3045
        %v3057 = vpack.c.b16 %v3048, %v3047
        %v3058 = vpack.c.b16 %v3050, %v3049
        %v3083 = vunpack.c.l.b16 %v3019
        %v3084 = vunpack.c.l.b16 %v3020
        %v3085 = vunpack.c.l.b16 %v3021
        %v3086 = vunpack.c.l.b16 %v3022
        %v3087 = vunpack.c.l.b16 %v3023
        %v3088 = vunpack.c.l.b16 %v3024
        %v3089 = vunpack.c.l.b16 %v3025
        %v3090 = vunpack.c.l.b16 %v3026
        %v3091 = vunpack.c.l.b16 %v3027
        %v3092 = vunpack.c.l.b16 %v3028
        %v3093 = vunpack.c.l.b16 %v3029
        %v3094 = vunpack.c.l.b16 %v3030
        %v3095 = vunpack.c.l.b16 %v3031
        %v3096 = vunpack.c.l.b16 %v3032
        %v3097 = vunpack.c.l.b16 %v3033
        %v3098 = vunpack.c.l.b16 %v3034
        %v3099 = vpack.c.b16 %v3084, %v3083
        %v3100 = vpack.c.b16 %v3086, %v3085
        %v3101 = vpack.c.b16 %v3088, %v3087
        %v3102 = vpack.c.b16 %v3090, %v3089
        %v3103 = vpack.c.b16 %v3092, %v3091
        %v3104 = vpack.c.b16 %v3094, %v3093
        %v3105 = vpack.c.b16 %v3096, %v3095
        %v3106 = vpack.c.b16 %v3098, %v3097
        %3115 = vmatpush.bf16.msra.mxu0 %v3106
        %3116 = vmatpush.bf16.msra.mxu0 %v3105
        %3117 = vmatpush.bf16.msra.mxu0 %v3104
        %3118 = vmatpush.bf16.msra.mxu0 %v3103
        %3119 = vmatpush.bf16.msra.mxu0 %v3102
        %3120 = vmatpush.bf16.msra.mxu0 %v3101
        %3121 = vmatpush.bf16.msra.mxu0 %v3100
        %3122 = vmatpush.bf16.msra.mxu0 %v3099
        %3123 = vmatmul.bf16.gmra.mxu0 %v3051
        %v3124 = vpop.f32.mrf.mxu0
        %v3125 = vadd.f32 0.0, %v3124
        %v3126 = vpop.f32.mrf.mxu0
        %v3127 = vadd.f32 0.0, %v3126
        %3128 = vmatmul.bf16.gmra.mxu0 %v3052
        %v3129 = vpop.f32.mrf.mxu0
        %v3130 = vadd.f32 0.0, %v3129
        %v3131 = vpop.f32.mrf.mxu0
        %v3132 = vadd.f32 0.0, %v3131
        %3133 = vmatmul.bf16.gmra.mxu0 %v3053
        %v3134 = vpop.f32.mrf.mxu0
        %v3135 = vadd.f32 0.0, %v3134
        %v3136 = vpop.f32.mrf.mxu0
        %v3137 = vadd.f32 0.0, %v3136
        %3138 = vmatmul.bf16.gmra.mxu0 %v3054
        %v3139 = vpop.f32.mrf.mxu0
        %v3140 = vadd.f32 0.0, %v3139
        %v3141 = vpop.f32.mrf.mxu0
        %v3142 = vadd.f32 0.0, %v3141
        %3143 = vmatmul.bf16.gmra.mxu0 %v3055
        %v3144 = vpop.f32.mrf.mxu0
        %v3145 = vadd.f32 0.0, %v3144
        %v3146 = vpop.f32.mrf.mxu0
        %v3147 = vadd.f32 0.0, %v3146
        %3148 = vmatmul.bf16.gmra.mxu0 %v3056
        %v3149 = vpop.f32.mrf.mxu0
        %v3150 = vadd.f32 0.0, %v3149
        %v3151 = vpop.f32.mrf.mxu0
        %v3152 = vadd.f32 0.0, %v3151
        %3153 = vmatmul.bf16.gmra.mxu0 %v3057
        %v3154 = vpop.f32.mrf.mxu0
        %v3155 = vadd.f32 0.0, %v3154
        %v3156 = vpop.f32.mrf.mxu0
        %v3157 = vadd.f32 0.0, %v3156
        %3158 = vmatmul.bf16.gmra.mxu0 %v3058
        %v3159 = vpop.f32.mrf.mxu0
        %v3160 = vadd.f32 0.0, %v3159
        %v3161 = vpop.f32.mrf.mxu0
        %v3162 = vadd.f32 0.0, %v3161
        %3163 = vdwg.mxu0
        %v3164 = vadd.f32 %v2786, %v3125
        %v3165 = vadd.f32 %v2787, %v3127
        %v3166 = vadd.f32 %v2788, %v3130
        %v3167 = vadd.f32 %v2789, %v3132
        %v3168 = vadd.f32 %v2790, %v3135
        %v3169 = vadd.f32 %v2791, %v3137
        %v3170 = vadd.f32 %v2792, %v3140
        %v3171 = vadd.f32 %v2793, %v3142
        %v3172 = vadd.f32 %v2794, %v3145
        %v3173 = vadd.f32 %v2795, %v3147
        %v3174 = vadd.f32 %v2796, %v3150
        %v3175 = vadd.f32 %v2797, %v3152
        %v3176 = vadd.f32 %v2798, %v3155
        %v3177 = vadd.f32 %v2799, %v3157
        %v3178 = vadd.f32 %v2800, %v3160
        %v3179 = vadd.f32 %v2801, %v3162
        %v3180 = vld [vmem:[%s2607] sm:$0xe]
        %v3181 = vld [vmem:[%s2607 + $0xc] sm:$0xe]
        %v3182 = vld [vmem:[%s2607 + $0x18] sm:$0xe]
        %v3183 = vld [vmem:[%s2607 + $0x24] sm:$0xe]
        %v3184 = vld [vmem:[%s2607 + $0x30] sm:$0xe]
        %v3185 = vld [vmem:[%s2607 + $0x3c] sm:$0xe]
        %v3186 = vld [vmem:[%s2607 + $0x48] sm:$0xe]
        %v3187 = vld [vmem:[%s2607 + $0x54] sm:$0xe]
        %v3212 = vrot.slane %v3180, 5
        %v3213 = vrot.slane %v3212, 4
        %v3214 = vrot.slane %v2803, 5
        %v3215 = vsel %vm1566, %v3213, %v3214
        %v3216 = vrot.slane %v3214, 4
        %v3217 = vrot.slane %v2804, 5
        %v3218 = vsel %vm1566, %v3216, %v3217
        %v3219 = vrot.slane %v3181, 5
        %v3220 = vrot.slane %v3219, 4
        %v3221 = vrot.slane %v2806, 5
        %v3222 = vsel %vm1566, %v3220, %v3221
        %v3223 = vrot.slane %v3221, 4
        %v3224 = vrot.slane %v2807, 5
        %v3225 = vsel %vm1566, %v3223, %v3224
        %v3226 = vrot.slane %v3182, 5
        %v3227 = vrot.slane %v3226, 4
        %v3228 = vrot.slane %v2809, 5
        %v3229 = vsel %vm1566, %v3227, %v3228
        %v3230 = vrot.slane %v3228, 4
        %v3231 = vrot.slane %v2810, 5
        %v3232 = vsel %vm1566, %v3230, %v3231
        %v3233 = vrot.slane %v3183, 5
        %v3234 = vrot.slane %v3233, 4
        %v3235 = vrot.slane %v2812, 5
        %v3236 = vsel %vm1566, %v3234, %v3235
        %v3237 = vrot.slane %v3235, 4
        %v3238 = vrot.slane %v2813, 5
        %v3239 = vsel %vm1566, %v3237, %v3238
        %v3240 = vrot.slane %v3184, 5
        %v3241 = vrot.slane %v3240, 4
        %v3242 = vrot.slane %v2815, 5
        %v3243 = vsel %vm1566, %v3241, %v3242
        %v3244 = vrot.slane %v3242, 4
        %v3245 = vrot.slane %v2816, 5
        %v3246 = vsel %vm1566, %v3244, %v3245
        %v3247 = vrot.slane %v3185, 5
        %v3248 = vrot.slane %v3247, 4
        %v3249 = vrot.slane %v2818, 5
        %v3250 = vsel %vm1566, %v3248, %v3249
        %v3251 = vrot.slane %v3249, 4
        %v3252 = vrot.slane %v2819, 5
        %v3253 = vsel %vm1566, %v3251, %v3252
        %v3254 = vrot.slane %v3186, 5
        %v3255 = vrot.slane %v3254, 4
        %v3256 = vrot.slane %v2821, 5
        %v3257 = vsel %vm1566, %v3255, %v3256
        %v3258 = vrot.slane %v3256, 4
        %v3259 = vrot.slane %v2822, 5
        %v3260 = vsel %vm1566, %v3258, %v3259
        %v3261 = vrot.slane %v3187, 5
        %v3262 = vrot.slane %v3261, 4
        %v3263 = vrot.slane %v2824, 5
        %v3264 = vsel %vm1566, %v3262, %v3263
        %v3265 = vrot.slane %v3263, 4
        %v3266 = vrot.slane %v2825, 5
        %v3267 = vsel %vm1566, %v3265, %v3266
        %s3268 = scalar_lea.vmem [#allocation8], 512
        %v3269 = vld [vmem:[%s3268] sm:$0xf]
        %v3270 = vld [vmem:[%s3268 + $0x4] sm:$0xf]
        %v3271 = vld [vmem:[%s3268 + $0x8] sm:$0xf]
        %v3272 = vld [vmem:[%s3268 + $0xc] sm:$0xf]
        %v3273 = vld [vmem:[%s3268 + $0x10] sm:$0xf]
        %v3274 = vld [vmem:[%s3268 + $0x14] sm:$0xf]
        %v3275 = vld [vmem:[%s3268 + $0x18] sm:$0xf]
        %v3276 = vld [vmem:[%s3268 + $0x1c] sm:$0xf]
        %v3277 = vld [vmem:[%s3268 + $0x20] sm:$0xf]
        %v3278 = vld [vmem:[%s3268 + $0x24] sm:$0xf]
        %v3279 = vld [vmem:[%s3268 + $0x28] sm:$0xf]
        %v3280 = vld [vmem:[%s3268 + $0x2c] sm:$0xf]
        %v3281 = vld [vmem:[%s3268 + $0x30] sm:$0xf]
        %v3282 = vld [vmem:[%s3268 + $0x34] sm:$0xf]
        %v3283 = vld [vmem:[%s3268 + $0x38] sm:$0xf]
        %v3284 = vld [vmem:[%s3268 + $0x3c] sm:$0xf]
        %v3285 = vunpack.c.l.b16 %v3215
        %v3286 = vunpack.c.l.b16 %v3218
        %v3287 = vunpack.c.l.b16 %v3222
        %v3288 = vunpack.c.l.b16 %v3225
        %v3289 = vunpack.c.l.b16 %v3229
        %v3290 = vunpack.c.l.b16 %v3232
        %v3291 = vunpack.c.l.b16 %v3236
        %v3292 = vunpack.c.l.b16 %v3239
        %v3293 = vunpack.c.l.b16 %v3243
        %v3294 = vunpack.c.l.b16 %v3246
        %v3295 = vunpack.c.l.b16 %v3250
        %v3296 = vunpack.c.l.b16 %v3253
        %v3297 = vunpack.c.l.b16 %v3257
        %v3298 = vunpack.c.l.b16 %v3260
        %v3299 = vunpack.c.l.b16 %v3264
        %v3300 = vunpack.c.l.b16 %v3267
        %v3301 = vpack.c.b16 %v3286, %v3285
        %v3302 = vpack.c.b16 %v3288, %v3287
        %v3303 = vpack.c.b16 %v3290, %v3289
        %v3304 = vpack.c.b16 %v3292, %v3291
        %v3305 = vpack.c.b16 %v3294, %v3293
        %v3306 = vpack.c.b16 %v3296, %v3295
        %v3307 = vpack.c.b16 %v3298, %v3297
        %v3308 = vpack.c.b16 %v3300, %v3299
        %v3333 = vunpack.c.l.b16 %v3269
        %v3334 = vunpack.c.l.b16 %v3270
        %v3335 = vunpack.c.l.b16 %v3271
        %v3336 = vunpack.c.l.b16 %v3272
        %v3337 = vunpack.c.l.b16 %v3273
        %v3338 = vunpack.c.l.b16 %v3274
        %v3339 = vunpack.c.l.b16 %v3275
        %v3340 = vunpack.c.l.b16 %v3276
        %v3341 = vunpack.c.l.b16 %v3277
        %v3342 = vunpack.c.l.b16 %v3278
        %v3343 = vunpack.c.l.b16 %v3279
        %v3344 = vunpack.c.l.b16 %v3280
        %v3345 = vunpack.c.l.b16 %v3281
        %v3346 = vunpack.c.l.b16 %v3282
        %v3347 = vunpack.c.l.b16 %v3283
        %v3348 = vunpack.c.l.b16 %v3284
        %v3349 = vpack.c.b16 %v3334, %v3333
        %v3350 = vpack.c.b16 %v3336, %v3335
        %v3351 = vpack.c.b16 %v3338, %v3337
        %v3352 = vpack.c.b16 %v3340, %v3339
        %v3353 = vpack.c.b16 %v3342, %v3341
        %v3354 = vpack.c.b16 %v3344, %v3343
        %v3355 = vpack.c.b16 %v3346, %v3345
        %v3356 = vpack.c.b16 %v3348, %v3347
        %3365 = vmatpush.bf16.msra.mxu0 %v3356
        %3366 = vmatpush.bf16.msra.mxu0 %v3355
        %3367 = vmatpush.bf16.msra.mxu0 %v3354
        %3368 = vmatpush.bf16.msra.mxu0 %v3353
        %3369 = vmatpush.bf16.msra.mxu0 %v3352
        %3370 = vmatpush.bf16.msra.mxu0 %v3351
        %3371 = vmatpush.bf16.msra.mxu0 %v3350
        %3372 = vmatpush.bf16.msra.mxu0 %v3349
        %3373 = vmatmul.bf16.gmra.mxu0 %v3301
        %v3374 = vpop.f32.mrf.mxu0
        %v3375 = vadd.f32 0.0, %v3374
        %v3376 = vpop.f32.mrf.mxu0
        %v3377 = vadd.f32 0.0, %v3376
        %3378 = vmatmul.bf16.gmra.mxu0 %v3302
        %v3379 = vpop.f32.mrf.mxu0
        %v3380 = vadd.f32 0.0, %v3379
        %v3381 = vpop.f32.mrf.mxu0
        %v3382 = vadd.f32 0.0, %v3381
        %3383 = vmatmul.bf16.gmra.mxu0 %v3303
        %v3384 = vpop.f32.mrf.mxu0
        %v3385 = vadd.f32 0.0, %v3384
        %v3386 = vpop.f32.mrf.mxu0
        %v3387 = vadd.f32 0.0, %v3386
        %3388 = vmatmul.bf16.gmra.mxu0 %v3304
        %v3389 = vpop.f32.mrf.mxu0
        %v3390 = vadd.f32 0.0, %v3389
        %v3391 = vpop.f32.mrf.mxu0
        %v3392 = vadd.f32 0.0, %v3391
        %3393 = vmatmul.bf16.gmra.mxu0 %v3305
        %v3394 = vpop.f32.mrf.mxu0
        %v3395 = vadd.f32 0.0, %v3394
        %v3396 = vpop.f32.mrf.mxu0
        %v3397 = vadd.f32 0.0, %v3396
        %3398 = vmatmul.bf16.gmra.mxu0 %v3306
        %v3399 = vpop.f32.mrf.mxu0
        %v3400 = vadd.f32 0.0, %v3399
        %v3401 = vpop.f32.mrf.mxu0
        %v3402 = vadd.f32 0.0, %v3401
        %3403 = vmatmul.bf16.gmra.mxu0 %v3307
        %v3404 = vpop.f32.mrf.mxu0
        %v3405 = vadd.f32 0.0, %v3404
        %v3406 = vpop.f32.mrf.mxu0
        %v3407 = vadd.f32 0.0, %v3406
        %3408 = vmatmul.bf16.gmra.mxu0 %v3308
        %v3409 = vpop.f32.mrf.mxu0
        %v3410 = vadd.f32 0.0, %v3409
        %v3411 = vpop.f32.mrf.mxu0
        %v3412 = vadd.f32 0.0, %v3411
        %3413 = vdwg.mxu0
        %v3414 = vadd.f32 %v3164, %v3375
        %v3415 = vadd.f32 %v3165, %v3377
        %v3416 = vadd.f32 %v3166, %v3380
        %v3417 = vadd.f32 %v3167, %v3382
        %v3418 = vadd.f32 %v3168, %v3385
        %v3419 = vadd.f32 %v3169, %v3387
        %v3420 = vadd.f32 %v3170, %v3390
        %v3421 = vadd.f32 %v3171, %v3392
        %v3422 = vadd.f32 %v3172, %v3395
        %v3423 = vadd.f32 %v3173, %v3397
        %v3424 = vadd.f32 %v3174, %v3400
        %v3425 = vadd.f32 %v3175, %v3402
        %v3426 = vadd.f32 %v3176, %v3405
        %v3427 = vadd.f32 %v3177, %v3407
        %v3428 = vadd.f32 %v3178, %v3410
        %v3429 = vadd.f32 %v3179, %v3412
        %v3430 = vld [vmem:[%s4] sm:$0x1]
        %v3432 = vperm.slane %v3430, 0
        %v3434 = vadd.f32 %v3414, %v3432
        %v3435 = vadd.f32 %v3415, %v3432
        %v3436 = vadd.f32 %v3416, %v3432
        %v3437 = vadd.f32 %v3417, %v3432
        %v3438 = vadd.f32 %v3418, %v3432
        %v3439 = vadd.f32 %v3419, %v3432
        %v3440 = vadd.f32 %v3420, %v3432
        %v3441 = vadd.f32 %v3421, %v3432
        %v3442 = vadd.f32 %v3422, %v3432
        %v3443 = vadd.f32 %v3423, %v3432
        %v3444 = vadd.f32 %v3424, %v3432
        %v3445 = vadd.f32 %v3425, %v3432
        %v3446 = vadd.f32 %v3426, %v3432
        %v3447 = vadd.f32 %v3427, %v3432
        %v3448 = vadd.f32 %v3428, %v3432
        %v3449 = vadd.f32 %v3429, %v3432
        %v3450 = vmax.f32 %v3434, 0.0
        %v3451 = vmax.f32 %v3435, 0.0
        %v3452 = vmax.f32 %v3436, 0.0
        %v3453 = vmax.f32 %v3437, 0.0
        %v3454 = vmax.f32 %v3438, 0.0
        %v3455 = vmax.f32 %v3439, 0.0
        %v3456 = vmax.f32 %v3440, 0.0
        %v3457 = vmax.f32 %v3441, 0.0
        %v3458 = vmax.f32 %v3442, 0.0
        %v3459 = vmax.f32 %v3443, 0.0
        %v3460 = vmax.f32 %v3444, 0.0
        %v3461 = vmax.f32 %v3445, 0.0
        %v3462 = vmax.f32 %v3446, 0.0
        %v3463 = vmax.f32 %v3447, 0.0
        %v3464 = vmax.f32 %v3448, 0.0
        %v3465 = vmax.f32 %v3449, 0.0
        %v3466 = vpack.c.bf16 %v3451, %v3450
        %v3467 = vpack.c.bf16 %v3453, %v3452
        %v3468 = vpack.c.bf16 %v3455, %v3454
        %v3469 = vpack.c.bf16 %v3457, %v3456
        %v3470 = vpack.c.bf16 %v3459, %v3458
        %v3471 = vpack.c.bf16 %v3461, %v3460
        %v3472 = vpack.c.bf16 %v3463, %v3462
        %v3473 = vpack.c.bf16 %v3465, %v3464
        %v3474 = vld [vmem:[#allocation9] sm:$0xf]
        %v3475 = vld [vmem:[#allocation9 + $0x4] sm:$0xf]
        %v3476 = vld [vmem:[#allocation9 + $0x8] sm:$0xf]
        %v3477 = vld [vmem:[#allocation9 + $0xc] sm:$0xf]
        %v3478 = vld [vmem:[#allocation9 + $0x10] sm:$0xf]
        %v3479 = vld [vmem:[#allocation9 + $0x14] sm:$0xf]
        %v3480 = vld [vmem:[#allocation9 + $0x18] sm:$0xf]
        %v3481 = vld [vmem:[#allocation9 + $0x1c] sm:$0xf]
        %v3482 = vld [vmem:[#allocation9 + $0x20] sm:$0xf]
        %v3483 = vld [vmem:[#allocation9 + $0x24] sm:$0xf]
        %v3484 = vld [vmem:[#allocation9 + $0x28] sm:$0xf]
        %v3485 = vld [vmem:[#allocation9 + $0x2c] sm:$0xf]
        %v3486 = vld [vmem:[#allocation9 + $0x30] sm:$0xf]
        %v3487 = vld [vmem:[#allocation9 + $0x34] sm:$0xf]
        %v3488 = vld [vmem:[#allocation9 + $0x38] sm:$0xf]
        %v3489 = vld [vmem:[#allocation9 + $0x3c] sm:$0xf]
        %v3490 = vld [vmem:[%s6] sm:$0x1]
        %v3492 = vperm.slane %v3490, 0
        %v3510 = vunpack.c.l.b16 %v3474
        %v3511 = vunpack.c.l.b16 %v3475
        %v3512 = vunpack.c.l.b16 %v3476
        %v3513 = vunpack.c.l.b16 %v3477
        %v3514 = vunpack.c.l.b16 %v3478
        %v3515 = vunpack.c.l.b16 %v3479
        %v3516 = vunpack.c.l.b16 %v3480
        %v3517 = vunpack.c.l.b16 %v3481
        %v3518 = vunpack.c.l.b16 %v3482
        %v3519 = vunpack.c.l.b16 %v3483
        %v3520 = vunpack.c.l.b16 %v3484
        %v3521 = vunpack.c.l.b16 %v3485
        %v3522 = vunpack.c.l.b16 %v3486
        %v3523 = vunpack.c.l.b16 %v3487
        %v3524 = vunpack.c.l.b16 %v3488
        %v3525 = vunpack.c.l.b16 %v3489
        %v3526 = vpack.c.b16 %v3511, %v3510
        %v3527 = vpack.c.b16 %v3513, %v3512
        %v3528 = vpack.c.b16 %v3515, %v3514
        %v3529 = vpack.c.b16 %v3517, %v3516
        %v3530 = vpack.c.b16 %v3519, %v3518
        %v3531 = vpack.c.b16 %v3521, %v3520
        %v3532 = vpack.c.b16 %v3523, %v3522
        %v3533 = vpack.c.b16 %v3525, %v3524
        %3542 = vmatpush.bf16.msra.mxu0 %v3533
        %3543 = vmatpush.bf16.msra.mxu0 %v3532
        %3544 = vmatpush.bf16.msra.mxu0 %v3531
        %3545 = vmatpush.bf16.msra.mxu0 %v3530
        %3546 = vmatpush.bf16.msra.mxu0 %v3529
        %3547 = vmatpush.bf16.msra.mxu0 %v3528
        %3548 = vmatpush.bf16.msra.mxu0 %v3527
        %3549 = vmatpush.bf16.msra.mxu0 %v3526
        %3550 = vmatmul.bf16.gmra.mxu0 %v3466
        %v3551 = vpop.f32.mrf.mxu0
        %v3552 = vadd.f32 %v3492, %v3551
        %v3553 = vpop.f32.mrf.mxu0
        %v3554 = vadd.f32 %v3492, %v3553
        %3555 = vmatmul.bf16.gmra.mxu0 %v3467
        %v3556 = vpop.f32.mrf.mxu0
        %v3557 = vadd.f32 %v3492, %v3556
        %v3558 = vpop.f32.mrf.mxu0
        %v3559 = vadd.f32 %v3492, %v3558
        %3560 = vmatmul.bf16.gmra.mxu0 %v3468
        %v3561 = vpop.f32.mrf.mxu0
        %v3562 = vadd.f32 %v3492, %v3561
        %v3563 = vpop.f32.mrf.mxu0
        %v3564 = vadd.f32 %v3492, %v3563
        %3565 = vmatmul.bf16.gmra.mxu0 %v3469
        %v3566 = vpop.f32.mrf.mxu0
        %v3567 = vadd.f32 %v3492, %v3566
        %v3568 = vpop.f32.mrf.mxu0
        %v3569 = vadd.f32 %v3492, %v3568
        %3570 = vmatmul.bf16.gmra.mxu0 %v3470
        %v3571 = vpop.f32.mrf.mxu0
        %v3572 = vadd.f32 %v3492, %v3571
        %v3573 = vpop.f32.mrf.mxu0
        %v3574 = vadd.f32 %v3492, %v3573
        %3575 = vmatmul.bf16.gmra.mxu0 %v3471
        %v3576 = vpop.f32.mrf.mxu0
        %v3577 = vadd.f32 %v3492, %v3576
        %v3578 = vpop.f32.mrf.mxu0
        %v3579 = vadd.f32 %v3492, %v3578
        %3580 = vmatmul.bf16.gmra.mxu0 %v3472
        %v3581 = vpop.f32.mrf.mxu0
        %v3582 = vadd.f32 %v3492, %v3581
        %v3583 = vpop.f32.mrf.mxu0
        %v3584 = vadd.f32 %v3492, %v3583
        %3585 = vmatmul.bf16.gmra.mxu0 %v3473
        %v3586 = vpop.f32.mrf.mxu0
        %v3587 = vadd.f32 %v3492, %v3586
        %v3588 = vpop.f32.mrf.mxu0
        %v3589 = vadd.f32 %v3492, %v3588
        %3590 = vdwg.mxu0
        %v3591 = vld [vmem:[%s450] sm:$0xf]
        %v3592 = vld [vmem:[%s450 + $0x4] sm:$0xf]
        %v3593 = vld [vmem:[%s450 + $0x8] sm:$0xf]
        %v3594 = vld [vmem:[%s450 + $0xc] sm:$0xf]
        %v3595 = vld [vmem:[%s450 + $0x10] sm:$0xf]
        %v3596 = vld [vmem:[%s450 + $0x14] sm:$0xf]
        %v3597 = vld [vmem:[%s450 + $0x18] sm:$0xf]
        %v3598 = vld [vmem:[%s450 + $0x1c] sm:$0xf]
        %v3599 = vld [vmem:[%s450 + $0x20] sm:$0xf]
        %v3600 = vld [vmem:[%s450 + $0x24] sm:$0xf]
        %v3601 = vld [vmem:[%s450 + $0x28] sm:$0xf]
        %v3602 = vld [vmem:[%s450 + $0x2c] sm:$0xf]
        %v3603 = vld [vmem:[%s450 + $0x30] sm:$0xf]
        %v3604 = vld [vmem:[%s450 + $0x34] sm:$0xf]
        %v3605 = vld [vmem:[%s450 + $0x38] sm:$0xf]
        %v3606 = vld [vmem:[%s450 + $0x3c] sm:$0xf]
        %v3607 = vunpack.c.l.bf16 %v3591
        %v3608 = vunpack.c.l.bf16 %v3592
        %v3609 = vunpack.c.l.bf16 %v3593
        %v3610 = vunpack.c.l.bf16 %v3594
        %v3611 = vunpack.c.l.bf16 %v3595
        %v3612 = vunpack.c.l.bf16 %v3596
        %v3613 = vunpack.c.l.bf16 %v3597
        %v3614 = vunpack.c.l.bf16 %v3598
        %v3615 = vunpack.c.l.bf16 %v3599
        %v3616 = vunpack.c.l.bf16 %v3600
        %v3617 = vunpack.c.l.bf16 %v3601
        %v3618 = vunpack.c.l.bf16 %v3602
        %v3619 = vunpack.c.l.bf16 %v3603
        %v3620 = vunpack.c.l.bf16 %v3604
        %v3621 = vunpack.c.l.bf16 %v3605
        %v3622 = vunpack.c.l.bf16 %v3606
        %v3623 = vadd.f32 %v3552, %v3607
        %v3624 = vadd.f32 %v3554, %v3608
        %v3625 = vadd.f32 %v3557, %v3609
        %v3626 = vadd.f32 %v3559, %v3610
        %v3627 = vadd.f32 %v3562, %v3611
        %v3628 = vadd.f32 %v3564, %v3612
        %v3629 = vadd.f32 %v3567, %v3613
        %v3630 = vadd.f32 %v3569, %v3614
        %v3631 = vadd.f32 %v3572, %v3615
        %v3632 = vadd.f32 %v3574, %v3616
        %v3633 = vadd.f32 %v3577, %v3617
        %v3634 = vadd.f32 %v3579, %v3618
        %v3635 = vadd.f32 %v3582, %v3619
        %v3636 = vadd.f32 %v3584, %v3620
        %v3637 = vadd.f32 %v3587, %v3621
        %v3638 = vadd.f32 %v3589, %v3622
        %v3639 = vmax.f32 %v3623, 0.0
        %v3640 = vmax.f32 %v3624, 0.0
        %v3641 = vmax.f32 %v3625, 0.0
        %v3642 = vmax.f32 %v3626, 0.0
        %v3643 = vmax.f32 %v3627, 0.0
        %v3644 = vmax.f32 %v3628, 0.0
        %v3645 = vmax.f32 %v3629, 0.0
        %v3646 = vmax.f32 %v3630, 0.0
        %v3647 = vmax.f32 %v3631, 0.0
        %v3648 = vmax.f32 %v3632, 0.0
        %v3649 = vmax.f32 %v3633, 0.0
        %v3650 = vmax.f32 %v3634, 0.0
        %v3651 = vmax.f32 %v3635, 0.0
        %v3652 = vmax.f32 %v3636, 0.0
        %v3653 = vmax.f32 %v3637, 0.0
        %v3654 = vmax.f32 %v3638, 0.0
        %3655 = vst [vmem:[%s362] sm:$0xff] %v3639
        %3656 = vst [vmem:[%s362 + $0x8] sm:$0xff] %v3640
        %3657 = vst [vmem:[%s362 + $0x10] sm:$0xff] %v3641
        %3658 = vst [vmem:[%s362 + $0x18] sm:$0xff] %v3642
        %3659 = vst [vmem:[%s362 + $0x20] sm:$0xff] %v3643
        %3660 = vst [vmem:[%s362 + $0x28] sm:$0xff] %v3644
        %3661 = vst [vmem:[%s362 + $0x30] sm:$0xff] %v3645
        %3662 = vst [vmem:[%s362 + $0x38] sm:$0xff] %v3646
        %3663 = vst [vmem:[%s362 + $0x40] sm:$0xff] %v3647
        %3664 = vst [vmem:[%s362 + $0x48] sm:$0xff] %v3648
        %3665 = vst [vmem:[%s362 + $0x50] sm:$0xff] %v3649
        %3666 = vst [vmem:[%s362 + $0x58] sm:$0xff] %v3650
        %3667 = vst [vmem:[%s362 + $0x60] sm:$0xff] %v3651
        %3668 = vst [vmem:[%s362 + $0x68] sm:$0xff] %v3652
        %3669 = vst [vmem:[%s362 + $0x70] sm:$0xff] %v3653
        %3670 = vst [vmem:[%s362 + $0x78] sm:$0xff] %v3654
        %s3671 = sand.u32 %s200, 1
        %s3672 = scalar_lea.sflag [#allocation5], %s3671
        %s3673 = sand.u32 %s200, 1
        %s3674 = smul.addr %s3673, 128
        %s3675 = scalar_lea.vmem [#allocation11], %s3674
        // Predicated region
        $region81: #{tpu_custom_call.1} parent=47 // pred_check
          %p3676 = pneg %p210
        $region82: #{tpu_custom_call.1} parent=47 // pred_check_branch
          %3678 = sbr.rel (%p3676) target = $region84
        $region83: #{tpu_custom_call.1} parent=47 // pred_region
          %s3679 = smul.u32 8, %s31
          %3681 = vsyncadd %s3672, 0
          %s3682 = smul.addr %s3679, 2
          %s3683 = smul.addr %s30, 32
          %s3684 = sadd.s32 %s3682, %s3683
          %s3685 = smul.addr %s3684, 8
          %s3686 = scalar_lea.hbm %s7, %s3685
          %s3687 = sshll.u32 %s3675, 4
          %s3688 = int_to_ptr.vmem [resolvable:$true] %s3687
          %s3689 = sshll.u32 %s3686, 4
          %s3690 = int_to_ptr.hbm [resolvable:$true] %s3689
          %3695 = dma.vmem_to_hbm [thread:$0]  %s3688, 2048, %s3690, %s3672, 128, 128, 8
        $region84: #{tpu_custom_call.1} parent=47 // pred_fallthru
          _
      $region48: #{tpu_custom_call.1} parent=5 // pred_fallthru
        _
      %p3696 = scmp.le.s32.totalorder 2, %s21
      // Predicated region
      $region85: #{tpu_custom_call.1} parent=5 // pred_check
        %p3697 = pneg %p3696
      $region86: #{tpu_custom_call.1} parent=5 // pred_check_branch
        %3699 = sbr.rel (%p3697) target = $region88
      $region87: #{tpu_custom_call.1} parent=5 // pred_region
        %s3700 = ssub.s32 %s21, 2
        // Predicated region
        $region89: #{tpu_custom_call.1} parent=87 // pred_check
          %p3701 = pneg %p216
        $region90: #{tpu_custom_call.1} parent=87 // pred_check_branch
          %3703 = sbr.rel (%p3701) target = $region92
        $region91: #{tpu_custom_call.1} parent=87 // pred_region
          %s3704 = sand.u32 %s201, 1
          %s3705 = scalar_lea.sflag [#allocation5], %s3704
          %s3706 = sand.u32 %s201, 1
          %s3707 = smul.addr %s3706, 128
          %s3708 = scalar_lea.vmem [#allocation11], %s3707
          %3710 = dma.done %s3705, 2048
        $region92: #{tpu_custom_call.1} parent=87 // pred_fallthru
          _
      $region88: #{tpu_custom_call.1} parent=5 // pred_fallthru
        _
    $region6: #{tpu_custom_call.1} parent=1 // loop_footer
      %s25 = sadd.s32 1, %s21
    $region7: #{tpu_custom_call.1} parent=1 // loop_footer_branch
      %20 = sbr.rel target = $region3
    $region8: #{tpu_custom_call.1} parent=1 // loop_exit
      _
    %3711 = vsyncpa [#allocation4], 1
    %s3712 = scalar_lea.sflag [#allocation4], 1
    %3713 = vsyncpa %s3712, 1
    %3714 = vsyncpa [#allocation7], 1
    %3715 = vsyncpa [#allocation10], 1
    %3716 = vsyncpa [#allocation5], 1
    %s3717 = scalar_lea.sflag [#allocation5], 1
    %3718 = vsyncpa %s3717, 1

</llo_original>
